<compile_context>
chip_gen: v5e
topology: v5e:2x2
jax: 0.10.0
libtpu: 0.0.40
codegen_flags: <defaults>
</compile_context>

<pallas_src>
import numpy as np
import jax
import jax.numpy as jnp
from jax.experimental import pallas as pl
from jax.experimental.pallas import tpu as pltpu

_INV_SQRT2 = 0.7071067811865476
_MM_DTYPE = jnp.float32          # conv-matmul operand / pad-scratch dtype


# ----------------------------- in-kernel math ------------------------------ #
def _erf(x):
    # Abramowitz & Stegun 7.1.26 (|err| <= 1.5e-7), exp/mul/add only.
    p = 0.3275911
    a1, a2, a3, a4, a5 = (0.254829592, -0.284496736, 1.421413741,
                          -1.453152027, 1.061405429)
    s = jnp.where(x >= 0.0, 1.0, -1.0)
    z = jnp.abs(x)
    t = 1.0 / (1.0 + p * z)
    poly = ((((a5 * t + a4) * t + a3) * t + a2) * t + a1) * t
    return s * (1.0 - poly * jnp.exp(-z * z))


def _gelu(x):                      # torch.nn.GELU() (erf form)
    return 0.5 * x * (1.0 + _erf(x * _INV_SQRT2))


# --------------------- host-built constant matrices ------------------------ #
def _interp_taps(n_in, n_out):
    """align_corners=True 1-D interpolation: (lo, hi, frac) per output index."""
    taps = []
    for i in range(n_out):
        src = i * (n_in - 1) / (n_out - 1) if n_out > 1 else 0.0
        lo = min(int(np.floor(src)), n_in - 1)
        hi = min(lo + 1, n_in - 1)
        taps.append((lo, hi, float(src - lo)))
    return taps


def _interp_matrix(n_in, n_out):
    a = np.zeros((n_out, n_in), np.float32)
    for i, (lo, hi, f) in enumerate(_interp_taps(n_in, n_out)):
        a[i, lo] += 1.0 - f
        a[i, hi] += f
    return a


def _upsample_cat_matrix(a_w, c_x, c_skip):
    """(W*c_x, W2*c_in): W-axis interp + embed x into channels [c_skip:c_in]
    of the concat layout (lane index = w2*c_in + c)."""
    w2n, wn = a_w.shape
    c_in = c_skip + c_x
    m = np.zeros((wn, c_x, w2n, c_in), np.float32)
    m[:, :, :, c_skip:] = np.einsum("qw,ce->wcqe", a_w,
                                    np.eye(c_x, dtype=np.float32))
    return m.reshape(wn * c_x, w2n * c_in)


def _shift_select(w2n):
    """(3, W2, W2) selector: s[dw, w, wp] = 1  iff  w == wp + dw - 1."""
    s = np.zeros((3, w2n, w2n), np.float32)
    for dw in range(3):
        for wp in range(w2n):
            w = wp + dw - 1
            if 0 <= w < w2n:
                s[dw, w, wp] = 1.0
    return s


def _conv_block_mats(w_hwio, sel):
    """HWIO (3,3,ci,co) -> (3, W2*ci, W2*co) block-banded matrices so a 3x3
    same-padding conv in the (H, W*C) merged layout is
        sum_kh  pad[kh:kh+H2, :W2*ci] @ m[kh]."""
    kh, kw, ci, co = w_hwio.shape
    w2n = sel.shape[1]
    m = jnp.einsum("xwp,hxio->hwipo", jnp.asarray(sel),
                   w_hwio.astype(jnp.float32))
    return m.reshape(kh, w2n * ci, w2n * co).astype(_MM_DTYPE)


# --------------------------------- kernel ---------------------------------- #
def _make_up_kernel(h2, w2n, c_in, c_mid, c_out):
    wc_in, wc_mid = w2n * c_in, w2n * c_mid

    def group_norm(h, g_ref, b_ref, eps=1e-5):
        # GroupNorm(num_groups=1): staged reduce (sublane sums, then one row);
        # one-pass E[x^2]-E[x]^2 variance is fine at the 1e-2 tolerance in f32.
        n = h.shape[0] * h.shape[1]
        s1 = jnp.sum(h, axis=0, keepdims=True)
        s2 = jnp.sum(h * h, axis=0, keepdims=True)
        m1 = jnp.sum(s1, axis=1, keepdims=True) / n
        m2 = jnp.sum(s2, axis=1, keepdims=True) / n
        inv = jax.lax.rsqrt(m2 - m1 * m1 + eps)
        scale = g_ref[...] * inv                 # (1, W2*C), lane-dense
        shift = b_ref[...] - m1 * scale
        return h * scale + shift

    def kernel(x_ref, skip_ref, emb_ref, ah_ref, mup_ref,
               m1a_ref, g1a_ref, b1a_ref,
               m1b_ref, g1b_ref, b1b_ref,
               m2a_ref, g2a_ref, b2a_ref,
               m2b_ref, g2b_ref, b2b_ref,
               o_ref, pad_ref):
        # Zero only the two H-halo rows; the interior is always overwritten
        # before each conv read.
        zrow = jnp.zeros((1, wc_in), pad_ref.dtype)
        pad_ref[0:1, :] = zrow
        pad_ref[h2 + 1:h2 + 2, :] = zrow

        def conv3x3(ci_w, m_ref):
            # 3x3 / stride 1 / pad 1 / no-bias conv in the merged layout:
            # three MXU matmuls (one per kh tap); kw taps + W zero-padding are
            # folded into the block-banded weight matrices.
            acc = jnp.dot(pad_ref[0:h2, 0:ci_w], m_ref[0],
                          preferred_element_type=jnp.float32)
            acc += jnp.dot(pad_ref[1:h2 + 1, 0:ci_w], m_ref[1],
                           preferred_element_type=jnp.float32)
            acc += jnp.dot(pad_ref[2:h2 + 2, 0:ci_w], m_ref[2],
                           preferred_element_type=jnp.float32)
            return acc                            # (H2, W2*co), f32

        # ---- bilinear 2x upsample (align_corners=True), separable ----
        t1 = jnp.dot(ah_ref[...], x_ref[0],
                     preferred_element_type=jnp.float32)        # (H2, W*c_x)
        up_cat = jnp.dot(t1, mup_ref[...],
                         preferred_element_type=jnp.float32)    # (H2, W2*c_in)

        # ---- concat [skip, up]: skip arrives zero-embedded at [0:c_skip] ----
        xcat = skip_ref[0] + up_cat
        pad_ref[1:h2 + 1, :] = xcat.astype(pad_ref.dtype)

        # ---- DoubleConv #1 (residual=True) ----
        h = _gelu(group_norm(conv3x3(wc_in, m1a_ref), g1a_ref, b1a_ref))
        pad_ref[1:h2 + 1, :] = h.astype(pad_ref.dtype)
        h = group_norm(conv3x3(wc_in, m1b_ref), g1b_ref, b1b_ref)
        y = _gelu(xcat + h)                       # residual add stays f32

        # ---- DoubleConv #2 (c_in -> c_in//2 -> c_out) ----
        pad_ref[1:h2 + 1, :] = y.astype(pad_ref.dtype)
        h = _gelu(group_norm(conv3x3(wc_in, m2a_ref), g2a_ref, b2a_ref))
        # Invariant: lanes [wc_mid:wc_in] of the interior keep stale `y`; the
        # conv below reads only lanes [0:wc_mid] and the halo rows stay zero.
        pad_ref[1:h2 + 1, 0:wc_mid] = h.astype(pad_ref.dtype)
        h = group_norm(conv3x3(wc_mid, m2b_ref), g2b_ref, b2b_ref)

        # ---- + time embedding (hoisted to wrapper, pre-tiled); lane-dense
        # (H2, W2*c_out) output store ----
        o_ref[0] = (h + emb_ref[0]).astype(o_ref.dtype)

    return kernel


# ----------------------------- host-side glue ------------------------------ #
def up_forward(x_nchw, skip_nchw, t, params):
    B, c_x, H, W = x_nchw.shape
    _, c_skip, H2, W2 = skip_nchw.shape
    c_in = c_skip + c_x
    c_mid = params["w2a"].shape[-1]
    c_out = params["w2b"].shape[-1]
    f32 = jnp.float32

    # Channel-merged, lane-dense layouts (spatial-major, W*C minor).
    x2d = jnp.transpose(x_nchw, (0, 2, 3, 1)).reshape(B, H, W * c_x).astype(f32)
    skip_cat = jnp.transpose(skip_nchw, (0, 2, 3, 1)).astype(f32)
    skip_cat = jnp.pad(skip_cat, ((0, 0), (0, 0), (0, 0), (0, c_x)))
    skip_cat = skip_cat.reshape(B, H2, W2 * c_in)    # zeros in the x slots

    # Time embedding hoisted out of the kernel: SiLU -> Linear, pre-tiled.
    emb = jnp.dot(jax.nn.silu(t.astype(f32)), params["wl"]) + params["bl"]
    emb = jnp.tile(emb.astype(f32), (1, W2)).reshape(B, 1, W2 * c_out)

    # Constants: interpolation + block-banded conv weight matrices.
    a_h = jnp.asarray(_interp_matrix(H, H2))                       # (H2, H)
    m_up = jnp.asarray(_upsample_cat_matrix(_interp_matrix(W, W2), c_x, c_skip))
    sel = _shift_select(W2)
    m1a = _conv_block_mats(params["w1a"], sel)
    m1b = _conv_block_mats(params["w1b"], sel)
    m2a = _conv_block_mats(params["w2a"], sel)
    m2b = _conv_block_mats(params["w2b"], sel)

    def tile_affine(v):            # (1, C) -> (1, W2*C), lane index = w*C + c
        return jnp.tile(v.astype(f32), (1, W2))

    g1a, b1a = tile_affine(params["g1a"]), tile_affine(params["b1a"])
    g1b, b1b = tile_affine(params["g1b"]), tile_affine(params["b1b"])
    g2a, b2a = tile_affine(params["g2a"]), tile_affine(params["b2a"])
    g2b, b2b = tile_affine(params["g2b"]), tile_affine(params["b2b"])

    def const_spec(shape):
        n = len(shape)
        return pl.BlockSpec(shape, lambda b, _n=n: (0,) * _n)

    def batch_spec(shape):
        n = len(shape)
        return pl.BlockSpec(shape, lambda b, _n=n: (b,) + (0,) * (_n - 1))

    out = pl.pallas_call(
        _make_up_kernel(H2, W2, c_in, c_mid, c_out),
        out_shape=jax.ShapeDtypeStruct((B, H2, W2 * c_out), jnp.float32),
        grid=(B,),
        in_specs=[
            batch_spec((1, H, W * c_x)),
            batch_spec((1, H2, W2 * c_in)),
            batch_spec((1, 1, W2 * c_out)),
            const_spec(a_h.shape), const_spec(m_up.shape),
            const_spec(m1a.shape), const_spec(g1a.shape), const_spec(b1a.shape),
            const_spec(m1b.shape), const_spec(g1b.shape), const_spec(b1b.shape),
            const_spec(m2a.shape), const_spec(g2a.shape), const_spec(b2a.shape),
            const_spec(m2b.shape), const_spec(g2b.shape), const_spec(b2b.shape),
        ],
        out_specs=batch_spec((1, H2, W2 * c_out)),
        scratch_shapes=[pltpu.VMEM((H2 + 2, W2 * c_in), _MM_DTYPE)],
        compiler_params=pltpu.CompilerParams(
            dimension_semantics=("parallel",),     # v7x: batch across both TCs
            vmem_limit_bytes=32 * 1024 * 1024,
        ),
    )(x2d, skip_cat, emb, a_h, m_up,
      m1a, g1a, b1a, m1b, g1b, b1b,
      m2a, g2a, b2a, m2b, g2b, b2b)

    # (B, H2, W2*c_out) -> (B, H2, W2, c_out) -> NCHW
    return jnp.transpose(out.reshape(B, H2, W2, c_out), (0, 3, 1, 2))


def init_params(key, c_in, c_out, emb_dim):
    c_mid = c_in // 2
    ks = jax.random.split(key, 10)

    def conv_w(k, ci, co):      # stored HWIO
        return jax.random.normal(k, (3, 3, ci, co), jnp.float32) / np.sqrt(9.0 * ci)

    def affine(k, c):
        kg, kb = jax.random.split(k)
        return (1.0 + 0.1 * jax.random.normal(kg, (1, c), jnp.float32),
                0.1 * jax.random.normal(kb, (1, c), jnp.float32))

    g1a, b1a = affine(ks[1], c_in)
    g1b, b1b = affine(ks[3], c_in)
    g2a, b2a = affine(ks[5], c_mid)
    g2b, b2b = affine(ks[7], c_out)
    return {
        "w1a": conv_w(ks[0], c_in, c_in), "g1a": g1a, "b1a": b1a,
        "w1b": conv_w(ks[2], c_in, c_in), "g1b": g1b, "b1b": b1b,
        "w2a": conv_w(ks[4], c_in, c_mid), "g2a": g2a, "b2a": b2a,
        "w2b": conv_w(ks[6], c_mid, c_out), "g2b": g2b, "b2b": b2b,
        "wl": jax.random.normal(ks[8], (emb_dim, c_out), jnp.float32) / np.sqrt(emb_dim),
        "bl": 0.1 * jax.random.normal(ks[9], (1, c_out), jnp.float32),
    }


def up_reference(x_nchw, skip_nchw, t, params):
    # Pure-JAX reference matching the PyTorch forward (NCHW).
    B, c_x, H, W = x_nchw.shape
    _, c_skip, H2, W2 = skip_nchw.shape
    a_h = jnp.asarray(_interp_matrix(H, H2))
    a_w = jnp.asarray(_interp_matrix(W, W2))
    up = jnp.einsum("ph,qw,bchw->bcpq", a_h, a_w, x_nchw,
                    precision=jax.lax.Precision.HIGHEST)
    xcat = jnp.concatenate([skip_nchw, up], axis=1)

    def conv(v, w):
        return jax.lax.conv_general_dilated(
            v, w, window_strides=(1, 1), padding=((1, 1), (1, 1)),
            dimension_numbers=("NCHW", "HWIO", "NCHW"),
            precision=jax.lax.Precision.HIGHEST)

    def gn(v, g, b):
        mu = v.mean(axis=(1, 2, 3), keepdims=True)
        var = ((v - mu) ** 2).mean(axis=(1, 2, 3), keepdims=True)
        return ((v - mu) / jnp.sqrt(var + 1e-5)) * g.reshape(1, -1, 1, 1) \
            + b.reshape(1, -1, 1, 1)

    gelu = lambda v: 0.5 * v * (1.0 + jax.scipy.special.erf(v * _INV_SQRT2))
    silu = lambda v: v / (1.0 + jnp.exp(-v))

    h = gelu(gn(conv(xcat, params["w1a"]), params["g1a"], params["b1a"]))
    h = gn(conv(h, params["w1b"]), params["g1b"], params["b1b"])
    y = gelu(xcat + h)
    h = gelu(gn(conv(y, params["w2a"]), params["g2a"], params["b2a"]))
    h = gn(conv(h, params["w2b"]), params["g2b"], params["b2b"])
    emb = jnp.dot(silu(t), params["wl"],
                  precision=jax.lax.Precision.HIGHEST) + params["bl"]
    return h + emb[:, :, None, None]


if __name__ == "__main__":
    key = jax.random.PRNGKey(0)
    B, c_x, H, W = 2, 4, 16, 16          # low-res input to Up
    c_skip, c_out, emb_dim = 4, 8, 32    # skip connection / output channels
    c_in = c_skip + c_x                  # Up(in_channels=8, out_channels=8)
    H2, W2 = 2 * H, 2 * W

    k_x, k_s, k_t, k_p = jax.random.split(key, 4)
    x = jax.random.normal(k_x, (B, c_x, H, W), jnp.float32)
    skip = jax.random.normal(k_s, (B, c_skip, H2, W2), jnp.float32)
    t = jax.random.normal(k_t, (B, emb_dim), jnp.float32)
    params = init_params(k_p, c_in, c_out, emb_dim)

    out = jax.block_until_ready(up_forward(x, skip, t, params))
    assert out.shape == (B, c_out, H2, W2), out.shape

    ref = jax.block_until_ready(up_reference(x, skip, t, params))
    err = float(jnp.max(jnp.abs(out - ref)))
    if err > 1e-2:
        raise AssertionError(f"kernel/reference mismatch: max|diff|={err}")
    print("KERNEL_OK")
</pallas_src>

<mosaic_0001>
module attributes {stable_mosaic.version = 11 : i64} {
  func.func @kernel(%arg0: i32, %arg1: memref<1x16x64xf32, #tpu.memory_space<vmem>>, %arg2: memref<1x32x256xf32, #tpu.memory_space<vmem>>, %arg3: memref<1x1x256xf32, #tpu.memory_space<vmem>>, %arg4: memref<32x16xf32, #tpu.memory_space<vmem>>, %arg5: memref<64x256xf32, #tpu.memory_space<vmem>>, %arg6: memref<3x256x256xf32, #tpu.memory_space<vmem>>, %arg7: memref<1x256xf32, #tpu.memory_space<vmem>>, %arg8: memref<1x256xf32, #tpu.memory_space<vmem>>, %arg9: memref<3x256x256xf32, #tpu.memory_space<vmem>>, %arg10: memref<1x256xf32, #tpu.memory_space<vmem>>, %arg11: memref<1x256xf32, #tpu.memory_space<vmem>>, %arg12: memref<3x256x128xf32, #tpu.memory_space<vmem>>, %arg13: memref<1x128xf32, #tpu.memory_space<vmem>>, %arg14: memref<1x128xf32, #tpu.memory_space<vmem>>, %arg15: memref<3x128x256xf32, #tpu.memory_space<vmem>>, %arg16: memref<1x256xf32, #tpu.memory_space<vmem>>, %arg17: memref<1x256xf32, #tpu.memory_space<vmem>>, %arg18: memref<1x32x256xf32, #tpu.memory_space<vmem>>, %arg19: memref<34x256xf32, #tpu.memory_space<vmem>>) attributes {dimension_semantics = [#tpu.dimension_semantics<parallel>], iteration_bounds = array<i64: 2>, scalar_prefetch = 0 : i64, scratch_operands = 1 : i64, tpu.core_type = #tpu.core_type<tc>, window_params = [{transform_indices = @transform_0, window_bounds = array<i64: 1, 16, 64>}, {transform_indices = @transform_1, window_bounds = array<i64: 1, 32, 256>}, {transform_indices = @transform_2, window_bounds = array<i64: 1, 1, 256>}, {pipeline_mode = #tpu.pipeline_mode<synchronous>, transform_indices = @transform_3, window_bounds = array<i64: 32, 16>}, {pipeline_mode = #tpu.pipeline_mode<synchronous>, transform_indices = @transform_4, window_bounds = array<i64: 64, 256>}, {pipeline_mode = #tpu.pipeline_mode<synchronous>, transform_indices = @transform_5, window_bounds = array<i64: 3, 256, 256>}, {pipeline_mode = #tpu.pipeline_mode<synchronous>, transform_indices = @transform_6, window_bounds = array<i64: 1, 256>}, {pipeline_mode = #tpu.pipeline_mode<synchronous>, transform_indices = @transform_7, window_bounds = array<i64: 1, 256>}, {pipeline_mode = #tpu.pipeline_mode<synchronous>, transform_indices = @transform_8, window_bounds = array<i64: 3, 256, 256>}, {pipeline_mode = #tpu.pipeline_mode<synchronous>, transform_indices = @transform_9, window_bounds = array<i64: 1, 256>}, {pipeline_mode = #tpu.pipeline_mode<synchronous>, transform_indices = @transform_10, window_bounds = array<i64: 1, 256>}, {pipeline_mode = #tpu.pipeline_mode<synchronous>, transform_indices = @transform_11, window_bounds = array<i64: 3, 256, 128>}, {pipeline_mode = #tpu.pipeline_mode<synchronous>, transform_indices = @transform_12, window_bounds = array<i64: 1, 128>}, {pipeline_mode = #tpu.pipeline_mode<synchronous>, transform_indices = @transform_13, window_bounds = array<i64: 1, 128>}, {pipeline_mode = #tpu.pipeline_mode<synchronous>, transform_indices = @transform_14, window_bounds = array<i64: 3, 128, 256>}, {pipeline_mode = #tpu.pipeline_mode<synchronous>, transform_indices = @transform_15, window_bounds = array<i64: 1, 256>}, {pipeline_mode = #tpu.pipeline_mode<synchronous>, transform_indices = @transform_16, window_bounds = array<i64: 1, 256>}, {transform_indices = @transform_17, window_bounds = array<i64: 1, 32, 256>}]} {
    %cst = arith.constant 0.000000e+00 : f32
    %0 = vector.broadcast %cst : f32 to vector<1x256xf32>
    %c0 = arith.constant 0 : index
    %c0_0 = arith.constant 0 : index
    %1 = vector.load %arg19[%c0, %c0_0] : memref<34x256xf32, #tpu.memory_space<vmem>>, vector<1x256xf32>
    tpu.vector_store %arg19[%c0, %c0_0], %0 {strides = array<i32>} : memref<34x256xf32, #tpu.memory_space<vmem>>, vector<1x256xf32>,
    %c33 = arith.constant 33 : index
    %c0_1 = arith.constant 0 : index
    %2 = vector.load %arg19[%c33, %c0_1] : memref<34x256xf32, #tpu.memory_space<vmem>>, vector<1x256xf32>
    tpu.vector_store %arg19[%c33, %c0_1], %0 {strides = array<i32>} : memref<34x256xf32, #tpu.memory_space<vmem>>, vector<1x256xf32>,
    %c0_2 = arith.constant 0 : index
    %c0_3 = arith.constant 0 : index
    %3 = vector.load %arg4[%c0_2, %c0_3] : memref<32x16xf32, #tpu.memory_space<vmem>>, vector<32x16xf32>
    %c0_4 = arith.constant 0 : index
    %c0_5 = arith.constant 0 : index
    %c0_6 = arith.constant 0 : index
    %4 = vector.load %arg1[%c0_4, %c0_5, %c0_6] : memref<1x16x64xf32, #tpu.memory_space<vmem>>, vector<1x16x64xf32>
    %5 = vector.shape_cast %4 : vector<1x16x64xf32> to vector<16x64xf32>
    %cst_7 = arith.constant dense<0.000000e+00> : vector<32x64xf32>
    %6 = tpu.matmul %3, %5, %cst_7 {dimension_numbers = #tpu.dot_dimension_numbers<[1], [0], [0], [1], [0, 0, 1, 1], [], []>} : vector<32x16xf32>, vector<16x64xf32>, vector<32x64xf32> -> vector<32x64xf32>
    %c0_8 = arith.constant 0 : index
    %c0_9 = arith.constant 0 : index
    %7 = vector.load %arg5[%c0_8, %c0_9] : memref<64x256xf32, #tpu.memory_space<vmem>>, vector<64x256xf32>
    %cst_10 = arith.constant dense<0.000000e+00> : vector<32x256xf32>
    %8 = tpu.matmul %6, %7, %cst_10 {dimension_numbers = #tpu.dot_dimension_numbers<[1], [0], [0], [1], [0, 0, 1, 1], [], []>} : vector<32x64xf32>, vector<64x256xf32>, vector<32x256xf32> -> vector<32x256xf32>
    %c0_11 = arith.constant 0 : index
    %c0_12 = arith.constant 0 : index
    %c0_13 = arith.constant 0 : index
    %9 = vector.load %arg2[%c0_11, %c0_12, %c0_13] : memref<1x32x256xf32, #tpu.memory_space<vmem>>, vector<1x32x256xf32>
    %10 = vector.shape_cast %9 : vector<1x32x256xf32> to vector<32x256xf32>
    %11 = arith.addf %10, %8 : vector<32x256xf32>
    %c1 = arith.constant 1 : index
    %c0_14 = arith.constant 0 : index
    %12 = vector.load %arg19[%c1, %c0_14] : memref<34x256xf32, #tpu.memory_space<vmem>>, vector<32x256xf32>
    tpu.vector_store %arg19[%c1, %c0_14], %11 {strides = array<i32>} : memref<34x256xf32, #tpu.memory_space<vmem>>, vector<32x256xf32>,
    %c0_15 = arith.constant 0 : index
    %c0_16 = arith.constant 0 : index
    %13 = vector.load %arg19[%c0_15, %c0_16] : memref<34x256xf32, #tpu.memory_space<vmem>>, vector<32x256xf32>
    %c0_17 = arith.constant 0 : index
    %c0_18 = arith.constant 0 : index
    %c0_19 = arith.constant 0 : index
    %14 = vector.load %arg6[%c0_17, %c0_18, %c0_19] : memref<3x256x256xf32, #tpu.memory_space<vmem>>, vector<1x256x256xf32>
    %15 = vector.shape_cast %14 : vector<1x256x256xf32> to vector<256x256xf32>
    %cst_20 = arith.constant dense<0.000000e+00> : vector<32x256xf32>
    %16 = tpu.matmul %13, %15, %cst_20 {dimension_numbers = #tpu.dot_dimension_numbers<[1], [0], [0], [1], [0, 0, 1, 1], [], []>} : vector<32x256xf32>, vector<256x256xf32>, vector<32x256xf32> -> vector<32x256xf32>
    %c1_21 = arith.constant 1 : index
    %c0_22 = arith.constant 0 : index
    %17 = vector.load %arg19[%c1_21, %c0_22] : memref<34x256xf32, #tpu.memory_space<vmem>>, vector<32x256xf32>
    %c1_23 = arith.constant 1 : index
    %c0_24 = arith.constant 0 : index
    %c0_25 = arith.constant 0 : index
    %18 = vector.load %arg6[%c1_23, %c0_24, %c0_25] : memref<3x256x256xf32, #tpu.memory_space<vmem>>, vector<1x256x256xf32>
    %19 = vector.shape_cast %18 : vector<1x256x256xf32> to vector<256x256xf32>
    %cst_26 = arith.constant dense<0.000000e+00> : vector<32x256xf32>
    %20 = tpu.matmul %17, %19, %cst_26 {dimension_numbers = #tpu.dot_dimension_numbers<[1], [0], [0], [1], [0, 0, 1, 1], [], []>} : vector<32x256xf32>, vector<256x256xf32>, vector<32x256xf32> -> vector<32x256xf32>
    %21 = arith.addf %16, %20 : vector<32x256xf32>
    %c2 = arith.constant 2 : index
    %c0_27 = arith.constant 0 : index
    %22 = vector.load %arg19[%c2, %c0_27] : memref<34x256xf32, #tpu.memory_space<vmem>>, vector<32x256xf32>
    %c2_28 = arith.constant 2 : index
    %c0_29 = arith.constant 0 : index
    %c0_30 = arith.constant 0 : index
    %23 = vector.load %arg6[%c2_28, %c0_29, %c0_30] : memref<3x256x256xf32, #tpu.memory_space<vmem>>, vector<1x256x256xf32>
    %24 = vector.shape_cast %23 : vector<1x256x256xf32> to vector<256x256xf32>
    %cst_31 = arith.constant dense<0.000000e+00> : vector<32x256xf32>
    %25 = tpu.matmul %22, %24, %cst_31 {dimension_numbers = #tpu.dot_dimension_numbers<[1], [0], [0], [1], [0, 0, 1, 1], [], []>} : vector<32x256xf32>, vector<256x256xf32>, vector<32x256xf32> -> vector<32x256xf32>
    %26 = arith.addf %21, %25 : vector<32x256xf32>
    %cst_32 = arith.constant dense<0.000000e+00> : vector<256xf32>
    %27 = vector.multi_reduction <add>, %26, %cst_32 [0] : vector<32x256xf32> to vector<256xf32>
    %28 = vector.shape_cast %27 : vector<256xf32> to vector<1x256xf32>
    %29 = arith.mulf %26, %26 : vector<32x256xf32>
    %cst_33 = arith.constant dense<0.000000e+00> : vector<256xf32>
    %30 = vector.multi_reduction <add>, %29, %cst_33 [0] : vector<32x256xf32> to vector<256xf32>
    %31 = vector.shape_cast %30 : vector<256xf32> to vector<1x256xf32>
    %cst_34 = arith.constant dense<0.000000e+00> : vector<1xf32>
    %32 = vector.multi_reduction <add>, %28, %cst_34 [1] : vector<1x256xf32> to vector<1xf32>
    %33 = vector.shape_cast %32 : vector<1xf32> to vector<1x1xf32>
    %cst_35 = arith.constant 8.192000e+03 : f32
    %34 = vector.broadcast %cst_35 : f32 to vector<1x1xf32>
    %35 = arith.divf %33, %34 : vector<1x1xf32>
    %cst_36 = arith.constant dense<0.000000e+00> : vector<1xf32>
    %36 = vector.multi_reduction <add>, %31, %cst_36 [1] : vector<1x256xf32> to vector<1xf32>
    %37 = vector.shape_cast %36 : vector<1xf32> to vector<1x1xf32>
    %cst_37 = arith.constant 8.192000e+03 : f32
    %38 = vector.broadcast %cst_37 : f32 to vector<1x1xf32>
    %39 = arith.divf %37, %38 : vector<1x1xf32>
    %40 = arith.mulf %35, %35 : vector<1x1xf32>
    %41 = arith.subf %39, %40 : vector<1x1xf32>
    %cst_38 = arith.constant 9.99999974E-6 : f32
    %42 = vector.broadcast %cst_38 : f32 to vector<1x1xf32>
    %43 = arith.addf %41, %42 : vector<1x1xf32>
    %44 = math.rsqrt %43 : vector<1x1xf32>
    %c0_39 = arith.constant 0 : index
    %c0_40 = arith.constant 0 : index
    %45 = vector.load %arg7[%c0_39, %c0_40] : memref<1x256xf32, #tpu.memory_space<vmem>>, vector<1x256xf32>
    %46 = vector.broadcast %44 : vector<1x1xf32> to vector<1x256xf32>
    %47 = arith.mulf %45, %46 : vector<1x256xf32>
    %c0_41 = arith.constant 0 : index
    %c0_42 = arith.constant 0 : index
    %48 = vector.load %arg8[%c0_41, %c0_42] : memref<1x256xf32, #tpu.memory_space<vmem>>, vector<1x256xf32>
    %49 = vector.broadcast %35 : vector<1x1xf32> to vector<1x256xf32>
    %50 = arith.mulf %49, %47 : vector<1x256xf32>
    %51 = arith.subf %48, %50 : vector<1x256xf32>
    %52 = vector.broadcast %47 : vector<1x256xf32> to vector<32x256xf32>
    %53 = arith.mulf %26, %52 : vector<32x256xf32>
    %54 = vector.broadcast %51 : vector<1x256xf32> to vector<32x256xf32>
    %55 = arith.addf %53, %54 : vector<32x256xf32>
    %cst_43 = arith.constant 5.000000e-01 : f32
    %56 = vector.broadcast %cst_43 : f32 to vector<32x256xf32>
    %57 = arith.mulf %56, %55 : vector<32x256xf32>
    %cst_44 = arith.constant 0.707106769 : f32
    %58 = vector.broadcast %cst_44 : f32 to vector<32x256xf32>
    %59 = arith.mulf %55, %58 : vector<32x256xf32>
    %cst_45 = arith.constant 0.000000e+00 : f32
    %60 = vector.broadcast %cst_45 : f32 to vector<32x256xf32>
    %61 = arith.cmpf oge, %59, %60 : vector<32x256xf32>
    %cst_46 = arith.constant 1.000000e+00 : f32
    %cst_47 = arith.constant -1.000000e+00 : f32
    %62 = vector.broadcast %cst_46 : f32 to vector<32x256xf32>
    %63 = vector.broadcast %cst_47 : f32 to vector<32x256xf32>
    %64 = arith.select %61, %62, %63 : vector<32x256xi1>, vector<32x256xf32>
    %65 = math.absf %59 : vector<32x256xf32>
    %cst_48 = arith.constant 0.327591091 : f32
    %66 = vector.broadcast %cst_48 : f32 to vector<32x256xf32>
    %67 = arith.mulf %66, %65 : vector<32x256xf32>
    %cst_49 = arith.constant 1.000000e+00 : f32
    %68 = vector.broadcast %cst_49 : f32 to vector<32x256xf32>
    %69 = arith.addf %68, %67 : vector<32x256xf32>
    %cst_50 = arith.constant 1.000000e+00 : f32
    %70 = vector.broadcast %cst_50 : f32 to vector<32x256xf32>
    %71 = arith.divf %70, %69 : vector<32x256xf32>
    %cst_51 = arith.constant 1.06140542 : f32
    %72 = vector.broadcast %cst_51 : f32 to vector<32x256xf32>
    %73 = arith.mulf %72, %71 : vector<32x256xf32>
    %cst_52 = arith.constant -1.45315206 : f32
    %74 = vector.broadcast %cst_52 : f32 to vector<32x256xf32>
    %75 = arith.addf %73, %74 : vector<32x256xf32>
    %76 = arith.mulf %75, %71 : vector<32x256xf32>
    %cst_53 = arith.constant 1.42141378 : f32
    %77 = vector.broadcast %cst_53 : f32 to vector<32x256xf32>
    %78 = arith.addf %76, %77 : vector<32x256xf32>
    %79 = arith.mulf %78, %71 : vector<32x256xf32>
    %cst_54 = arith.constant -0.284496725 : f32
    %80 = vector.broadcast %cst_54 : f32 to vector<32x256xf32>
    %81 = arith.addf %79, %80 : vector<32x256xf32>
    %82 = arith.mulf %81, %71 : vector<32x256xf32>
    %cst_55 = arith.constant 0.254829586 : f32
    %83 = vector.broadcast %cst_55 : f32 to vector<32x256xf32>
    %84 = arith.addf %82, %83 : vector<32x256xf32>
    %85 = arith.mulf %84, %71 : vector<32x256xf32>
    %cst_56 = arith.constant 0.000000e+00 : f32
    %86 = vector.broadcast %cst_56 : f32 to vector<32x256xf32>
    %87 = arith.subf %86, %65 : vector<32x256xf32>
    %88 = arith.mulf %87, %65 : vector<32x256xf32>
    %89 = math.exp %88 : vector<32x256xf32>
    %90 = arith.mulf %85, %89 : vector<32x256xf32>
    %cst_57 = arith.constant 1.000000e+00 : f32
    %91 = vector.broadcast %cst_57 : f32 to vector<32x256xf32>
    %92 = arith.subf %91, %90 : vector<32x256xf32>
    %93 = arith.mulf %64, %92 : vector<32x256xf32>
    %cst_58 = arith.constant 1.000000e+00 : f32
    %94 = vector.broadcast %cst_58 : f32 to vector<32x256xf32>
    %95 = arith.addf %94, %93 : vector<32x256xf32>
    %96 = arith.mulf %57, %95 : vector<32x256xf32>
    %c1_59 = arith.constant 1 : index
    %c0_60 = arith.constant 0 : index
    %97 = vector.load %arg19[%c1_59, %c0_60] : memref<34x256xf32, #tpu.memory_space<vmem>>, vector<32x256xf32>
    tpu.vector_store %arg19[%c1_59, %c0_60], %96 {strides = array<i32>} : memref<34x256xf32, #tpu.memory_space<vmem>>, vector<32x256xf32>,
    %c0_61 = arith.constant 0 : index
    %c0_62 = arith.constant 0 : index
    %98 = vector.load %arg19[%c0_61, %c0_62] : memref<34x256xf32, #tpu.memory_space<vmem>>, vector<32x256xf32>
    %c0_63 = arith.constant 0 : index
    %c0_64 = arith.constant 0 : index
    %c0_65 = arith.constant 0 : index
    %99 = vector.load %arg9[%c0_63, %c0_64, %c0_65] : memref<3x256x256xf32, #tpu.memory_space<vmem>>, vector<1x256x256xf32>
    %100 = vector.shape_cast %99 : vector<1x256x256xf32> to vector<256x256xf32>
    %cst_66 = arith.constant dense<0.000000e+00> : vector<32x256xf32>
    %101 = tpu.matmul %98, %100, %cst_66 {dimension_numbers = #tpu.dot_dimension_numbers<[1], [0], [0], [1], [0, 0, 1, 1], [], []>} : vector<32x256xf32>, vector<256x256xf32>, vector<32x256xf32> -> vector<32x256xf32>
    %c1_67 = arith.constant 1 : index
    %c0_68 = arith.constant 0 : index
    %102 = vector.load %arg19[%c1_67, %c0_68] : memref<34x256xf32, #tpu.memory_space<vmem>>, vector<32x256xf32>
    %c1_69 = arith.constant 1 : index
    %c0_70 = arith.constant 0 : index
    %c0_71 = arith.constant 0 : index
    %103 = vector.load %arg9[%c1_69, %c0_70, %c0_71] : memref<3x256x256xf32, #tpu.memory_space<vmem>>, vector<1x256x256xf32>
    %104 = vector.shape_cast %103 : vector<1x256x256xf32> to vector<256x256xf32>
    %cst_72 = arith.constant dense<0.000000e+00> : vector<32x256xf32>
    %105 = tpu.matmul %102, %104, %cst_72 {dimension_numbers = #tpu.dot_dimension_numbers<[1], [0], [0], [1], [0, 0, 1, 1], [], []>} : vector<32x256xf32>, vector<256x256xf32>, vector<32x256xf32> -> vector<32x256xf32>
    %106 = arith.addf %101, %105 : vector<32x256xf32>
    %c2_73 = arith.constant 2 : index
    %c0_74 = arith.constant 0 : index
    %107 = vector.load %arg19[%c2_73, %c0_74] : memref<34x256xf32, #tpu.memory_space<vmem>>, vector<32x256xf32>
    %c2_75 = arith.constant 2 : index
    %c0_76 = arith.constant 0 : index
    %c0_77 = arith.constant 0 : index
    %108 = vector.load %arg9[%c2_75, %c0_76, %c0_77] : memref<3x256x256xf32, #tpu.memory_space<vmem>>, vector<1x256x256xf32>
    %109 = vector.shape_cast %108 : vector<1x256x256xf32> to vector<256x256xf32>
    %cst_78 = arith.constant dense<0.000000e+00> : vector<32x256xf32>
    %110 = tpu.matmul %107, %109, %cst_78 {dimension_numbers = #tpu.dot_dimension_numbers<[1], [0], [0], [1], [0, 0, 1, 1], [], []>} : vector<32x256xf32>, vector<256x256xf32>, vector<32x256xf32> -> vector<32x256xf32>
    %111 = arith.addf %106, %110 : vector<32x256xf32>
    %cst_79 = arith.constant dense<0.000000e+00> : vector<256xf32>
    %112 = vector.multi_reduction <add>, %111, %cst_79 [0] : vector<32x256xf32> to vector<256xf32>
    %113 = vector.shape_cast %112 : vector<256xf32> to vector<1x256xf32>
    %114 = arith.mulf %111, %111 : vector<32x256xf32>
    %cst_80 = arith.constant dense<0.000000e+00> : vector<256xf32>
    %115 = vector.multi_reduction <add>, %114, %cst_80 [0] : vector<32x256xf32> to vector<256xf32>
    %116 = vector.shape_cast %115 : vector<256xf32> to vector<1x256xf32>
    %cst_81 = arith.constant dense<0.000000e+00> : vector<1xf32>
    %117 = vector.multi_reduction <add>, %113, %cst_81 [1] : vector<1x256xf32> to vector<1xf32>
    %118 = vector.shape_cast %117 : vector<1xf32> to vector<1x1xf32>
    %cst_82 = arith.constant 8.192000e+03 : f32
    %119 = vector.broadcast %cst_82 : f32 to vector<1x1xf32>
    %120 = arith.divf %118, %119 : vector<1x1xf32>
    %cst_83 = arith.constant dense<0.000000e+00> : vector<1xf32>
    %121 = vector.multi_reduction <add>, %116, %cst_83 [1] : vector<1x256xf32> to vector<1xf32>
    %122 = vector.shape_cast %121 : vector<1xf32> to vector<1x1xf32>
    %cst_84 = arith.constant 8.192000e+03 : f32
    %123 = vector.broadcast %cst_84 : f32 to vector<1x1xf32>
    %124 = arith.divf %122, %123 : vector<1x1xf32>
    %125 = arith.mulf %120, %120 : vector<1x1xf32>
    %126 = arith.subf %124, %125 : vector<1x1xf32>
    %cst_85 = arith.constant 9.99999974E-6 : f32
    %127 = vector.broadcast %cst_85 : f32 to vector<1x1xf32>
    %128 = arith.addf %126, %127 : vector<1x1xf32>
    %129 = math.rsqrt %128 : vector<1x1xf32>
    %c0_86 = arith.constant 0 : index
    %c0_87 = arith.constant 0 : index
    %130 = vector.load %arg10[%c0_86, %c0_87] : memref<1x256xf32, #tpu.memory_space<vmem>>, vector<1x256xf32>
    %131 = vector.broadcast %129 : vector<1x1xf32> to vector<1x256xf32>
    %132 = arith.mulf %130, %131 : vector<1x256xf32>
    %c0_88 = arith.constant 0 : index
    %c0_89 = arith.constant 0 : index
    %133 = vector.load %arg11[%c0_88, %c0_89] : memref<1x256xf32, #tpu.memory_space<vmem>>, vector<1x256xf32>
    %134 = vector.broadcast %120 : vector<1x1xf32> to vector<1x256xf32>
    %135 = arith.mulf %134, %132 : vector<1x256xf32>
    %136 = arith.subf %133, %135 : vector<1x256xf32>
    %137 = vector.broadcast %132 : vector<1x256xf32> to vector<32x256xf32>
    %138 = arith.mulf %111, %137 : vector<32x256xf32>
    %139 = vector.broadcast %136 : vector<1x256xf32> to vector<32x256xf32>
    %140 = arith.addf %138, %139 : vector<32x256xf32>
    %141 = arith.addf %11, %140 : vector<32x256xf32>
    %cst_90 = arith.constant 5.000000e-01 : f32
    %142 = vector.broadcast %cst_90 : f32 to vector<32x256xf32>
    %143 = arith.mulf %142, %141 : vector<32x256xf32>
    %cst_91 = arith.constant 0.707106769 : f32
    %144 = vector.broadcast %cst_91 : f32 to vector<32x256xf32>
    %145 = arith.mulf %141, %144 : vector<32x256xf32>
    %cst_92 = arith.constant 0.000000e+00 : f32
    %146 = vector.broadcast %cst_92 : f32 to vector<32x256xf32>
    %147 = arith.cmpf oge, %145, %146 : vector<32x256xf32>
    %cst_93 = arith.constant 1.000000e+00 : f32
    %cst_94 = arith.constant -1.000000e+00 : f32
    %148 = vector.broadcast %cst_93 : f32 to vector<32x256xf32>
    %149 = vector.broadcast %cst_94 : f32 to vector<32x256xf32>
    %150 = arith.select %147, %148, %149 : vector<32x256xi1>, vector<32x256xf32>
    %151 = math.absf %145 : vector<32x256xf32>
    %cst_95 = arith.constant 0.327591091 : f32
    %152 = vector.broadcast %cst_95 : f32 to vector<32x256xf32>
    %153 = arith.mulf %152, %151 : vector<32x256xf32>
    %cst_96 = arith.constant 1.000000e+00 : f32
    %154 = vector.broadcast %cst_96 : f32 to vector<32x256xf32>
    %155 = arith.addf %154, %153 : vector<32x256xf32>
    %cst_97 = arith.constant 1.000000e+00 : f32
    %156 = vector.broadcast %cst_97 : f32 to vector<32x256xf32>
    %157 = arith.divf %156, %155 : vector<32x256xf32>
    %cst_98 = arith.constant 1.06140542 : f32
    %158 = vector.broadcast %cst_98 : f32 to vector<32x256xf32>
    %159 = arith.mulf %158, %157 : vector<32x256xf32>
    %cst_99 = arith.constant -1.45315206 : f32
    %160 = vector.broadcast %cst_99 : f32 to vector<32x256xf32>
    %161 = arith.addf %159, %160 : vector<32x256xf32>
    %162 = arith.mulf %161, %157 : vector<32x256xf32>
    %cst_100 = arith.constant 1.42141378 : f32
    %163 = vector.broadcast %cst_100 : f32 to vector<32x256xf32>
    %164 = arith.addf %162, %163 : vector<32x256xf32>
    %165 = arith.mulf %164, %157 : vector<32x256xf32>
    %cst_101 = arith.constant -0.284496725 : f32
    %166 = vector.broadcast %cst_101 : f32 to vector<32x256xf32>
    %167 = arith.addf %165, %166 : vector<32x256xf32>
    %168 = arith.mulf %167, %157 : vector<32x256xf32>
    %cst_102 = arith.constant 0.254829586 : f32
    %169 = vector.broadcast %cst_102 : f32 to vector<32x256xf32>
    %170 = arith.addf %168, %169 : vector<32x256xf32>
    %171 = arith.mulf %170, %157 : vector<32x256xf32>
    %cst_103 = arith.constant 0.000000e+00 : f32
    %172 = vector.broadcast %cst_103 : f32 to vector<32x256xf32>
    %173 = arith.subf %172, %151 : vector<32x256xf32>
    %174 = arith.mulf %173, %151 : vector<32x256xf32>
    %175 = math.exp %174 : vector<32x256xf32>
    %176 = arith.mulf %171, %175 : vector<32x256xf32>
    %cst_104 = arith.constant 1.000000e+00 : f32
    %177 = vector.broadcast %cst_104 : f32 to vector<32x256xf32>
    %178 = arith.subf %177, %176 : vector<32x256xf32>
    %179 = arith.mulf %150, %178 : vector<32x256xf32>
    %cst_105 = arith.constant 1.000000e+00 : f32
    %180 = vector.broadcast %cst_105 : f32 to vector<32x256xf32>
    %181 = arith.addf %180, %179 : vector<32x256xf32>
    %182 = arith.mulf %143, %181 : vector<32x256xf32>
    %c1_106 = arith.constant 1 : index
    %c0_107 = arith.constant 0 : index
    %183 = vector.load %arg19[%c1_106, %c0_107] : memref<34x256xf32, #tpu.memory_space<vmem>>, vector<32x256xf32>
    tpu.vector_store %arg19[%c1_106, %c0_107], %182 {strides = array<i32>} : memref<34x256xf32, #tpu.memory_space<vmem>>, vector<32x256xf32>,
    %c0_108 = arith.constant 0 : index
    %c0_109 = arith.constant 0 : index
    %184 = vector.load %arg19[%c0_108, %c0_109] : memref<34x256xf32, #tpu.memory_space<vmem>>, vector<32x256xf32>
    %c0_110 = arith.constant 0 : index
    %c0_111 = arith.constant 0 : index
    %c0_112 = arith.constant 0 : index
    %185 = vector.load %arg12[%c0_110, %c0_111, %c0_112] : memref<3x256x128xf32, #tpu.memory_space<vmem>>, vector<1x256x128xf32>
    %186 = vector.shape_cast %185 : vector<1x256x128xf32> to vector<256x128xf32>
    %cst_113 = arith.constant dense<0.000000e+00> : vector<32x128xf32>
    %187 = tpu.matmul %184, %186, %cst_113 {dimension_numbers = #tpu.dot_dimension_numbers<[1], [0], [0], [1], [0, 0, 1, 1], [], []>} : vector<32x256xf32>, vector<256x128xf32>, vector<32x128xf32> -> vector<32x128xf32>
    %c1_114 = arith.constant 1 : index
    %c0_115 = arith.constant 0 : index
    %188 = vector.load %arg19[%c1_114, %c0_115] : memref<34x256xf32, #tpu.memory_space<vmem>>, vector<32x256xf32>
    %c1_116 = arith.constant 1 : index
    %c0_117 = arith.constant 0 : index
    %c0_118 = arith.constant 0 : index
    %189 = vector.load %arg12[%c1_116, %c0_117, %c0_118] : memref<3x256x128xf32, #tpu.memory_space<vmem>>, vector<1x256x128xf32>
    %190 = vector.shape_cast %189 : vector<1x256x128xf32> to vector<256x128xf32>
    %cst_119 = arith.constant dense<0.000000e+00> : vector<32x128xf32>
    %191 = tpu.matmul %188, %190, %cst_119 {dimension_numbers = #tpu.dot_dimension_numbers<[1], [0], [0], [1], [0, 0, 1, 1], [], []>} : vector<32x256xf32>, vector<256x128xf32>, vector<32x128xf32> -> vector<32x128xf32>
    %192 = arith.addf %187, %191 : vector<32x128xf32>
    %c2_120 = arith.constant 2 : index
    %c0_121 = arith.constant 0 : index
    %193 = vector.load %arg19[%c2_120, %c0_121] : memref<34x256xf32, #tpu.memory_space<vmem>>, vector<32x256xf32>
    %c2_122 = arith.constant 2 : index
    %c0_123 = arith.constant 0 : index
    %c0_124 = arith.constant 0 : index
    %194 = vector.load %arg12[%c2_122, %c0_123, %c0_124] : memref<3x256x128xf32, #tpu.memory_space<vmem>>, vector<1x256x128xf32>
    %195 = vector.shape_cast %194 : vector<1x256x128xf32> to vector<256x128xf32>
    %cst_125 = arith.constant dense<0.000000e+00> : vector<32x128xf32>
    %196 = tpu.matmul %193, %195, %cst_125 {dimension_numbers = #tpu.dot_dimension_numbers<[1], [0], [0], [1], [0, 0, 1, 1], [], []>} : vector<32x256xf32>, vector<256x128xf32>, vector<32x128xf32> -> vector<32x128xf32>
    %197 = arith.addf %192, %196 : vector<32x128xf32>
    %cst_126 = arith.constant dense<0.000000e+00> : vector<128xf32>
    %198 = vector.multi_reduction <add>, %197, %cst_126 [0] : vector<32x128xf32> to vector<128xf32>
    %199 = vector.shape_cast %198 : vector<128xf32> to vector<1x128xf32>
    %200 = arith.mulf %197, %197 : vector<32x128xf32>
    %cst_127 = arith.constant dense<0.000000e+00> : vector<128xf32>
    %201 = vector.multi_reduction <add>, %200, %cst_127 [0] : vector<32x128xf32> to vector<128xf32>
    %202 = vector.shape_cast %201 : vector<128xf32> to vector<1x128xf32>
    %cst_128 = arith.constant dense<0.000000e+00> : vector<1xf32>
    %203 = vector.multi_reduction <add>, %199, %cst_128 [1] : vector<1x128xf32> to vector<1xf32>
    %204 = vector.shape_cast %203 : vector<1xf32> to vector<1x1xf32>
    %cst_129 = arith.constant 4.096000e+03 : f32
    %205 = vector.broadcast %cst_129 : f32 to vector<1x1xf32>
    %206 = arith.divf %204, %205 : vector<1x1xf32>
    %cst_130 = arith.constant dense<0.000000e+00> : vector<1xf32>
    %207 = vector.multi_reduction <add>, %202, %cst_130 [1] : vector<1x128xf32> to vector<1xf32>
    %208 = vector.shape_cast %207 : vector<1xf32> to vector<1x1xf32>
    %cst_131 = arith.constant 4.096000e+03 : f32
    %209 = vector.broadcast %cst_131 : f32 to vector<1x1xf32>
    %210 = arith.divf %208, %209 : vector<1x1xf32>
    %211 = arith.mulf %206, %206 : vector<1x1xf32>
    %212 = arith.subf %210, %211 : vector<1x1xf32>
    %cst_132 = arith.constant 9.99999974E-6 : f32
    %213 = vector.broadcast %cst_132 : f32 to vector<1x1xf32>
    %214 = arith.addf %212, %213 : vector<1x1xf32>
    %215 = math.rsqrt %214 : vector<1x1xf32>
    %c0_133 = arith.constant 0 : index
    %c0_134 = arith.constant 0 : index
    %216 = vector.load %arg13[%c0_133, %c0_134] : memref<1x128xf32, #tpu.memory_space<vmem>>, vector<1x128xf32>
    %217 = vector.broadcast %215 : vector<1x1xf32> to vector<1x128xf32>
    %218 = arith.mulf %216, %217 : vector<1x128xf32>
    %c0_135 = arith.constant 0 : index
    %c0_136 = arith.constant 0 : index
    %219 = vector.load %arg14[%c0_135, %c0_136] : memref<1x128xf32, #tpu.memory_space<vmem>>, vector<1x128xf32>
    %220 = vector.broadcast %206 : vector<1x1xf32> to vector<1x128xf32>
    %221 = arith.mulf %220, %218 : vector<1x128xf32>
    %222 = arith.subf %219, %221 : vector<1x128xf32>
    %223 = vector.broadcast %218 : vector<1x128xf32> to vector<32x128xf32>
    %224 = arith.mulf %197, %223 : vector<32x128xf32>
    %225 = vector.broadcast %222 : vector<1x128xf32> to vector<32x128xf32>
    %226 = arith.addf %224, %225 : vector<32x128xf32>
    %cst_137 = arith.constant 5.000000e-01 : f32
    %227 = vector.broadcast %cst_137 : f32 to vector<32x128xf32>
    %228 = arith.mulf %227, %226 : vector<32x128xf32>
    %cst_138 = arith.constant 0.707106769 : f32
    %229 = vector.broadcast %cst_138 : f32 to vector<32x128xf32>
    %230 = arith.mulf %226, %229 : vector<32x128xf32>
    %cst_139 = arith.constant 0.000000e+00 : f32
    %231 = vector.broadcast %cst_139 : f32 to vector<32x128xf32>
    %232 = arith.cmpf oge, %230, %231 : vector<32x128xf32>
    %cst_140 = arith.constant 1.000000e+00 : f32
    %cst_141 = arith.constant -1.000000e+00 : f32
    %233 = vector.broadcast %cst_140 : f32 to vector<32x128xf32>
    %234 = vector.broadcast %cst_141 : f32 to vector<32x128xf32>
    %235 = arith.select %232, %233, %234 : vector<32x128xi1>, vector<32x128xf32>
    %236 = math.absf %230 : vector<32x128xf32>
    %cst_142 = arith.constant 0.327591091 : f32
    %237 = vector.broadcast %cst_142 : f32 to vector<32x128xf32>
    %238 = arith.mulf %237, %236 : vector<32x128xf32>
    %cst_143 = arith.constant 1.000000e+00 : f32
    %239 = vector.broadcast %cst_143 : f32 to vector<32x128xf32>
    %240 = arith.addf %239, %238 : vector<32x128xf32>
    %cst_144 = arith.constant 1.000000e+00 : f32
    %241 = vector.broadcast %cst_144 : f32 to vector<32x128xf32>
    %242 = arith.divf %241, %240 : vector<32x128xf32>
    %cst_145 = arith.constant 1.06140542 : f32
    %243 = vector.broadcast %cst_145 : f32 to vector<32x128xf32>
    %244 = arith.mulf %243, %242 : vector<32x128xf32>
    %cst_146 = arith.constant -1.45315206 : f32
    %245 = vector.broadcast %cst_146 : f32 to vector<32x128xf32>
    %246 = arith.addf %244, %245 : vector<32x128xf32>
    %247 = arith.mulf %246, %242 : vector<32x128xf32>
    %cst_147 = arith.constant 1.42141378 : f32
    %248 = vector.broadcast %cst_147 : f32 to vector<32x128xf32>
    %249 = arith.addf %247, %248 : vector<32x128xf32>
    %250 = arith.mulf %249, %242 : vector<32x128xf32>
    %cst_148 = arith.constant -0.284496725 : f32
    %251 = vector.broadcast %cst_148 : f32 to vector<32x128xf32>
    %252 = arith.addf %250, %251 : vector<32x128xf32>
    %253 = arith.mulf %252, %242 : vector<32x128xf32>
    %cst_149 = arith.constant 0.254829586 : f32
    %254 = vector.broadcast %cst_149 : f32 to vector<32x128xf32>
    %255 = arith.addf %253, %254 : vector<32x128xf32>
    %256 = arith.mulf %255, %242 : vector<32x128xf32>
    %cst_150 = arith.constant 0.000000e+00 : f32
    %257 = vector.broadcast %cst_150 : f32 to vector<32x128xf32>
    %258 = arith.subf %257, %236 : vector<32x128xf32>
    %259 = arith.mulf %258, %236 : vector<32x128xf32>
    %260 = math.exp %259 : vector<32x128xf32>
    %261 = arith.mulf %256, %260 : vector<32x128xf32>
    %cst_151 = arith.constant 1.000000e+00 : f32
    %262 = vector.broadcast %cst_151 : f32 to vector<32x128xf32>
    %263 = arith.subf %262, %261 : vector<32x128xf32>
    %264 = arith.mulf %235, %263 : vector<32x128xf32>
    %cst_152 = arith.constant 1.000000e+00 : f32
    %265 = vector.broadcast %cst_152 : f32 to vector<32x128xf32>
    %266 = arith.addf %265, %264 : vector<32x128xf32>
    %267 = arith.mulf %228, %266 : vector<32x128xf32>
    %c1_153 = arith.constant 1 : index
    %c0_154 = arith.constant 0 : index
    %268 = vector.load %arg19[%c1_153, %c0_154] : memref<34x256xf32, #tpu.memory_space<vmem>>, vector<32x128xf32>
    tpu.vector_store %arg19[%c1_153, %c0_154], %267 {strides = array<i32>} : memref<34x256xf32, #tpu.memory_space<vmem>>, vector<32x128xf32>,
    %c0_155 = arith.constant 0 : index
    %c0_156 = arith.constant 0 : index
    %269 = vector.load %arg19[%c0_155, %c0_156] : memref<34x256xf32, #tpu.memory_space<vmem>>, vector<32x128xf32>
    %c0_157 = arith.constant 0 : index
    %c0_158 = arith.constant 0 : index
    %c0_159 = arith.constant 0 : index
    %270 = vector.load %arg15[%c0_157, %c0_158, %c0_159] : memref<3x128x256xf32, #tpu.memory_space<vmem>>, vector<1x128x256xf32>
    %271 = vector.shape_cast %270 : vector<1x128x256xf32> to vector<128x256xf32>
    %cst_160 = arith.constant dense<0.000000e+00> : vector<32x256xf32>
    %272 = tpu.matmul %269, %271, %cst_160 {dimension_numbers = #tpu.dot_dimension_numbers<[1], [0], [0], [1], [0, 0, 1, 1], [], []>} : vector<32x128xf32>, vector<128x256xf32>, vector<32x256xf32> -> vector<32x256xf32>
    %c1_161 = arith.constant 1 : index
    %c0_162 = arith.constant 0 : index
    %273 = vector.load %arg19[%c1_161, %c0_162] : memref<34x256xf32, #tpu.memory_space<vmem>>, vector<32x128xf32>
    %c1_163 = arith.constant 1 : index
    %c0_164 = arith.constant 0 : index
    %c0_165 = arith.constant 0 : index
    %274 = vector.load %arg15[%c1_163, %c0_164, %c0_165] : memref<3x128x256xf32, #tpu.memory_space<vmem>>, vector<1x128x256xf32>
    %275 = vector.shape_cast %274 : vector<1x128x256xf32> to vector<128x256xf32>
    %cst_166 = arith.constant dense<0.000000e+00> : vector<32x256xf32>
    %276 = tpu.matmul %273, %275, %cst_166 {dimension_numbers = #tpu.dot_dimension_numbers<[1], [0], [0], [1], [0, 0, 1, 1], [], []>} : vector<32x128xf32>, vector<128x256xf32>, vector<32x256xf32> -> vector<32x256xf32>
    %277 = arith.addf %272, %276 : vector<32x256xf32>
    %c2_167 = arith.constant 2 : index
    %c0_168 = arith.constant 0 : index
    %278 = vector.load %arg19[%c2_167, %c0_168] : memref<34x256xf32, #tpu.memory_space<vmem>>, vector<32x128xf32>
    %c2_169 = arith.constant 2 : index
    %c0_170 = arith.constant 0 : index
    %c0_171 = arith.constant 0 : index
    %279 = vector.load %arg15[%c2_169, %c0_170, %c0_171] : memref<3x128x256xf32, #tpu.memory_space<vmem>>, vector<1x128x256xf32>
    %280 = vector.shape_cast %279 : vector<1x128x256xf32> to vector<128x256xf32>
    %cst_172 = arith.constant dense<0.000000e+00> : vector<32x256xf32>
    %281 = tpu.matmul %278, %280, %cst_172 {dimension_numbers = #tpu.dot_dimension_numbers<[1], [0], [0], [1], [0, 0, 1, 1], [], []>} : vector<32x128xf32>, vector<128x256xf32>, vector<32x256xf32> -> vector<32x256xf32>
    %282 = arith.addf %277, %281 : vector<32x256xf32>
    %cst_173 = arith.constant dense<0.000000e+00> : vector<256xf32>
    %283 = vector.multi_reduction <add>, %282, %cst_173 [0] : vector<32x256xf32> to vector<256xf32>
    %284 = vector.shape_cast %283 : vector<256xf32> to vector<1x256xf32>
    %285 = arith.mulf %282, %282 : vector<32x256xf32>
    %cst_174 = arith.constant dense<0.000000e+00> : vector<256xf32>
    %286 = vector.multi_reduction <add>, %285, %cst_174 [0] : vector<32x256xf32> to vector<256xf32>
    %287 = vector.shape_cast %286 : vector<256xf32> to vector<1x256xf32>
    %cst_175 = arith.constant dense<0.000000e+00> : vector<1xf32>
    %288 = vector.multi_reduction <add>, %284, %cst_175 [1] : vector<1x256xf32> to vector<1xf32>
    %289 = vector.shape_cast %288 : vector<1xf32> to vector<1x1xf32>
    %cst_176 = arith.constant 8.192000e+03 : f32
    %290 = vector.broadcast %cst_176 : f32 to vector<1x1xf32>
    %291 = arith.divf %289, %290 : vector<1x1xf32>
    %cst_177 = arith.constant dense<0.000000e+00> : vector<1xf32>
    %292 = vector.multi_reduction <add>, %287, %cst_177 [1] : vector<1x256xf32> to vector<1xf32>
    %293 = vector.shape_cast %292 : vector<1xf32> to vector<1x1xf32>
    %cst_178 = arith.constant 8.192000e+03 : f32
    %294 = vector.broadcast %cst_178 : f32 to vector<1x1xf32>
    %295 = arith.divf %293, %294 : vector<1x1xf32>
    %296 = arith.mulf %291, %291 : vector<1x1xf32>
    %297 = arith.subf %295, %296 : vector<1x1xf32>
    %cst_179 = arith.constant 9.99999974E-6 : f32
    %298 = vector.broadcast %cst_179 : f32 to vector<1x1xf32>
    %299 = arith.addf %297, %298 : vector<1x1xf32>
    %300 = math.rsqrt %299 : vector<1x1xf32>
    %c0_180 = arith.constant 0 : index
    %c0_181 = arith.constant 0 : index
    %301 = vector.load %arg16[%c0_180, %c0_181] : memref<1x256xf32, #tpu.memory_space<vmem>>, vector<1x256xf32>
    %302 = vector.broadcast %300 : vector<1x1xf32> to vector<1x256xf32>
    %303 = arith.mulf %301, %302 : vector<1x256xf32>
    %c0_182 = arith.constant 0 : index
    %c0_183 = arith.constant 0 : index
    %304 = vector.load %arg17[%c0_182, %c0_183] : memref<1x256xf32, #tpu.memory_space<vmem>>, vector<1x256xf32>
    %305 = vector.broadcast %291 : vector<1x1xf32> to vector<1x256xf32>
    %306 = arith.mulf %305, %303 : vector<1x256xf32>
    %307 = arith.subf %304, %306 : vector<1x256xf32>
    %308 = vector.broadcast %303 : vector<1x256xf32> to vector<32x256xf32>
    %309 = arith.mulf %282, %308 : vector<32x256xf32>
    %310 = vector.broadcast %307 : vector<1x256xf32> to vector<32x256xf32>
    %311 = arith.addf %309, %310 : vector<32x256xf32>
    %c0_184 = arith.constant 0 : index
    %c0_185 = arith.constant 0 : index
    %c0_186 = arith.constant 0 : index
    %312 = vector.load %arg3[%c0_184, %c0_185, %c0_186] : memref<1x1x256xf32, #tpu.memory_space<vmem>>, vector<1x1x256xf32>
    %313 = vector.shape_cast %312 : vector<1x1x256xf32> to vector<1x256xf32>
    %314 = vector.broadcast %313 : vector<1x256xf32> to vector<32x256xf32>
    %315 = arith.addf %311, %314 : vector<32x256xf32>
    %c0_187 = arith.constant 0 : index
    %c0_188 = arith.constant 0 : index
    %c0_189 = arith.constant 0 : index
    %316 = vector.load %arg18[%c0_187, %c0_188, %c0_189] : memref<1x32x256xf32, #tpu.memory_space<vmem>>, vector<1x32x256xf32>
    %317 = vector.shape_cast %316 : vector<1x32x256xf32> to vector<32x256xf32>
    %318 = vector.shape_cast %315 : vector<32x256xf32> to vector<1x32x256xf32>
    tpu.vector_store %arg18[%c0_187, %c0_188, %c0_189], %318 {strides = array<i32>} : memref<1x32x256xf32, #tpu.memory_space<vmem>>, vector<1x32x256xf32>,
    return
  }
  func.func @transform_0(%arg0: i32) -> (i32, i32, i32) {
    %c0_i32 = arith.constant 0 : i32
    %c0_i32_0 = arith.constant 0 : i32
    %c0_i32_1 = arith.constant 0 : i32
    return %arg0, %c0_i32, %c0_i32_0 : i32, i32, i32
  }
  func.func @transform_1(%arg0: i32) -> (i32, i32, i32) {
    %c0_i32 = arith.constant 0 : i32
    %c0_i32_0 = arith.constant 0 : i32
    %c0_i32_1 = arith.constant 0 : i32
    return %arg0, %c0_i32, %c0_i32_0 : i32, i32, i32
  }
  func.func @transform_2(%arg0: i32) -> (i32, i32, i32) {
    %c0_i32 = arith.constant 0 : i32
    %c0_i32_0 = arith.constant 0 : i32
    %c0_i32_1 = arith.constant 0 : i32
    return %arg0, %c0_i32, %c0_i32_0 : i32, i32, i32
  }
  func.func @transform_3(%arg0: i32) -> (i32, i32) {
    %c0_i32 = arith.constant 0 : i32
    %c0_i32_0 = arith.constant 0 : i32
    %c0_i32_1 = arith.constant 0 : i32
    return %c0_i32, %c0_i32_0 : i32, i32
  }
  func.func @transform_4(%arg0: i32) -> (i32, i32) {
    %c0_i32 = arith.constant 0 : i32
    %c0_i32_0 = arith.constant 0 : i32
    %c0_i32_1 = arith.constant 0 : i32
    return %c0_i32, %c0_i32_0 : i32, i32
  }
  func.func @transform_5(%arg0: i32) -> (i32, i32, i32) {
    %c0_i32 = arith.constant 0 : i32
    %c0_i32_0 = arith.constant 0 : i32
    %c0_i32_1 = arith.constant 0 : i32
    %c0_i32_2 = arith.constant 0 : i32
    return %c0_i32, %c0_i32_0, %c0_i32_1 : i32, i32, i32
  }
  func.func @transform_6(%arg0: i32) -> (i32, i32) {
    %c0_i32 = arith.constant 0 : i32
    %c0_i32_0 = arith.constant 0 : i32
    %c0_i32_1 = arith.constant 0 : i32
    return %c0_i32, %c0_i32_0 : i32, i32
  }
  func.func @transform_7(%arg0: i32) -> (i32, i32) {
    %c0_i32 = arith.constant 0 : i32
    %c0_i32_0 = arith.constant 0 : i32
    %c0_i32_1 = arith.constant 0 : i32
    return %c0_i32, %c0_i32_0 : i32, i32
  }
  func.func @transform_8(%arg0: i32) -> (i32, i32, i32) {
    %c0_i32 = arith.constant 0 : i32
    %c0_i32_0 = arith.constant 0 : i32
    %c0_i32_1 = arith.constant 0 : i32
    %c0_i32_2 = arith.constant 0 : i32
    return %c0_i32, %c0_i32_0, %c0_i32_1 : i32, i32, i32
  }
  func.func @transform_9(%arg0: i32) -> (i32, i32) {
    %c0_i32 = arith.constant 0 : i32
    %c0_i32_0 = arith.constant 0 : i32
    %c0_i32_1 = arith.constant 0 : i32
    return %c0_i32, %c0_i32_0 : i32, i32
  }
  func.func @transform_10(%arg0: i32) -> (i32, i32) {
    %c0_i32 = arith.constant 0 : i32
    %c0_i32_0 = arith.constant 0 : i32
    %c0_i32_1 = arith.constant 0 : i32
    return %c0_i32, %c0_i32_0 : i32, i32
  }
  func.func @transform_11(%arg0: i32) -> (i32, i32, i32) {
    %c0_i32 = arith.constant 0 : i32
    %c0_i32_0 = arith.constant 0 : i32
    %c0_i32_1 = arith.constant 0 : i32
    %c0_i32_2 = arith.constant 0 : i32
    return %c0_i32, %c0_i32_0, %c0_i32_1 : i32, i32, i32
  }
  func.func @transform_12(%arg0: i32) -> (i32, i32) {
    %c0_i32 = arith.constant 0 : i32
    %c0_i32_0 = arith.constant 0 : i32
    %c0_i32_1 = arith.constant 0 : i32
    return %c0_i32, %c0_i32_0 : i32, i32
  }
  func.func @transform_13(%arg0: i32) -> (i32, i32) {
    %c0_i32 = arith.constant 0 : i32
    %c0_i32_0 = arith.constant 0 : i32
    %c0_i32_1 = arith.constant 0 : i32
    return %c0_i32, %c0_i32_0 : i32, i32
  }
  func.func @transform_14(%arg0: i32) -> (i32, i32, i32) {
    %c0_i32 = arith.constant 0 : i32
    %c0_i32_0 = arith.constant 0 : i32
    %c0_i32_1 = arith.constant 0 : i32
    %c0_i32_2 = arith.constant 0 : i32
    return %c0_i32, %c0_i32_0, %c0_i32_1 : i32, i32, i32
  }
  func.func @transform_15(%arg0: i32) -> (i32, i32) {
    %c0_i32 = arith.constant 0 : i32
    %c0_i32_0 = arith.constant 0 : i32
    %c0_i32_1 = arith.constant 0 : i32
    return %c0_i32, %c0_i32_0 : i32, i32
  }
  func.func @transform_16(%arg0: i32) -> (i32, i32) {
    %c0_i32 = arith.constant 0 : i32
    %c0_i32_0 = arith.constant 0 : i32
    %c0_i32_1 = arith.constant 0 : i32
    return %c0_i32, %c0_i32_0 : i32, i32
  }
  func.func @transform_17(%arg0: i32) -> (i32, i32, i32) {
    %c0_i32 = arith.constant 0 : i32
    %c0_i32_0 = arith.constant 0 : i32
    %c0_i32_1 = arith.constant 0 : i32
    return %arg0, %c0_i32, %c0_i32_0 : i32, i32, i32
  }
}

</mosaic_0001>

<llo_original>
// kernel: tpu_custom_call.1
$region0: #{tpu_custom_call.1}
  #allocation0 [shape = 'u32[]', space=smem, size = 0x4, offset = 0x4, fixed_abs, tag = 'smem constant byte address 0x4 - core index']
  #allocation1 [shape = 'u32[72,128]{1,0:T(1,128)}', space=vmem, size = 0x9000, scoped, tag = 'internal scratch']
  #allocation2 [shape = 'f32[34,256]{1,0:T(8,128)}', space=vmem, size = 0xa000, scoped, tag = 'scratch operand']
  %s0 = inlined_call_operand.vmem [shape: f32[2,16,64], index: 0, kind: input, shape index: {}]
  %s1 = inlined_call_operand.hbm [shape: f32[2,32,256], index: 1, kind: input, shape index: {}]
  %s2 = inlined_call_operand.vmem [shape: f32[2,1,256], index: 2, kind: input, shape index: {}]
  %s3 = inlined_call_operand.vmem [shape: f32[32,16], index: 3, kind: input, shape index: {}]
  %s4 = inlined_call_operand.hbm [shape: f32[64,256], index: 4, kind: input, shape index: {}]
  %s5 = inlined_call_operand.hbm [shape: f32[3,256,256], index: 5, kind: input, shape index: {}]
  %s6 = inlined_call_operand.vmem [shape: f32[1,256], index: 6, kind: input, shape index: {}]
  %s7 = inlined_call_operand.vmem [shape: f32[1,256], index: 7, kind: input, shape index: {}]
  %s8 = inlined_call_operand.hbm [shape: f32[3,256,256], index: 8, kind: input, shape index: {}]
  %s9 = inlined_call_operand.vmem [shape: f32[1,256], index: 9, kind: input, shape index: {}]
  %s10 = inlined_call_operand.vmem [shape: f32[1,256], index: 10, kind: input, shape index: {}]
  %s11 = inlined_call_operand.hbm [shape: f32[3,256,128], index: 11, kind: input, shape index: {}]
  %s12 = inlined_call_operand.vmem [shape: f32[1,128], index: 12, kind: input, shape index: {}]
  %s13 = inlined_call_operand.vmem [shape: f32[1,128], index: 13, kind: input, shape index: {}]
  %s14 = inlined_call_operand.hbm [shape: f32[3,128,256], index: 14, kind: input, shape index: {}]
  %s15 = inlined_call_operand.vmem [shape: f32[1,256], index: 15, kind: input, shape index: {}]
  %s16 = inlined_call_operand.vmem [shape: f32[1,256], index: 16, kind: input, shape index: {}]
  %s17 = inlined_call_operand.hbm [shape: f32[2,32,256], index: 17, kind: output, shape index: {}]
  %s18 = sld [smem:[#allocation0]]
  $region125: #{tpu_custom_call.1} parent=0
    _
  %s20 = ssub.s32 1, %s18
  %s21 = scalar_select 0, %s20, %s18
  $region1: #{tpu_custom_call.1} parent=0
    #allocation3 [shape = 'u8[65536]{0}', space=vmem, size = 0x10000, scoped, tag = 'input window, operand 1']
    #allocation4 [shape = 's32[2]{0}', space=sflag, size = 0x8, scoped, tag = 'scoped memory for tpu_custom_call.1']
    #allocation5 [shape = 's32[2]{0}', space=sflag, size = 0x8, scoped, tag = 'scoped memory for tpu_custom_call.1']
    #allocation6 [shape = 'u8[65536]{0}', space=vmem, size = 0x10000, scoped, tag = 'input window, operand 4, single buffered']
    #allocation7 [shape = 's32[1]{0}', space=sflag, size = 0x4, scoped, tag = 'scoped memory for tpu_custom_call.1']
    #allocation8 [shape = 'u8[786432]{0}', space=vmem, size = 0xc0000, scoped, tag = 'input window, operand 5, single buffered']
    #allocation9 [shape = 'u8[786432]{0}', space=vmem, size = 0xc0000, scoped, tag = 'input window, operand 8, single buffered']
    #allocation10 [shape = 's32[1]{0}', space=sflag, size = 0x4, scoped, tag = 'scoped memory for tpu_custom_call.1']
    #allocation11 [shape = 'u8[393216]{0}', space=vmem, size = 0x60000, scoped, tag = 'input window, operand 11, single buffered']
    #allocation12 [shape = 'u8[393216]{0}', space=vmem, size = 0x60000, scoped, tag = 'input window, operand 14, single buffered']
    #allocation13 [shape = 's32[1]{0}', space=sflag, size = 0x4, scoped, tag = 'scoped memory for tpu_custom_call.1']
    #allocation14 [shape = 'u8[65536]{0}', space=vmem, size = 0x10000, scoped, tag = 'output window, operand 0']
    %22 = vsyncpa [#allocation4], 0
    %s23 = scalar_lea.sflag [#allocation4], 1
    %24 = vsyncpa %s23, 0
    %25 = vsyncpa [#allocation7], 0
    %26 = vsyncpa [#allocation10], 0
    %27 = vsyncpa [#allocation13], 0
    %28 = vsyncpa [#allocation5], 0
    %s29 = scalar_lea.sflag [#allocation5], 1
    %30 = vsyncpa %s29, 0
    loop: start=0, step=1, limit=4
    $region2: #{tpu_custom_call.1} parent=1 // loop_pre_header
      _
    $region3: #{tpu_custom_call.1} parent=1 // loop_header
      %s32 = sphi 0, %s36
      %p33 = scmp.ge.s32.totalorder %s32, 4
      %s42 = sphi 0, %s44
      %s45 = sphi 0, %s42
      %s46 = sphi 0, %s45
      %s62 = sphi 0, %s46
      %s68 = sphi 0, %s70
      %s71 = sphi 0, %s68
      %s72 = sphi 0, %s71
      %s88 = sphi 0, %s72
      %s94 = sphi 0, %s96
      %s97 = sphi 0, %s94
      %s98 = sphi 0, %s97
      %s114 = sphi 0, %s98
      %s118 = sphi 0, %s118
      %s120 = sphi 0, %s118
      %s121 = sphi 0, %s120
      %s135 = sphi 0, %s121
      %s139 = sphi 0, %s139
      %s141 = sphi 0, %s139
      %s142 = sphi 0, %s141
      %s156 = sphi 0, %s142
      %s160 = sphi 0, %s160
      %s162 = sphi 0, %s160
      %s163 = sphi 0, %s162
      %s177 = sphi 0, %s163
      %s181 = sphi 0, %s181
      %s183 = sphi 0, %s181
      %s184 = sphi 0, %s183
      %s198 = sphi 0, %s184
      %s202 = sphi 0, %s202
      %s204 = sphi 0, %s202
      %s205 = sphi 0, %s204
      %s219 = sphi 0, %s205
      %s223 = sphi 0, %s223
      %s225 = sphi 0, %s223
      %s226 = sphi 0, %s225
      %s240 = sphi 0, %s226
      %s244 = sphi 0, %s244
      %s246 = sphi 0, %s244
      %s247 = sphi 0, %s246
      %s261 = sphi 0, %s247
      %s265 = sphi 0, %s265
      %s267 = sphi 0, %s265
      %s268 = sphi 0, %s267
      %s282 = sphi 0, %s268
      %s286 = sphi 0, %s286
      %s288 = sphi 0, %s286
      %s289 = sphi 0, %s288
      %s303 = sphi 0, %s289
      %s307 = sphi 0, %s307
      %s309 = sphi 0, %s307
      %s310 = sphi 0, %s309
      %s324 = sphi 0, %s310
      %s328 = sphi 0, %s328
      %s330 = sphi 0, %s328
      %s331 = sphi 0, %s330
      %s345 = sphi 0, %s331
      %s349 = sphi 0, %s349
      %s351 = sphi 0, %s349
      %s352 = sphi 0, %s351
      %s366 = sphi 0, %s352
      %s370 = sphi 0, %s370
      %s372 = sphi 0, %s370
      %s373 = sphi 0, %s372
      %s387 = sphi 0, %s373
      %s391 = sphi 0, %s391
      %s393 = sphi 0, %s391
      %s394 = sphi 0, %s393
      %s408 = sphi 0, %s394
      %s414 = sphi 0, %s416
      %s417 = sphi 0, %s414
      %s418 = sphi 0, %s417
      %s434 = sphi 0, %s418
    $region4: #{tpu_custom_call.1} parent=1 // loop_header_branch
      %35 = sbr.rel (%p33) target = $region8
    $region5: #{tpu_custom_call.1} parent=1 // loop_body
      %s37 = ssub.s32 %s32, 1
      %s38 = ssub.s32 %s32, 2
      %s39 = sadd.s32 %s32, 1
      %s40 = ssub.s32 %s32, %s39
      %p41 = scmp.eq.s32.totalorder %s40, 0
      %s43 = sadd.s32 %s42, 1
      %s44 = scalar_select %p41, %s42, %s43
      %p47 = pneg %p41
      %p48 = scmp.eq.s32.totalorder %s32, 1
      %p49 = por %p47, %p48
      %p50 = scmp.ne.s32.totalorder %s42, %s45
      %p51 = scmp.eq.s32.totalorder %s32, 0
      %p52 = por %p50, %p51
      %p53 = scmp.ne.s32.totalorder %s42, %s45
      %p54 = scmp.eq.s32.totalorder %s37, 1
      %p55 = por %p53, %p54
      %p56 = scmp.ne.s32.totalorder %s45, %s46
      %p57 = scmp.eq.s32.totalorder %s37, 0
      %p58 = por %p56, %p57
      %p59 = scmp.ne.s32.totalorder %s45, %s46
      %p60 = scmp.eq.s32.totalorder %s38, 1
      %p61 = por %p59, %p60
      %p63 = scmp.ne.s32.totalorder %s46, %s62
      %p64 = scmp.eq.s32.totalorder %s38, 0
      %p65 = por %p63, %p64
      %s66 = ssub.s32 %s32, %s39
      %p67 = scmp.eq.s32.totalorder %s66, 0
      %s69 = sadd.s32 %s68, 1
      %s70 = scalar_select %p67, %s68, %s69
      %p73 = pneg %p67
      %p74 = scmp.eq.s32.totalorder %s32, 1
      %p75 = por %p73, %p74
      %p76 = scmp.ne.s32.totalorder %s68, %s71
      %p77 = scmp.eq.s32.totalorder %s32, 0
      %p78 = por %p76, %p77
      %p79 = scmp.ne.s32.totalorder %s68, %s71
      %p80 = scmp.eq.s32.totalorder %s37, 1
      %p81 = por %p79, %p80
      %p82 = scmp.ne.s32.totalorder %s71, %s72
      %p83 = scmp.eq.s32.totalorder %s37, 0
      %p84 = por %p82, %p83
      %p85 = scmp.ne.s32.totalorder %s71, %s72
      %p86 = scmp.eq.s32.totalorder %s38, 1
      %p87 = por %p85, %p86
      %p89 = scmp.ne.s32.totalorder %s72, %s88
      %p90 = scmp.eq.s32.totalorder %s38, 0
      %p91 = por %p89, %p90
      %s92 = ssub.s32 %s32, %s39
      %p93 = scmp.eq.s32.totalorder %s92, 0
      %s95 = sadd.s32 %s94, 1
      %s96 = scalar_select %p93, %s94, %s95
      %p99 = pneg %p93
      %p100 = scmp.eq.s32.totalorder %s32, 1
      %p101 = por %p99, %p100
      %p102 = scmp.ne.s32.totalorder %s94, %s97
      %p103 = scmp.eq.s32.totalorder %s32, 0
      %p104 = por %p102, %p103
      %p105 = scmp.ne.s32.totalorder %s94, %s97
      %p106 = scmp.eq.s32.totalorder %s37, 1
      %p107 = por %p105, %p106
      %p108 = scmp.ne.s32.totalorder %s97, %s98
      %p109 = scmp.eq.s32.totalorder %s37, 0
      %p110 = por %p108, %p109
      %p111 = scmp.ne.s32.totalorder %s97, %s98
      %p112 = scmp.eq.s32.totalorder %s38, 1
      %p113 = por %p111, %p112
      %p115 = scmp.ne.s32.totalorder %s98, %s114
      %p116 = scmp.eq.s32.totalorder %s38, 0
      %p117 = por %p115, %p116
      %s119 = sadd.s32 %s118, 1
      %p122 = scmp.eq.s32.totalorder %s32, 1
      %p123 = scmp.ne.s32.totalorder %s118, %s120
      %p124 = scmp.eq.s32.totalorder %s32, 0
      %p125 = por %p123, %p124
      %p126 = scmp.ne.s32.totalorder %s118, %s120
      %p127 = scmp.eq.s32.totalorder %s37, 1
      %p128 = por %p126, %p127
      %p129 = scmp.ne.s32.totalorder %s120, %s121
      %p130 = scmp.eq.s32.totalorder %s37, 0
      %p131 = por %p129, %p130
      %p132 = scmp.ne.s32.totalorder %s120, %s121
      %p133 = scmp.eq.s32.totalorder %s38, 1
      %p134 = por %p132, %p133
      %p136 = scmp.ne.s32.totalorder %s121, %s135
      %p137 = scmp.eq.s32.totalorder %s38, 0
      %p138 = por %p136, %p137
      %s140 = sadd.s32 %s139, 1
      %p143 = scmp.eq.s32.totalorder %s32, 1
      %p144 = scmp.ne.s32.totalorder %s139, %s141
      %p145 = scmp.eq.s32.totalorder %s32, 0
      %p146 = por %p144, %p145
      %p147 = scmp.ne.s32.totalorder %s139, %s141
      %p148 = scmp.eq.s32.totalorder %s37, 1
      %p149 = por %p147, %p148
      %p150 = scmp.ne.s32.totalorder %s141, %s142
      %p151 = scmp.eq.s32.totalorder %s37, 0
      %p152 = por %p150, %p151
      %p153 = scmp.ne.s32.totalorder %s141, %s142
      %p154 = scmp.eq.s32.totalorder %s38, 1
      %p155 = por %p153, %p154
      %p157 = scmp.ne.s32.totalorder %s142, %s156
      %p158 = scmp.eq.s32.totalorder %s38, 0
      %p159 = por %p157, %p158
      %s161 = sadd.s32 %s160, 1
      %p164 = scmp.eq.s32.totalorder %s32, 1
      %p165 = scmp.ne.s32.totalorder %s160, %s162
      %p166 = scmp.eq.s32.totalorder %s32, 0
      %p167 = por %p165, %p166
      %p168 = scmp.ne.s32.totalorder %s160, %s162
      %p169 = scmp.eq.s32.totalorder %s37, 1
      %p170 = por %p168, %p169
      %p171 = scmp.ne.s32.totalorder %s162, %s163
      %p172 = scmp.eq.s32.totalorder %s37, 0
      %p173 = por %p171, %p172
      %p174 = scmp.ne.s32.totalorder %s162, %s163
      %p175 = scmp.eq.s32.totalorder %s38, 1
      %p176 = por %p174, %p175
      %p178 = scmp.ne.s32.totalorder %s163, %s177
      %p179 = scmp.eq.s32.totalorder %s38, 0
      %p180 = por %p178, %p179
      %s182 = sadd.s32 %s181, 1
      %p185 = scmp.eq.s32.totalorder %s32, 1
      %p186 = scmp.ne.s32.totalorder %s181, %s183
      %p187 = scmp.eq.s32.totalorder %s32, 0
      %p188 = por %p186, %p187
      %p189 = scmp.ne.s32.totalorder %s181, %s183
      %p190 = scmp.eq.s32.totalorder %s37, 1
      %p191 = por %p189, %p190
      %p192 = scmp.ne.s32.totalorder %s183, %s184
      %p193 = scmp.eq.s32.totalorder %s37, 0
      %p194 = por %p192, %p193
      %p195 = scmp.ne.s32.totalorder %s183, %s184
      %p196 = scmp.eq.s32.totalorder %s38, 1
      %p197 = por %p195, %p196
      %p199 = scmp.ne.s32.totalorder %s184, %s198
      %p200 = scmp.eq.s32.totalorder %s38, 0
      %p201 = por %p199, %p200
      %s203 = sadd.s32 %s202, 1
      %p206 = scmp.eq.s32.totalorder %s32, 1
      %p207 = scmp.ne.s32.totalorder %s202, %s204
      %p208 = scmp.eq.s32.totalorder %s32, 0
      %p209 = por %p207, %p208
      %p210 = scmp.ne.s32.totalorder %s202, %s204
      %p211 = scmp.eq.s32.totalorder %s37, 1
      %p212 = por %p210, %p211
      %p213 = scmp.ne.s32.totalorder %s204, %s205
      %p214 = scmp.eq.s32.totalorder %s37, 0
      %p215 = por %p213, %p214
      %p216 = scmp.ne.s32.totalorder %s204, %s205
      %p217 = scmp.eq.s32.totalorder %s38, 1
      %p218 = por %p216, %p217
      %p220 = scmp.ne.s32.totalorder %s205, %s219
      %p221 = scmp.eq.s32.totalorder %s38, 0
      %p222 = por %p220, %p221
      %s224 = sadd.s32 %s223, 1
      %p227 = scmp.eq.s32.totalorder %s32, 1
      %p228 = scmp.ne.s32.totalorder %s223, %s225
      %p229 = scmp.eq.s32.totalorder %s32, 0
      %p230 = por %p228, %p229
      %p231 = scmp.ne.s32.totalorder %s223, %s225
      %p232 = scmp.eq.s32.totalorder %s37, 1
      %p233 = por %p231, %p232
      %p234 = scmp.ne.s32.totalorder %s225, %s226
      %p235 = scmp.eq.s32.totalorder %s37, 0
      %p236 = por %p234, %p235
      %p237 = scmp.ne.s32.totalorder %s225, %s226
      %p238 = scmp.eq.s32.totalorder %s38, 1
      %p239 = por %p237, %p238
      %p241 = scmp.ne.s32.totalorder %s226, %s240
      %p242 = scmp.eq.s32.totalorder %s38, 0
      %p243 = por %p241, %p242
      %s245 = sadd.s32 %s244, 1
      %p248 = scmp.eq.s32.totalorder %s32, 1
      %p249 = scmp.ne.s32.totalorder %s244, %s246
      %p250 = scmp.eq.s32.totalorder %s32, 0
      %p251 = por %p249, %p250
      %p252 = scmp.ne.s32.totalorder %s244, %s246
      %p253 = scmp.eq.s32.totalorder %s37, 1
      %p254 = por %p252, %p253
      %p255 = scmp.ne.s32.totalorder %s246, %s247
      %p256 = scmp.eq.s32.totalorder %s37, 0
      %p257 = por %p255, %p256
      %p258 = scmp.ne.s32.totalorder %s246, %s247
      %p259 = scmp.eq.s32.totalorder %s38, 1
      %p260 = por %p258, %p259
      %p262 = scmp.ne.s32.totalorder %s247, %s261
      %p263 = scmp.eq.s32.totalorder %s38, 0
      %p264 = por %p262, %p263
      %s266 = sadd.s32 %s265, 1
      %p269 = scmp.eq.s32.totalorder %s32, 1
      %p270 = scmp.ne.s32.totalorder %s265, %s267
      %p271 = scmp.eq.s32.totalorder %s32, 0
      %p272 = por %p270, %p271
      %p273 = scmp.ne.s32.totalorder %s265, %s267
      %p274 = scmp.eq.s32.totalorder %s37, 1
      %p275 = por %p273, %p274
      %p276 = scmp.ne.s32.totalorder %s267, %s268
      %p277 = scmp.eq.s32.totalorder %s37, 0
      %p278 = por %p276, %p277
      %p279 = scmp.ne.s32.totalorder %s267, %s268
      %p280 = scmp.eq.s32.totalorder %s38, 1
      %p281 = por %p279, %p280
      %p283 = scmp.ne.s32.totalorder %s268, %s282
      %p284 = scmp.eq.s32.totalorder %s38, 0
      %p285 = por %p283, %p284
      %s287 = sadd.s32 %s286, 1
      %p290 = scmp.eq.s32.totalorder %s32, 1
      %p291 = scmp.ne.s32.totalorder %s286, %s288
      %p292 = scmp.eq.s32.totalorder %s32, 0
      %p293 = por %p291, %p292
      %p294 = scmp.ne.s32.totalorder %s286, %s288
      %p295 = scmp.eq.s32.totalorder %s37, 1
      %p296 = por %p294, %p295
      %p297 = scmp.ne.s32.totalorder %s288, %s289
      %p298 = scmp.eq.s32.totalorder %s37, 0
      %p299 = por %p297, %p298
      %p300 = scmp.ne.s32.totalorder %s288, %s289
      %p301 = scmp.eq.s32.totalorder %s38, 1
      %p302 = por %p300, %p301
      %p304 = scmp.ne.s32.totalorder %s289, %s303
      %p305 = scmp.eq.s32.totalorder %s38, 0
      %p306 = por %p304, %p305
      %s308 = sadd.s32 %s307, 1
      %p311 = scmp.eq.s32.totalorder %s32, 1
      %p312 = scmp.ne.s32.totalorder %s307, %s309
      %p313 = scmp.eq.s32.totalorder %s32, 0
      %p314 = por %p312, %p313
      %p315 = scmp.ne.s32.totalorder %s307, %s309
      %p316 = scmp.eq.s32.totalorder %s37, 1
      %p317 = por %p315, %p316
      %p318 = scmp.ne.s32.totalorder %s309, %s310
      %p319 = scmp.eq.s32.totalorder %s37, 0
      %p320 = por %p318, %p319
      %p321 = scmp.ne.s32.totalorder %s309, %s310
      %p322 = scmp.eq.s32.totalorder %s38, 1
      %p323 = por %p321, %p322
      %p325 = scmp.ne.s32.totalorder %s310, %s324
      %p326 = scmp.eq.s32.totalorder %s38, 0
      %p327 = por %p325, %p326
      %s329 = sadd.s32 %s328, 1
      %p332 = scmp.eq.s32.totalorder %s32, 1
      %p333 = scmp.ne.s32.totalorder %s328, %s330
      %p334 = scmp.eq.s32.totalorder %s32, 0
      %p335 = por %p333, %p334
      %p336 = scmp.ne.s32.totalorder %s328, %s330
      %p337 = scmp.eq.s32.totalorder %s37, 1
      %p338 = por %p336, %p337
      %p339 = scmp.ne.s32.totalorder %s330, %s331
      %p340 = scmp.eq.s32.totalorder %s37, 0
      %p341 = por %p339, %p340
      %p342 = scmp.ne.s32.totalorder %s330, %s331
      %p343 = scmp.eq.s32.totalorder %s38, 1
      %p344 = por %p342, %p343
      %p346 = scmp.ne.s32.totalorder %s331, %s345
      %p347 = scmp.eq.s32.totalorder %s38, 0
      %p348 = por %p346, %p347
      %s350 = sadd.s32 %s349, 1
      %p353 = scmp.eq.s32.totalorder %s32, 1
      %p354 = scmp.ne.s32.totalorder %s349, %s351
      %p355 = scmp.eq.s32.totalorder %s32, 0
      %p356 = por %p354, %p355
      %p357 = scmp.ne.s32.totalorder %s349, %s351
      %p358 = scmp.eq.s32.totalorder %s37, 1
      %p359 = por %p357, %p358
      %p360 = scmp.ne.s32.totalorder %s351, %s352
      %p361 = scmp.eq.s32.totalorder %s37, 0
      %p362 = por %p360, %p361
      %p363 = scmp.ne.s32.totalorder %s351, %s352
      %p364 = scmp.eq.s32.totalorder %s38, 1
      %p365 = por %p363, %p364
      %p367 = scmp.ne.s32.totalorder %s352, %s366
      %p368 = scmp.eq.s32.totalorder %s38, 0
      %p369 = por %p367, %p368
      %s371 = sadd.s32 %s370, 1
      %p374 = scmp.eq.s32.totalorder %s32, 1
      %p375 = scmp.ne.s32.totalorder %s370, %s372
      %p376 = scmp.eq.s32.totalorder %s32, 0
      %p377 = por %p375, %p376
      %p378 = scmp.ne.s32.totalorder %s370, %s372
      %p379 = scmp.eq.s32.totalorder %s37, 1
      %p380 = por %p378, %p379
      %p381 = scmp.ne.s32.totalorder %s372, %s373
      %p382 = scmp.eq.s32.totalorder %s37, 0
      %p383 = por %p381, %p382
      %p384 = scmp.ne.s32.totalorder %s372, %s373
      %p385 = scmp.eq.s32.totalorder %s38, 1
      %p386 = por %p384, %p385
      %p388 = scmp.ne.s32.totalorder %s373, %s387
      %p389 = scmp.eq.s32.totalorder %s38, 0
      %p390 = por %p388, %p389
      %s392 = sadd.s32 %s391, 1
      %p395 = scmp.eq.s32.totalorder %s32, 1
      %p396 = scmp.ne.s32.totalorder %s391, %s393
      %p397 = scmp.eq.s32.totalorder %s32, 0
      %p398 = por %p396, %p397
      %p399 = scmp.ne.s32.totalorder %s391, %s393
      %p400 = scmp.eq.s32.totalorder %s37, 1
      %p401 = por %p399, %p400
      %p402 = scmp.ne.s32.totalorder %s393, %s394
      %p403 = scmp.eq.s32.totalorder %s37, 0
      %p404 = por %p402, %p403
      %p405 = scmp.ne.s32.totalorder %s393, %s394
      %p406 = scmp.eq.s32.totalorder %s38, 1
      %p407 = por %p405, %p406
      %p409 = scmp.ne.s32.totalorder %s394, %s408
      %p410 = scmp.eq.s32.totalorder %s38, 0
      %p411 = por %p409, %p410
      %s412 = ssub.s32 %s32, %s39
      %p413 = scmp.eq.s32.totalorder %s412, 0
      %s415 = sadd.s32 %s414, 1
      %s416 = scalar_select %p413, %s414, %s415
      %p419 = pneg %p413
      %p420 = scmp.eq.s32.totalorder %s32, 1
      %p421 = por %p419, %p420
      %p422 = scmp.ne.s32.totalorder %s414, %s417
      %p423 = scmp.eq.s32.totalorder %s32, 0
      %p424 = por %p422, %p423
      %p425 = scmp.ne.s32.totalorder %s414, %s417
      %p426 = scmp.eq.s32.totalorder %s37, 1
      %p427 = por %p425, %p426
      %p428 = scmp.ne.s32.totalorder %s417, %s418
      %p429 = scmp.eq.s32.totalorder %s37, 0
      %p430 = por %p428, %p429
      %p431 = scmp.ne.s32.totalorder %s417, %s418
      %p432 = scmp.eq.s32.totalorder %s38, 1
      %p433 = por %p431, %p432
      %p435 = scmp.ne.s32.totalorder %s418, %s434
      %p436 = scmp.eq.s32.totalorder %s38, 0
      %p437 = por %p435, %p436
      %p438 = scmp.le.s32.totalorder 1, %s32
      %p439 = scmp.lt.s32.totalorder %s32, 3
      %p440 = pnand %p438, %p439
      %p441 = pneg %p440
      // Predicated region
      $region9: #{tpu_custom_call.1} parent=5 // pred_check
        _
      $region10: #{tpu_custom_call.1} parent=5 // pred_check_branch
        %443 = sbr.rel (%p440) target = $region12
      $region11: #{tpu_custom_call.1} parent=5 // pred_region
        %s444 = ssub.s32 %s32, 1
        // Predicated region
        $region13: #{tpu_custom_call.1} parent=11 // pred_check
          %p445 = pneg %p131
        $region14: #{tpu_custom_call.1} parent=11 // pred_check_branch
          %447 = sbr.rel (%p445) target = $region16
        $region15: #{tpu_custom_call.1} parent=11 // pred_region
          _
        $region16: #{tpu_custom_call.1} parent=11 // pred_fallthru
          _
        // Predicated region
        $region17: #{tpu_custom_call.1} parent=11 // pred_check
          %p448 = pneg %p152
        $region18: #{tpu_custom_call.1} parent=11 // pred_check_branch
          %450 = sbr.rel (%p448) target = $region20
        $region19: #{tpu_custom_call.1} parent=11 // pred_region
          %452 = vsyncadd [#allocation7], 0
          %s453 = sshll.u32 %s4, 4
          %s454 = int_to_ptr.hbm [resolvable:$true] %s453
          %s455 = sshll.u32 [#allocation6], 4
          %s456 = int_to_ptr.vmem [resolvable:$true] %s455
          %461 = dma.hbm_to_vmem [thread:$0]  %s454, 2048, %s456, [#allocation7], 256, 256, 16
        $region20: #{tpu_custom_call.1} parent=11 // pred_fallthru
          _
        // Predicated region
        $region21: #{tpu_custom_call.1} parent=11 // pred_check
          %p462 = pneg %p173
        $region22: #{tpu_custom_call.1} parent=11 // pred_check_branch
          %464 = sbr.rel (%p462) target = $region24
        $region23: #{tpu_custom_call.1} parent=11 // pred_region
          %466 = vsyncadd [#allocation7], 0
          %s467 = sshll.u32 %s5, 4
          %s468 = int_to_ptr.hbm [resolvable:$true] %s467
          %s469 = sshll.u32 [#allocation8], 4
          %s470 = int_to_ptr.vmem [resolvable:$true] %s469
          %475 = dma.hbm_to_vmem [thread:$0]  %s468, 24576, %s470, [#allocation7], 256, 256, 16
        $region24: #{tpu_custom_call.1} parent=11 // pred_fallthru
          _
        // Predicated region
        $region25: #{tpu_custom_call.1} parent=11 // pred_check
          %p476 = pneg %p194
        $region26: #{tpu_custom_call.1} parent=11 // pred_check_branch
          %478 = sbr.rel (%p476) target = $region28
        $region27: #{tpu_custom_call.1} parent=11 // pred_region
          _
        $region28: #{tpu_custom_call.1} parent=11 // pred_fallthru
          _
        // Predicated region
        $region29: #{tpu_custom_call.1} parent=11 // pred_check
          %p479 = pneg %p215
        $region30: #{tpu_custom_call.1} parent=11 // pred_check_branch
          %481 = sbr.rel (%p479) target = $region32
        $region31: #{tpu_custom_call.1} parent=11 // pred_region
          _
        $region32: #{tpu_custom_call.1} parent=11 // pred_fallthru
          _
        // Predicated region
        $region33: #{tpu_custom_call.1} parent=11 // pred_check
          %p482 = pneg %p236
        $region34: #{tpu_custom_call.1} parent=11 // pred_check_branch
          %484 = sbr.rel (%p482) target = $region36
        $region35: #{tpu_custom_call.1} parent=11 // pred_region
          %486 = vsyncadd [#allocation10], 0
          %s487 = sshll.u32 %s8, 4
          %s488 = int_to_ptr.hbm [resolvable:$true] %s487
          %s489 = sshll.u32 [#allocation9], 4
          %s490 = int_to_ptr.vmem [resolvable:$true] %s489
          %495 = dma.hbm_to_vmem [thread:$0]  %s488, 24576, %s490, [#allocation10], 256, 256, 16
        $region36: #{tpu_custom_call.1} parent=11 // pred_fallthru
          _
        // Predicated region
        $region37: #{tpu_custom_call.1} parent=11 // pred_check
          %p496 = pneg %p257
        $region38: #{tpu_custom_call.1} parent=11 // pred_check_branch
          %498 = sbr.rel (%p496) target = $region40
        $region39: #{tpu_custom_call.1} parent=11 // pred_region
          _
        $region40: #{tpu_custom_call.1} parent=11 // pred_fallthru
          _
        // Predicated region
        $region41: #{tpu_custom_call.1} parent=11 // pred_check
          %p499 = pneg %p278
        $region42: #{tpu_custom_call.1} parent=11 // pred_check_branch
          %501 = sbr.rel (%p499) target = $region44
        $region43: #{tpu_custom_call.1} parent=11 // pred_region
          _
        $region44: #{tpu_custom_call.1} parent=11 // pred_fallthru
          _
        // Predicated region
        $region45: #{tpu_custom_call.1} parent=11 // pred_check
          %p502 = pneg %p299
        $region46: #{tpu_custom_call.1} parent=11 // pred_check_branch
          %504 = sbr.rel (%p502) target = $region48
        $region47: #{tpu_custom_call.1} parent=11 // pred_region
          %506 = vsyncadd [#allocation10], 0
          %s507 = sshll.u32 %s11, 4
          %s508 = int_to_ptr.hbm [resolvable:$true] %s507
          %s509 = sshll.u32 [#allocation11], 4
          %s510 = int_to_ptr.vmem [resolvable:$true] %s509
          %515 = dma.hbm_to_vmem [thread:$0]  %s508, 12288, %s510, [#allocation10], 128, 128, 8
        $region48: #{tpu_custom_call.1} parent=11 // pred_fallthru
          _
        // Predicated region
        $region49: #{tpu_custom_call.1} parent=11 // pred_check
          %p516 = pneg %p320
        $region50: #{tpu_custom_call.1} parent=11 // pred_check_branch
          %518 = sbr.rel (%p516) target = $region52
        $region51: #{tpu_custom_call.1} parent=11 // pred_region
          _
        $region52: #{tpu_custom_call.1} parent=11 // pred_fallthru
          _
        // Predicated region
        $region53: #{tpu_custom_call.1} parent=11 // pred_check
          %p519 = pneg %p341
        $region54: #{tpu_custom_call.1} parent=11 // pred_check_branch
          %521 = sbr.rel (%p519) target = $region56
        $region55: #{tpu_custom_call.1} parent=11 // pred_region
          _
        $region56: #{tpu_custom_call.1} parent=11 // pred_fallthru
          _
        // Predicated region
        $region57: #{tpu_custom_call.1} parent=11 // pred_check
          %p522 = pneg %p362
        $region58: #{tpu_custom_call.1} parent=11 // pred_check_branch
          %524 = sbr.rel (%p522) target = $region60
        $region59: #{tpu_custom_call.1} parent=11 // pred_region
          %526 = vsyncadd [#allocation13], 0
          %s527 = sshll.u32 %s14, 4
          %s528 = int_to_ptr.hbm [resolvable:$true] %s527
          %s529 = sshll.u32 [#allocation12], 4
          %s530 = int_to_ptr.vmem [resolvable:$true] %s529
          %535 = dma.hbm_to_vmem [thread:$0]  %s528, 12288, %s530, [#allocation13], 256, 256, 16
        $region60: #{tpu_custom_call.1} parent=11 // pred_fallthru
          _
        // Predicated region
        $region61: #{tpu_custom_call.1} parent=11 // pred_check
          %p536 = pneg %p383
        $region62: #{tpu_custom_call.1} parent=11 // pred_check_branch
          %538 = sbr.rel (%p536) target = $region64
        $region63: #{tpu_custom_call.1} parent=11 // pred_region
          _
        $region64: #{tpu_custom_call.1} parent=11 // pred_fallthru
          _
        // Predicated region
        $region65: #{tpu_custom_call.1} parent=11 // pred_check
          %p539 = pneg %p404
        $region66: #{tpu_custom_call.1} parent=11 // pred_check_branch
          %541 = sbr.rel (%p539) target = $region68
        $region67: #{tpu_custom_call.1} parent=11 // pred_region
          _
        $region68: #{tpu_custom_call.1} parent=11 // pred_fallthru
          _
      $region12: #{tpu_custom_call.1} parent=5 // pred_fallthru
        _
      %p542 = scmp.lt.s32.totalorder %s32, 2
      // Predicated region
      $region69: #{tpu_custom_call.1} parent=5 // pred_check
        %p543 = pneg %p542
      $region70: #{tpu_custom_call.1} parent=5 // pred_check_branch
        %545 = sbr.rel (%p543) target = $region72
      $region71: #{tpu_custom_call.1} parent=5 // pred_region
        // Predicated region
        $region73: #{tpu_custom_call.1} parent=71 // pred_check
          %p546 = pneg %p52
        $region74: #{tpu_custom_call.1} parent=71 // pred_check_branch
          %548 = sbr.rel (%p546) target = $region76
        $region75: #{tpu_custom_call.1} parent=71 // pred_region
          %p549 = scmp.lt.s32.totalorder %s32, 1
          %s550 = scalar_select %p549, %s32, 1
          %s551 = smul.addr %s550, 2
          %s552 = smul.addr %s551, 8
          %s553 = scalar_lea.vmem %s0, %s552
        $region76: #{tpu_custom_call.1} parent=71 // pred_fallthru
          _
        // Predicated region
        $region77: #{tpu_custom_call.1} parent=71 // pred_check
          %p554 = pneg %p78
        $region78: #{tpu_custom_call.1} parent=71 // pred_check_branch
          %556 = sbr.rel (%p554) target = $region80
        $region79: #{tpu_custom_call.1} parent=71 // pred_region
          %s557 = sand.u32 %s68, 1
          %s558 = scalar_lea.sflag [#allocation4], %s557
          %s559 = sand.u32 %s68, 1
          %s560 = smul.addr %s559, 64
          %s561 = scalar_lea.vmem [#allocation3], %s560
          %563 = vsyncadd %s558, 0
          %s564 = smul.addr %s32, 8
          %s565 = smul.addr %s564, 8
          %s566 = scalar_lea.hbm %s1, %s565
          %s567 = sshll.u32 %s566, 4
          %s568 = int_to_ptr.hbm [resolvable:$true] %s567
          %s569 = sshll.u32 %s561, 4
          %s570 = int_to_ptr.vmem [resolvable:$true] %s569
          %575 = dma.hbm_to_vmem [thread:$0]  %s568, 1024, %s570, %s558, 256, 256, 16
        $region80: #{tpu_custom_call.1} parent=71 // pred_fallthru
          _
        // Predicated region
        $region81: #{tpu_custom_call.1} parent=71 // pred_check
          %p576 = pneg %p104
        $region82: #{tpu_custom_call.1} parent=71 // pred_check_branch
          %578 = sbr.rel (%p576) target = $region84
        $region83: #{tpu_custom_call.1} parent=71 // pred_region
          %p579 = scmp.lt.s32.totalorder %s32, 1
          %s580 = scalar_select %p579, %s32, 1
          %s581 = smul.addr %s580, 2
          %s582 = scalar_lea.vmem %s2, %s581
        $region84: #{tpu_custom_call.1} parent=71 // pred_fallthru
          _
      $region72: #{tpu_custom_call.1} parent=5 // pred_fallthru
        _
      %p583 = scmp.le.s32.totalorder 1, %s32
      %p584 = scmp.lt.s32.totalorder %s32, 3
      %p585 = pnand %p583, %p584
      %p586 = pneg %p585
      // Predicated region
      $region85: #{tpu_custom_call.1} parent=5 // pred_check
        _
      $region86: #{tpu_custom_call.1} parent=5 // pred_check_branch
        %588 = sbr.rel (%p585) target = $region88
      $region87: #{tpu_custom_call.1} parent=5 // pred_region
        %s589 = ssub.s32 %s32, 1
        %s590 = sand.u32 %s71, 1
        %s591 = scalar_lea.sflag [#allocation4], %s590
        %s592 = sand.u32 %s71, 1
        %s593 = smul.addr %s592, 64
        %s594 = scalar_lea.vmem [#allocation3], %s593
        // Predicated region
        $region89: #{tpu_custom_call.1} parent=87 // pred_check
          %p595 = pneg %p84
        $region90: #{tpu_custom_call.1} parent=87 // pred_check_branch
          %597 = sbr.rel (%p595) target = $region92
        $region91: #{tpu_custom_call.1} parent=87 // pred_region
          %599 = dma.done %s591, 1024
        $region92: #{tpu_custom_call.1} parent=87 // pred_fallthru
          _
        // Predicated region
        $region93: #{tpu_custom_call.1} parent=87 // pred_check
          %p600 = pneg %p152
        $region94: #{tpu_custom_call.1} parent=87 // pred_check_branch
          %602 = sbr.rel (%p600) target = $region96
        $region95: #{tpu_custom_call.1} parent=87 // pred_region
          %604 = dma.done [#allocation7], 2048
        $region96: #{tpu_custom_call.1} parent=87 // pred_fallthru
          _
        // Predicated region
        $region97: #{tpu_custom_call.1} parent=87 // pred_check
          %p605 = pneg %p173
        $region98: #{tpu_custom_call.1} parent=87 // pred_check_branch
          %607 = sbr.rel (%p605) target = $region100
        $region99: #{tpu_custom_call.1} parent=87 // pred_region
          %609 = dma.done [#allocation7], 24576
        $region100: #{tpu_custom_call.1} parent=87 // pred_fallthru
          _
        // Predicated region
        $region101: #{tpu_custom_call.1} parent=87 // pred_check
          %p610 = pneg %p236
        $region102: #{tpu_custom_call.1} parent=87 // pred_check_branch
          %612 = sbr.rel (%p610) target = $region104
        $region103: #{tpu_custom_call.1} parent=87 // pred_region
          %614 = dma.done [#allocation10], 24576
        $region104: #{tpu_custom_call.1} parent=87 // pred_fallthru
          _
        // Predicated region
        $region105: #{tpu_custom_call.1} parent=87 // pred_check
          %p615 = pneg %p299
        $region106: #{tpu_custom_call.1} parent=87 // pred_check_branch
          %617 = sbr.rel (%p615) target = $region108
        $region107: #{tpu_custom_call.1} parent=87 // pred_region
          %619 = dma.done [#allocation10], 12288
        $region108: #{tpu_custom_call.1} parent=87 // pred_fallthru
          _
        // Predicated region
        $region109: #{tpu_custom_call.1} parent=87 // pred_check
          %p620 = pneg %p362
        $region110: #{tpu_custom_call.1} parent=87 // pred_check_branch
          %622 = sbr.rel (%p620) target = $region112
        $region111: #{tpu_custom_call.1} parent=87 // pred_region
          %624 = dma.done [#allocation13], 12288
        $region112: #{tpu_custom_call.1} parent=87 // pred_fallthru
          _
        %p625 = scmp.lt.s32.totalorder %s37, 1
        %s626 = scalar_select %p625, %s37, 1
        %s627 = smul.addr %s626, 2
        %s628 = smul.addr %s627, 8
        %s629 = scalar_lea.vmem %s0, %s628
        %p630 = pneg %p58
        %p631 = pneg %p55
        %s632 = sand.u32 %s71, 1
        %s633 = scalar_lea.sflag [#allocation4], %s632
        %s634 = sand.u32 %s71, 1
        %s635 = smul.addr %s634, 64
        %s636 = scalar_lea.vmem [#allocation3], %s635
        %p637 = pneg %p84
        %p638 = pneg %p81
        %p639 = scmp.lt.s32.totalorder %s37, 1
        %s640 = scalar_select %p639, %s37, 1
        %s641 = smul.addr %s640, 2
        %s642 = scalar_lea.vmem %s2, %s641
        %p643 = pneg %p110
        %p644 = pneg %p107
        %p645 = pneg %p131
        %p646 = pneg %p128
        %p647 = pneg %p152
        %p648 = pneg %p149
        %p649 = pneg %p173
        %p650 = pneg %p170
        %p651 = pneg %p194
        %p652 = pneg %p191
        %p653 = pneg %p215
        %p654 = pneg %p212
        %p655 = pneg %p236
        %p656 = pneg %p233
        %p657 = pneg %p257
        %p658 = pneg %p254
        %p659 = pneg %p278
        %p660 = pneg %p275
        %p661 = pneg %p299
        %p662 = pneg %p296
        %p663 = pneg %p320
        %p664 = pneg %p317
        %p665 = pneg %p341
        %p666 = pneg %p338
        %p667 = pneg %p362
        %p668 = pneg %p359
        %p669 = pneg %p383
        %p670 = pneg %p380
        %p671 = pneg %p404
        %p672 = pneg %p401
        %p673 = pneg %p430
        %p674 = pneg %p427
        %s675 = sand.u32 %s417, 1
        %s676 = scalar_lea.sflag [#allocation5], %s675
        %s677 = sand.u32 %s417, 1
        %s678 = smul.addr %s677, 64
        %s679 = scalar_lea.vmem [#allocation14], %s678
        %p680 = scmp.lt.s32.totalorder %s37, 1
        %s681 = scalar_select %p680, %s37, 1
        %s682 = smul.addr %s681, 2
        %s683 = smul.addr %s682, 8
        %s684 = scalar_lea.vmem %s0, %s683
        %p685 = scmp.lt.s32.totalorder %s37, 1
        %s686 = scalar_select %p685, %s37, 1
        %s687 = smul.addr %s686, 2
        %s688 = scalar_lea.vmem %s2, %s687
        %v689 = vlaneseq
        %vm690 = vcmp.ge.s32.totalorder %v689, 0
        %vm691 = vcmp.lt.s32.totalorder %v689, 256
        %vm692 = vmand %vm690, %vm691
        %693 = vst.msk [vmem:[#allocation2] ss:$8 sm:$0x3] %vm692, 0.0
        %694 = vst.msk [vmem:[#allocation2] ss:$8 sm:$0x0] %vm692, 0.0
        %s695 = scalar_lea.vmem [#allocation2], 65
        %696 = vst.msk [vmem:[%s695] ss:$8 sm:$0x3] %vm692, 0.0
        %697 = vst.msk [vmem:[%s695] ss:$8 sm:$0x0] %vm692, 0.0
        %v698 = vld [vmem:[%s3] sm:$0xff]
        %v699 = vld [vmem:[%s3 + $0x8] sm:$0xff]
        %v700 = vld [vmem:[%s3 + $0x10] sm:$0xff]
        %v701 = vld [vmem:[%s3 + $0x18] sm:$0xff]
        %v702 = vld [vmem:[%s684] sm:$0xff]
        %v703 = vld [vmem:[%s684 + $0x8] sm:$0xff]
        %vm704 = vcmask 130048
        %v706 = vsel %vm704, %v698, 0
        %v709 = vsel %vm704, %v699, 0
        %v712 = vsel %vm704, %v700, 0
        %v715 = vsel %vm704, %v701, 0
        %717 = vmatpush.msra.mxu0 0.0
        %718 = vmatpush.msra.mxu0 0.0
        %719 = vmatpush.msra.mxu0 0.0
        %720 = vmatpush.msra.mxu0 0.0
        %721 = vmatpush.msra.mxu0 0.0
        %722 = vmatpush.msra.mxu0 0.0
        %723 = vmatpush.msra.mxu0 0.0
        %724 = vmatpush.msra.mxu0 0.0
        %725 = vmatpush.msra.mxu0 0.0
        %726 = vmatpush.msra.mxu0 0.0
        %727 = vmatpush.msra.mxu0 0.0
        %728 = vmatpush.msra.mxu0 0.0
        %729 = vmatpush.msra.mxu0 0.0
        %730 = vmatpush.msra.mxu0 0.0
        %731 = vmatpush.msra.mxu0 %v703
        %732 = vmatpush.msra.mxu0 %v702
        %733 = vmatmul.f32.gmra.mxu0 %v706
        %v734 = vpop.f32.mrf.mxu0
        %v735 = vadd.f32 0.0, %v734
        %736 = vmatmul.f32.gmra.mxu0 %v709
        %v737 = vpop.f32.mrf.mxu0
        %v738 = vadd.f32 0.0, %v737
        %739 = vmatmul.f32.gmra.mxu0 %v712
        %v740 = vpop.f32.mrf.mxu0
        %v741 = vadd.f32 0.0, %v740
        %742 = vmatmul.f32.gmra.mxu0 %v715
        %v743 = vpop.f32.mrf.mxu0
        %v744 = vadd.f32 0.0, %v743
        %745 = vdwg.mxu0
        %v746 = vld [vmem:[#allocation6] sm:$0xff]
        %v747 = vld [vmem:[#allocation6 + $0x8] sm:$0xff]
        %v748 = vld [vmem:[#allocation6 + $0x10] sm:$0xff]
        %v749 = vld [vmem:[#allocation6 + $0x18] sm:$0xff]
        %v750 = vld [vmem:[#allocation6 + $0x20] sm:$0xff]
        %v751 = vld [vmem:[#allocation6 + $0x28] sm:$0xff]
        %v752 = vld [vmem:[#allocation6 + $0x30] sm:$0xff]
        %v753 = vld [vmem:[#allocation6 + $0x38] sm:$0xff]
        %v754 = vld [vmem:[#allocation6 + $0x40] sm:$0xff]
        %v755 = vld [vmem:[#allocation6 + $0x48] sm:$0xff]
        %v756 = vld [vmem:[#allocation6 + $0x50] sm:$0xff]
        %v757 = vld [vmem:[#allocation6 + $0x58] sm:$0xff]
        %v758 = vld [vmem:[#allocation6 + $0x60] sm:$0xff]
        %v759 = vld [vmem:[#allocation6 + $0x68] sm:$0xff]
        %v760 = vld [vmem:[#allocation6 + $0x70] sm:$0xff]
        %v761 = vld [vmem:[#allocation6 + $0x78] sm:$0xff]
        %vm762 = vcmask 523264
        %v764 = vsel %vm762, %v735, 0
        %v767 = vsel %vm762, %v738, 0
        %v770 = vsel %vm762, %v741, 0
        %v773 = vsel %vm762, %v744, 0
        %775 = vmatpush.msra.mxu0 0.0
        %776 = vmatpush.msra.mxu0 0.0
        %777 = vmatpush.msra.mxu0 0.0
        %778 = vmatpush.msra.mxu0 0.0
        %779 = vmatpush.msra.mxu0 0.0
        %780 = vmatpush.msra.mxu0 0.0
        %781 = vmatpush.msra.mxu0 0.0
        %782 = vmatpush.msra.mxu0 0.0
        %783 = vmatpush.msra.mxu0 %v760
        %784 = vmatpush.msra.mxu0 %v758
        %785 = vmatpush.msra.mxu0 %v756
        %786 = vmatpush.msra.mxu0 %v754
        %787 = vmatpush.msra.mxu0 %v752
        %788 = vmatpush.msra.mxu0 %v750
        %789 = vmatpush.msra.mxu0 %v748
        %790 = vmatpush.msra.mxu0 %v746
        %791 = vmatmul.f32.gmra.mxu0 %v764
        %v792 = vpop.f32.mrf.mxu0
        %v793 = vadd.f32 0.0, %v792
        %794 = vmatmul.f32.gmra.mxu0 %v767
        %v795 = vpop.f32.mrf.mxu0
        %v796 = vadd.f32 0.0, %v795
        %797 = vmatmul.f32.gmra.mxu0 %v770
        %v798 = vpop.f32.mrf.mxu0
        %v799 = vadd.f32 0.0, %v798
        %800 = vmatmul.f32.gmra.mxu0 %v773
        %v801 = vpop.f32.mrf.mxu0
        %v802 = vadd.f32 0.0, %v801
        %803 = vdwg.mxu0
        %804 = vmatpush.msra.mxu0 0.0
        %805 = vmatpush.msra.mxu0 0.0
        %806 = vmatpush.msra.mxu0 0.0
        %807 = vmatpush.msra.mxu0 0.0
        %808 = vmatpush.msra.mxu0 0.0
        %809 = vmatpush.msra.mxu0 0.0
        %810 = vmatpush.msra.mxu0 0.0
        %811 = vmatpush.msra.mxu0 0.0
        %812 = vmatpush.msra.mxu0 %v761
        %813 = vmatpush.msra.mxu0 %v759
        %814 = vmatpush.msra.mxu0 %v757
        %815 = vmatpush.msra.mxu0 %v755
        %816 = vmatpush.msra.mxu0 %v753
        %817 = vmatpush.msra.mxu0 %v751
        %818 = vmatpush.msra.mxu0 %v749
        %819 = vmatpush.msra.mxu0 %v747
        %820 = vmatmul.f32.gmra.mxu0 %v764
        %v821 = vpop.f32.mrf.mxu0
        %v822 = vadd.f32 0.0, %v821
        %823 = vmatmul.f32.gmra.mxu0 %v767
        %v824 = vpop.f32.mrf.mxu0
        %v825 = vadd.f32 0.0, %v824
        %826 = vmatmul.f32.gmra.mxu0 %v770
        %v827 = vpop.f32.mrf.mxu0
        %v828 = vadd.f32 0.0, %v827
        %829 = vmatmul.f32.gmra.mxu0 %v773
        %v830 = vpop.f32.mrf.mxu0
        %v831 = vadd.f32 0.0, %v830
        %832 = vdwg.mxu0
        %v833 = vld [vmem:[%s594] sm:$0xff]
        %v834 = vld [vmem:[%s594 + $0x8] sm:$0xff]
        %v835 = vld [vmem:[%s594 + $0x10] sm:$0xff]
        %v836 = vld [vmem:[%s594 + $0x18] sm:$0xff]
        %v837 = vld [vmem:[%s594 + $0x20] sm:$0xff]
        %v838 = vld [vmem:[%s594 + $0x28] sm:$0xff]
        %v839 = vld [vmem:[%s594 + $0x30] sm:$0xff]
        %v840 = vld [vmem:[%s594 + $0x38] sm:$0xff]
        %v841 = vadd.f32 %v833, %v793
        %v842 = vadd.f32 %v834, %v822
        %v843 = vadd.f32 %v835, %v796
        %v844 = vadd.f32 %v836, %v825
        %v845 = vadd.f32 %v837, %v799
        %v846 = vadd.f32 %v838, %v828
        %v847 = vadd.f32 %v839, %v802
        %v848 = vadd.f32 %v840, %v831
        %vm857 = vcmask 1040384
        %v858 = vrot.slane %v841, 7
        %v859 = vrot.slane %v842, 7
        %v860 = vrot.slane %v843, 7
        %v861 = vsel %vm857, %v858, %v860
        %v862 = vrot.slane %v844, 7
        %v863 = vsel %vm857, %v859, %v862
        %v864 = vrot.slane %v845, 7
        %v865 = vsel %vm857, %v860, %v864
        %v866 = vrot.slane %v846, 7
        %v867 = vsel %vm857, %v862, %v866
        %v868 = vrot.slane %v847, 7
        %v869 = vsel %vm857, %v864, %v868
        %v870 = vrot.slane %v848, 7
        %v871 = vsel %vm857, %v866, %v870
        %882 = vst [vmem:[#allocation2] sm:$0xfe] %v858
        %883 = vst [vmem:[#allocation2 + $0x8] sm:$0xfe] %v859
        %884 = vst [vmem:[#allocation2 + $0x10] sm:$0xff] %v861
        %885 = vst [vmem:[#allocation2 + $0x18] sm:$0xff] %v863
        %886 = vst [vmem:[#allocation2 + $0x20] sm:$0xff] %v865
        %887 = vst [vmem:[#allocation2 + $0x28] sm:$0xff] %v867
        %888 = vst [vmem:[#allocation2 + $0x30] sm:$0xff] %v869
        %889 = vst [vmem:[#allocation2 + $0x38] sm:$0xff] %v871
        %890 = vst [vmem:[#allocation2 + $0x40] sm:$0x1] %v868
        %891 = vst [vmem:[#allocation2 + $0x48] sm:$0x1] %v870
        %v892 = vld [vmem:[#allocation2] sm:$0xff]
        %v893 = vld [vmem:[#allocation2 + $0x8] sm:$0xff]
        %v894 = vld [vmem:[#allocation2 + $0x10] sm:$0xff]
        %v895 = vld [vmem:[#allocation2 + $0x18] sm:$0xff]
        %v896 = vld [vmem:[#allocation2 + $0x20] sm:$0xff]
        %v897 = vld [vmem:[#allocation2 + $0x28] sm:$0xff]
        %v898 = vld [vmem:[#allocation2 + $0x30] sm:$0xff]
        %v899 = vld [vmem:[#allocation2 + $0x38] sm:$0xff]
        %v900 = vld [vmem:[#allocation8] sm:$0xff]
        %v901 = vld [vmem:[#allocation8 + $0x8] sm:$0xff]
        %v902 = vld [vmem:[#allocation8 + $0x10] sm:$0xff]
        %v903 = vld [vmem:[#allocation8 + $0x18] sm:$0xff]
        %v904 = vld [vmem:[#allocation8 + $0x20] sm:$0xff]
        %v905 = vld [vmem:[#allocation8 + $0x28] sm:$0xff]
        %v906 = vld [vmem:[#allocation8 + $0x30] sm:$0xff]
        %v907 = vld [vmem:[#allocation8 + $0x38] sm:$0xff]
        %v908 = vld [vmem:[#allocation8 + $0x40] sm:$0xff]
        %v909 = vld [vmem:[#allocation8 + $0x48] sm:$0xff]
        %v910 = vld [vmem:[#allocation8 + $0x50] sm:$0xff]
        %v911 = vld [vmem:[#allocation8 + $0x58] sm:$0xff]
        %v912 = vld [vmem:[#allocation8 + $0x60] sm:$0xff]
        %v913 = vld [vmem:[#allocation8 + $0x68] sm:$0xff]
        %v914 = vld [vmem:[#allocation8 + $0x70] sm:$0xff]
        %v915 = vld [vmem:[#allocation8 + $0x78] sm:$0xff]
        %v916 = vld [vmem:[#allocation8 + $0x80] sm:$0xff]
        %v917 = vld [vmem:[#allocation8 + $0x88] sm:$0xff]
        %v918 = vld [vmem:[#allocation8 + $0x90] sm:$0xff]
        %v919 = vld [vmem:[#allocation8 + $0x98] sm:$0xff]
        %v920 = vld [vmem:[#allocation8 + $0xa0] sm:$0xff]
        %v921 = vld [vmem:[#allocation8 + $0xa8] sm:$0xff]
        %v922 = vld [vmem:[#allocation8 + $0xb0] sm:$0xff]
        %v923 = vld [vmem:[#allocation8 + $0xb8] sm:$0xff]
        %v924 = vld [vmem:[#allocation8 + $0xc0] sm:$0xff]
        %v925 = vld [vmem:[#allocation8 + $0xc8] sm:$0xff]
        %v926 = vld [vmem:[#allocation8 + $0xd0] sm:$0xff]
        %v927 = vld [vmem:[#allocation8 + $0xd8] sm:$0xff]
        %v928 = vld [vmem:[#allocation8 + $0xe0] sm:$0xff]
        %v929 = vld [vmem:[#allocation8 + $0xe8] sm:$0xff]
        %v930 = vld [vmem:[#allocation8 + $0xf0] sm:$0xff]
        %v931 = vld [vmem:[#allocation8 + $0xf8] sm:$0xff]
        %v932 = vld [vmem:[#allocation8 + $0x100] sm:$0xff]
        %v933 = vld [vmem:[#allocation8 + $0x108] sm:$0xff]
        %v934 = vld [vmem:[#allocation8 + $0x110] sm:$0xff]
        %v935 = vld [vmem:[#allocation8 + $0x118] sm:$0xff]
        %v936 = vld [vmem:[#allocation8 + $0x120] sm:$0xff]
        %v937 = vld [vmem:[#allocation8 + $0x128] sm:$0xff]
        %v938 = vld [vmem:[#allocation8 + $0x130] sm:$0xff]
        %v939 = vld [vmem:[#allocation8 + $0x138] sm:$0xff]
        %v940 = vld [vmem:[#allocation8 + $0x140] sm:$0xff]
        %v941 = vld [vmem:[#allocation8 + $0x148] sm:$0xff]
        %v942 = vld [vmem:[#allocation8 + $0x150] sm:$0xff]
        %v943 = vld [vmem:[#allocation8 + $0x158] sm:$0xff]
        %v944 = vld [vmem:[#allocation8 + $0x160] sm:$0xff]
        %v945 = vld [vmem:[#allocation8 + $0x168] sm:$0xff]
        %v946 = vld [vmem:[#allocation8 + $0x170] sm:$0xff]
        %v947 = vld [vmem:[#allocation8 + $0x178] sm:$0xff]
        %v948 = vld [vmem:[#allocation8 + $0x180] sm:$0xff]
        %v949 = vld [vmem:[#allocation8 + $0x188] sm:$0xff]
        %v950 = vld [vmem:[#allocation8 + $0x190] sm:$0xff]
        %v951 = vld [vmem:[#allocation8 + $0x198] sm:$0xff]
        %v952 = vld [vmem:[#allocation8 + $0x1a0] sm:$0xff]
        %v953 = vld [vmem:[#allocation8 + $0x1a8] sm:$0xff]
        %v954 = vld [vmem:[#allocation8 + $0x1b0] sm:$0xff]
        %v955 = vld [vmem:[#allocation8 + $0x1b8] sm:$0xff]
        %v956 = vld [vmem:[#allocation8 + $0x1c0] sm:$0xff]
        %v957 = vld [vmem:[#allocation8 + $0x1c8] sm:$0xff]
        %v958 = vld [vmem:[#allocation8 + $0x1d0] sm:$0xff]
        %v959 = vld [vmem:[#allocation8 + $0x1d8] sm:$0xff]
        %v960 = vld [vmem:[#allocation8 + $0x1e0] sm:$0xff]
        %v961 = vld [vmem:[#allocation8 + $0x1e8] sm:$0xff]
        %v962 = vld [vmem:[#allocation8 + $0x1f0] sm:$0xff]
        %v963 = vld [vmem:[#allocation8 + $0x1f8] sm:$0xff]
        %v964 = vld [vmem:[#allocation2] sm:$0xfe]
        %v965 = vld [vmem:[#allocation2 + $0x8] sm:$0xfe]
        %v966 = vld [vmem:[#allocation2 + $0x40] sm:$0x1]
        %v967 = vld [vmem:[#allocation2 + $0x48] sm:$0x1]
        %s968 = scalar_lea.vmem [#allocation8], 512
        %v969 = vld [vmem:[%s968] sm:$0xff]
        %v970 = vld [vmem:[%s968 + $0x8] sm:$0xff]
        %v971 = vld [vmem:[%s968 + $0x10] sm:$0xff]
        %v972 = vld [vmem:[%s968 + $0x18] sm:$0xff]
        %v973 = vld [vmem:[%s968 + $0x20] sm:$0xff]
        %v974 = vld [vmem:[%s968 + $0x28] sm:$0xff]
        %v975 = vld [vmem:[%s968 + $0x30] sm:$0xff]
        %v976 = vld [vmem:[%s968 + $0x38] sm:$0xff]
        %v977 = vld [vmem:[%s968 + $0x40] sm:$0xff]
        %v978 = vld [vmem:[%s968 + $0x48] sm:$0xff]
        %v979 = vld [vmem:[%s968 + $0x50] sm:$0xff]
        %v980 = vld [vmem:[%s968 + $0x58] sm:$0xff]
        %v981 = vld [vmem:[%s968 + $0x60] sm:$0xff]
        %v982 = vld [vmem:[%s968 + $0x68] sm:$0xff]
        %v983 = vld [vmem:[%s968 + $0x70] sm:$0xff]
        %v984 = vld [vmem:[%s968 + $0x78] sm:$0xff]
        %v985 = vld [vmem:[%s968 + $0x80] sm:$0xff]
        %v986 = vld [vmem:[%s968 + $0x88] sm:$0xff]
        %v987 = vld [vmem:[%s968 + $0x90] sm:$0xff]
        %v988 = vld [vmem:[%s968 + $0x98] sm:$0xff]
        %v989 = vld [vmem:[%s968 + $0xa0] sm:$0xff]
        %v990 = vld [vmem:[%s968 + $0xa8] sm:$0xff]
        %v991 = vld [vmem:[%s968 + $0xb0] sm:$0xff]
        %v992 = vld [vmem:[%s968 + $0xb8] sm:$0xff]
        %v993 = vld [vmem:[%s968 + $0xc0] sm:$0xff]
        %v994 = vld [vmem:[%s968 + $0xc8] sm:$0xff]
        %v995 = vld [vmem:[%s968 + $0xd0] sm:$0xff]
        %v996 = vld [vmem:[%s968 + $0xd8] sm:$0xff]
        %v997 = vld [vmem:[%s968 + $0xe0] sm:$0xff]
        %v998 = vld [vmem:[%s968 + $0xe8] sm:$0xff]
        %v999 = vld [vmem:[%s968 + $0xf0] sm:$0xff]
        %v1000 = vld [vmem:[%s968 + $0xf8] sm:$0xff]
        %v1001 = vld [vmem:[%s968 + $0x100] sm:$0xff]
        %v1002 = vld [vmem:[%s968 + $0x108] sm:$0xff]
        %v1003 = vld [vmem:[%s968 + $0x110] sm:$0xff]
        %v1004 = vld [vmem:[%s968 + $0x118] sm:$0xff]
        %v1005 = vld [vmem:[%s968 + $0x120] sm:$0xff]
        %v1006 = vld [vmem:[%s968 + $0x128] sm:$0xff]
        %v1007 = vld [vmem:[%s968 + $0x130] sm:$0xff]
        %v1008 = vld [vmem:[%s968 + $0x138] sm:$0xff]
        %v1009 = vld [vmem:[%s968 + $0x140] sm:$0xff]
        %v1010 = vld [vmem:[%s968 + $0x148] sm:$0xff]
        %v1011 = vld [vmem:[%s968 + $0x150] sm:$0xff]
        %v1012 = vld [vmem:[%s968 + $0x158] sm:$0xff]
        %v1013 = vld [vmem:[%s968 + $0x160] sm:$0xff]
        %v1014 = vld [vmem:[%s968 + $0x168] sm:$0xff]
        %v1015 = vld [vmem:[%s968 + $0x170] sm:$0xff]
        %v1016 = vld [vmem:[%s968 + $0x178] sm:$0xff]
        %v1017 = vld [vmem:[%s968 + $0x180] sm:$0xff]
        %v1018 = vld [vmem:[%s968 + $0x188] sm:$0xff]
        %v1019 = vld [vmem:[%s968 + $0x190] sm:$0xff]
        %v1020 = vld [vmem:[%s968 + $0x198] sm:$0xff]
        %v1021 = vld [vmem:[%s968 + $0x1a0] sm:$0xff]
        %v1022 = vld [vmem:[%s968 + $0x1a8] sm:$0xff]
        %v1023 = vld [vmem:[%s968 + $0x1b0] sm:$0xff]
        %v1024 = vld [vmem:[%s968 + $0x1b8] sm:$0xff]
        %v1025 = vld [vmem:[%s968 + $0x1c0] sm:$0xff]
        %v1026 = vld [vmem:[%s968 + $0x1c8] sm:$0xff]
        %v1027 = vld [vmem:[%s968 + $0x1d0] sm:$0xff]
        %v1028 = vld [vmem:[%s968 + $0x1d8] sm:$0xff]
        %v1029 = vld [vmem:[%s968 + $0x1e0] sm:$0xff]
        %v1030 = vld [vmem:[%s968 + $0x1e8] sm:$0xff]
        %v1031 = vld [vmem:[%s968 + $0x1f0] sm:$0xff]
        %v1032 = vld [vmem:[%s968 + $0x1f8] sm:$0xff]
        %vm1043 = vcmask 1046528
        %v1044 = vrot.slane %v964, 1
        %v1045 = vrot.slane %v894, 1
        %v1046 = vsel %vm1043, %v1044, %v1045
        %v1047 = vrot.slane %v965, 1
        %v1048 = vrot.slane %v895, 1
        %v1049 = vsel %vm1043, %v1047, %v1048
        %v1050 = vrot.slane %v896, 1
        %v1051 = vsel %vm1043, %v1045, %v1050
        %v1052 = vrot.slane %v897, 1
        %v1053 = vsel %vm1043, %v1048, %v1052
        %v1054 = vrot.slane %v898, 1
        %v1055 = vsel %vm1043, %v1050, %v1054
        %v1056 = vrot.slane %v899, 1
        %v1057 = vsel %vm1043, %v1052, %v1056
        %v1058 = vrot.slane %v966, 1
        %v1059 = vsel %vm1043, %v1054, %v1058
        %v1060 = vrot.slane %v967, 1
        %v1061 = vsel %vm1043, %v1056, %v1060
        %1070 = vmatpush.msra.mxu0 %v999
        %1071 = vmatpush.msra.mxu0 %v997
        %1072 = vmatpush.msra.mxu0 %v995
        %1073 = vmatpush.msra.mxu0 %v993
        %1074 = vmatpush.msra.mxu0 %v991
        %1075 = vmatpush.msra.mxu0 %v989
        %1076 = vmatpush.msra.mxu0 %v987
        %1077 = vmatpush.msra.mxu0 %v985
        %1078 = vmatpush.msra.mxu0 %v983
        %1079 = vmatpush.msra.mxu0 %v981
        %1080 = vmatpush.msra.mxu0 %v979
        %1081 = vmatpush.msra.mxu0 %v977
        %1082 = vmatpush.msra.mxu0 %v975
        %1083 = vmatpush.msra.mxu0 %v973
        %1084 = vmatpush.msra.mxu0 %v971
        %1085 = vmatpush.msra.mxu0 %v969
        %1086 = vmatmul.f32.gmra.mxu0 %v1046
        %v1087 = vpop.f32.mrf.mxu0
        %v1088 = vadd.f32 0.0, %v1087
        %1089 = vmatmul.f32.gmra.mxu0 %v1051
        %v1090 = vpop.f32.mrf.mxu0
        %v1091 = vadd.f32 0.0, %v1090
        %1092 = vmatmul.f32.gmra.mxu0 %v1055
        %v1093 = vpop.f32.mrf.mxu0
        %v1094 = vadd.f32 0.0, %v1093
        %1095 = vmatmul.f32.gmra.mxu0 %v1059
        %v1096 = vpop.f32.mrf.mxu0
        %v1097 = vadd.f32 0.0, %v1096
        %1098 = vdwg.mxu0
        %1099 = vmatpush.msra.mxu0 %v1031
        %1100 = vmatpush.msra.mxu0 %v1029
        %1101 = vmatpush.msra.mxu0 %v1027
        %1102 = vmatpush.msra.mxu0 %v1025
        %1103 = vmatpush.msra.mxu0 %v1023
        %1104 = vmatpush.msra.mxu0 %v1021
        %1105 = vmatpush.msra.mxu0 %v1019
        %1106 = vmatpush.msra.mxu0 %v1017
        %1107 = vmatpush.msra.mxu0 %v1015
        %1108 = vmatpush.msra.mxu0 %v1013
        %1109 = vmatpush.msra.mxu0 %v1011
        %1110 = vmatpush.msra.mxu0 %v1009
        %1111 = vmatpush.msra.mxu0 %v1007
        %1112 = vmatpush.msra.mxu0 %v1005
        %1113 = vmatpush.msra.mxu0 %v1003
        %1114 = vmatpush.msra.mxu0 %v1001
        %1115 = vmatmul.f32.gmra.mxu0 %v1049
        %v1116 = vpop.f32.mrf.mxu0
        %v1117 = vadd.f32 %v1088, %v1116
        %1118 = vmatmul.f32.gmra.mxu0 %v1053
        %v1119 = vpop.f32.mrf.mxu0
        %v1120 = vadd.f32 %v1091, %v1119
        %1121 = vmatmul.f32.gmra.mxu0 %v1057
        %v1122 = vpop.f32.mrf.mxu0
        %v1123 = vadd.f32 %v1094, %v1122
        %1124 = vmatmul.f32.gmra.mxu0 %v1061
        %v1125 = vpop.f32.mrf.mxu0
        %v1126 = vadd.f32 %v1097, %v1125
        %1127 = vdwg.mxu0
        %1128 = vmatpush.msra.mxu0 %v1000
        %1129 = vmatpush.msra.mxu0 %v998
        %1130 = vmatpush.msra.mxu0 %v996
        %1131 = vmatpush.msra.mxu0 %v994
        %1132 = vmatpush.msra.mxu0 %v992
        %1133 = vmatpush.msra.mxu0 %v990
        %1134 = vmatpush.msra.mxu0 %v988
        %1135 = vmatpush.msra.mxu0 %v986
        %1136 = vmatpush.msra.mxu0 %v984
        %1137 = vmatpush.msra.mxu0 %v982
        %1138 = vmatpush.msra.mxu0 %v980
        %1139 = vmatpush.msra.mxu0 %v978
        %1140 = vmatpush.msra.mxu0 %v976
        %1141 = vmatpush.msra.mxu0 %v974
        %1142 = vmatpush.msra.mxu0 %v972
        %1143 = vmatpush.msra.mxu0 %v970
        %1144 = vmatmul.f32.gmra.mxu0 %v1046
        %v1145 = vpop.f32.mrf.mxu0
        %v1146 = vadd.f32 0.0, %v1145
        %1147 = vmatmul.f32.gmra.mxu0 %v1051
        %v1148 = vpop.f32.mrf.mxu0
        %v1149 = vadd.f32 0.0, %v1148
        %1150 = vmatmul.f32.gmra.mxu0 %v1055
        %v1151 = vpop.f32.mrf.mxu0
        %v1152 = vadd.f32 0.0, %v1151
        %1153 = vmatmul.f32.gmra.mxu0 %v1059
        %v1154 = vpop.f32.mrf.mxu0
        %v1155 = vadd.f32 0.0, %v1154
        %1156 = vdwg.mxu0
        %1157 = vmatpush.msra.mxu0 %v1032
        %1158 = vmatpush.msra.mxu0 %v1030
        %1159 = vmatpush.msra.mxu0 %v1028
        %1160 = vmatpush.msra.mxu0 %v1026
        %1161 = vmatpush.msra.mxu0 %v1024
        %1162 = vmatpush.msra.mxu0 %v1022
        %1163 = vmatpush.msra.mxu0 %v1020
        %1164 = vmatpush.msra.mxu0 %v1018
        %1165 = vmatpush.msra.mxu0 %v1016
        %1166 = vmatpush.msra.mxu0 %v1014
        %1167 = vmatpush.msra.mxu0 %v1012
        %1168 = vmatpush.msra.mxu0 %v1010
        %1169 = vmatpush.msra.mxu0 %v1008
        %1170 = vmatpush.msra.mxu0 %v1006
        %1171 = vmatpush.msra.mxu0 %v1004
        %1172 = vmatpush.msra.mxu0 %v1002
        %1173 = vmatmul.f32.gmra.mxu0 %v1049
        %v1174 = vpop.f32.mrf.mxu0
        %v1175 = vadd.f32 %v1146, %v1174
        %1176 = vmatmul.f32.gmra.mxu0 %v1053
        %v1177 = vpop.f32.mrf.mxu0
        %v1178 = vadd.f32 %v1149, %v1177
        %1179 = vmatmul.f32.gmra.mxu0 %v1057
        %v1180 = vpop.f32.mrf.mxu0
        %v1181 = vadd.f32 %v1152, %v1180
        %1182 = vmatmul.f32.gmra.mxu0 %v1061
        %v1183 = vpop.f32.mrf.mxu0
        %v1184 = vadd.f32 %v1155, %v1183
        %1185 = vdwg.mxu0
        %1186 = vmatpush.msra.mxu0 %v930
        %1187 = vmatpush.msra.mxu0 %v928
        %1188 = vmatpush.msra.mxu0 %v926
        %1189 = vmatpush.msra.mxu0 %v924
        %1190 = vmatpush.msra.mxu0 %v922
        %1191 = vmatpush.msra.mxu0 %v920
        %1192 = vmatpush.msra.mxu0 %v918
        %1193 = vmatpush.msra.mxu0 %v916
        %1194 = vmatpush.msra.mxu0 %v914
        %1195 = vmatpush.msra.mxu0 %v912
        %1196 = vmatpush.msra.mxu0 %v910
        %1197 = vmatpush.msra.mxu0 %v908
        %1198 = vmatpush.msra.mxu0 %v906
        %1199 = vmatpush.msra.mxu0 %v904
        %1200 = vmatpush.msra.mxu0 %v902
        %1201 = vmatpush.msra.mxu0 %v900
        %1202 = vmatmul.f32.gmra.mxu0 %v892
        %v1203 = vpop.f32.mrf.mxu0
        %v1204 = vadd.f32 %v1117, %v1203
        %1205 = vmatmul.f32.gmra.mxu0 %v894
        %v1206 = vpop.f32.mrf.mxu0
        %v1207 = vadd.f32 %v1120, %v1206
        %1208 = vmatmul.f32.gmra.mxu0 %v896
        %v1209 = vpop.f32.mrf.mxu0
        %v1210 = vadd.f32 %v1123, %v1209
        %1211 = vmatmul.f32.gmra.mxu0 %v898
        %v1212 = vpop.f32.mrf.mxu0
        %v1213 = vadd.f32 %v1126, %v1212
        %1214 = vdwg.mxu0
        %1215 = vmatpush.msra.mxu0 %v962
        %1216 = vmatpush.msra.mxu0 %v960
        %1217 = vmatpush.msra.mxu0 %v958
        %1218 = vmatpush.msra.mxu0 %v956
        %1219 = vmatpush.msra.mxu0 %v954
        %1220 = vmatpush.msra.mxu0 %v952
        %1221 = vmatpush.msra.mxu0 %v950
        %1222 = vmatpush.msra.mxu0 %v948
        %1223 = vmatpush.msra.mxu0 %v946
        %1224 = vmatpush.msra.mxu0 %v944
        %1225 = vmatpush.msra.mxu0 %v942
        %1226 = vmatpush.msra.mxu0 %v940
        %1227 = vmatpush.msra.mxu0 %v938
        %1228 = vmatpush.msra.mxu0 %v936
        %1229 = vmatpush.msra.mxu0 %v934
        %1230 = vmatpush.msra.mxu0 %v932
        %1231 = vmatmul.f32.gmra.mxu0 %v893
        %v1232 = vpop.f32.mrf.mxu0
        %v1233 = vadd.f32 %v1204, %v1232
        %1234 = vmatmul.f32.gmra.mxu0 %v895
        %v1235 = vpop.f32.mrf.mxu0
        %v1236 = vadd.f32 %v1207, %v1235
        %1237 = vmatmul.f32.gmra.mxu0 %v897
        %v1238 = vpop.f32.mrf.mxu0
        %v1239 = vadd.f32 %v1210, %v1238
        %1240 = vmatmul.f32.gmra.mxu0 %v899
        %v1241 = vpop.f32.mrf.mxu0
        %v1242 = vadd.f32 %v1213, %v1241
        %1243 = vdwg.mxu0
        %1244 = vmatpush.msra.mxu0 %v931
        %1245 = vmatpush.msra.mxu0 %v929
        %1246 = vmatpush.msra.mxu0 %v927
        %1247 = vmatpush.msra.mxu0 %v925
        %1248 = vmatpush.msra.mxu0 %v923
        %1249 = vmatpush.msra.mxu0 %v921
        %1250 = vmatpush.msra.mxu0 %v919
        %1251 = vmatpush.msra.mxu0 %v917
        %1252 = vmatpush.msra.mxu0 %v915
        %1253 = vmatpush.msra.mxu0 %v913
        %1254 = vmatpush.msra.mxu0 %v911
        %1255 = vmatpush.msra.mxu0 %v909
        %1256 = vmatpush.msra.mxu0 %v907
        %1257 = vmatpush.msra.mxu0 %v905
        %1258 = vmatpush.msra.mxu0 %v903
        %1259 = vmatpush.msra.mxu0 %v901
        %1260 = vmatmul.f32.gmra.mxu0 %v892
        %v1261 = vpop.f32.mrf.mxu0
        %v1262 = vadd.f32 %v1175, %v1261
        %1263 = vmatmul.f32.gmra.mxu0 %v894
        %v1264 = vpop.f32.mrf.mxu0
        %v1265 = vadd.f32 %v1178, %v1264
        %1266 = vmatmul.f32.gmra.mxu0 %v896
        %v1267 = vpop.f32.mrf.mxu0
        %v1268 = vadd.f32 %v1181, %v1267
        %1269 = vmatmul.f32.gmra.mxu0 %v898
        %v1270 = vpop.f32.mrf.mxu0
        %v1271 = vadd.f32 %v1184, %v1270
        %1272 = vdwg.mxu0
        %1273 = vmatpush.msra.mxu0 %v963
        %1274 = vmatpush.msra.mxu0 %v961
        %1275 = vmatpush.msra.mxu0 %v959
        %1276 = vmatpush.msra.mxu0 %v957
        %1277 = vmatpush.msra.mxu0 %v955
        %1278 = vmatpush.msra.mxu0 %v953
        %1279 = vmatpush.msra.mxu0 %v951
        %1280 = vmatpush.msra.mxu0 %v949
        %1281 = vmatpush.msra.mxu0 %v947
        %1282 = vmatpush.msra.mxu0 %v945
        %1283 = vmatpush.msra.mxu0 %v943
        %1284 = vmatpush.msra.mxu0 %v941
        %1285 = vmatpush.msra.mxu0 %v939
        %1286 = vmatpush.msra.mxu0 %v937
        %1287 = vmatpush.msra.mxu0 %v935
        %1288 = vmatpush.msra.mxu0 %v933
        %1289 = vmatmul.f32.gmra.mxu0 %v893
        %v1290 = vpop.f32.mrf.mxu0
        %v1291 = vadd.f32 %v1262, %v1290
        %1292 = vmatmul.f32.gmra.mxu0 %v895
        %v1293 = vpop.f32.mrf.mxu0
        %v1294 = vadd.f32 %v1265, %v1293
        %1295 = vmatmul.f32.gmra.mxu0 %v897
        %v1296 = vpop.f32.mrf.mxu0
        %v1297 = vadd.f32 %v1268, %v1296
        %1298 = vmatmul.f32.gmra.mxu0 %v899
        %v1299 = vpop.f32.mrf.mxu0
        %v1300 = vadd.f32 %v1271, %v1299
        %1301 = vdwg.mxu0
        %v1302 = vld [vmem:[#allocation2] sm:$0xfc]
        %v1303 = vld [vmem:[#allocation2 + $0x8] sm:$0xfc]
        %v1304 = vld [vmem:[#allocation2 + $0x40] sm:$0x3]
        %v1305 = vld [vmem:[#allocation2 + $0x48] sm:$0x3]
        %s1306 = scalar_lea.vmem [#allocation8], 1024
        %v1307 = vld [vmem:[%s1306] sm:$0xff]
        %v1308 = vld [vmem:[%s1306 + $0x8] sm:$0xff]
        %v1309 = vld [vmem:[%s1306 + $0x10] sm:$0xff]
        %v1310 = vld [vmem:[%s1306 + $0x18] sm:$0xff]
        %v1311 = vld [vmem:[%s1306 + $0x20] sm:$0xff]
        %v1312 = vld [vmem:[%s1306 + $0x28] sm:$0xff]
        %v1313 = vld [vmem:[%s1306 + $0x30] sm:$0xff]
        %v1314 = vld [vmem:[%s1306 + $0x38] sm:$0xff]
        %v1315 = vld [vmem:[%s1306 + $0x40] sm:$0xff]
        %v1316 = vld [vmem:[%s1306 + $0x48] sm:$0xff]
        %v1317 = vld [vmem:[%s1306 + $0x50] sm:$0xff]
        %v1318 = vld [vmem:[%s1306 + $0x58] sm:$0xff]
        %v1319 = vld [vmem:[%s1306 + $0x60] sm:$0xff]
        %v1320 = vld [vmem:[%s1306 + $0x68] sm:$0xff]
        %v1321 = vld [vmem:[%s1306 + $0x70] sm:$0xff]
        %v1322 = vld [vmem:[%s1306 + $0x78] sm:$0xff]
        %v1323 = vld [vmem:[%s1306 + $0x80] sm:$0xff]
        %v1324 = vld [vmem:[%s1306 + $0x88] sm:$0xff]
        %v1325 = vld [vmem:[%s1306 + $0x90] sm:$0xff]
        %v1326 = vld [vmem:[%s1306 + $0x98] sm:$0xff]
        %v1327 = vld [vmem:[%s1306 + $0xa0] sm:$0xff]
        %v1328 = vld [vmem:[%s1306 + $0xa8] sm:$0xff]
        %v1329 = vld [vmem:[%s1306 + $0xb0] sm:$0xff]
        %v1330 = vld [vmem:[%s1306 + $0xb8] sm:$0xff]
        %v1331 = vld [vmem:[%s1306 + $0xc0] sm:$0xff]
        %v1332 = vld [vmem:[%s1306 + $0xc8] sm:$0xff]
        %v1333 = vld [vmem:[%s1306 + $0xd0] sm:$0xff]
        %v1334 = vld [vmem:[%s1306 + $0xd8] sm:$0xff]
        %v1335 = vld [vmem:[%s1306 + $0xe0] sm:$0xff]
        %v1336 = vld [vmem:[%s1306 + $0xe8] sm:$0xff]
        %v1337 = vld [vmem:[%s1306 + $0xf0] sm:$0xff]
        %v1338 = vld [vmem:[%s1306 + $0xf8] sm:$0xff]
        %v1339 = vld [vmem:[%s1306 + $0x100] sm:$0xff]
        %v1340 = vld [vmem:[%s1306 + $0x108] sm:$0xff]
        %v1341 = vld [vmem:[%s1306 + $0x110] sm:$0xff]
        %v1342 = vld [vmem:[%s1306 + $0x118] sm:$0xff]
        %v1343 = vld [vmem:[%s1306 + $0x120] sm:$0xff]
        %v1344 = vld [vmem:[%s1306 + $0x128] sm:$0xff]
        %v1345 = vld [vmem:[%s1306 + $0x130] sm:$0xff]
        %v1346 = vld [vmem:[%s1306 + $0x138] sm:$0xff]
        %v1347 = vld [vmem:[%s1306 + $0x140] sm:$0xff]
        %v1348 = vld [vmem:[%s1306 + $0x148] sm:$0xff]
        %v1349 = vld [vmem:[%s1306 + $0x150] sm:$0xff]
        %v1350 = vld [vmem:[%s1306 + $0x158] sm:$0xff]
        %v1351 = vld [vmem:[%s1306 + $0x160] sm:$0xff]
        %v1352 = vld [vmem:[%s1306 + $0x168] sm:$0xff]
        %v1353 = vld [vmem:[%s1306 + $0x170] sm:$0xff]
        %v1354 = vld [vmem:[%s1306 + $0x178] sm:$0xff]
        %v1355 = vld [vmem:[%s1306 + $0x180] sm:$0xff]
        %v1356 = vld [vmem:[%s1306 + $0x188] sm:$0xff]
        %v1357 = vld [vmem:[%s1306 + $0x190] sm:$0xff]
        %v1358 = vld [vmem:[%s1306 + $0x198] sm:$0xff]
        %v1359 = vld [vmem:[%s1306 + $0x1a0] sm:$0xff]
        %v1360 = vld [vmem:[%s1306 + $0x1a8] sm:$0xff]
        %v1361 = vld [vmem:[%s1306 + $0x1b0] sm:$0xff]
        %v1362 = vld [vmem:[%s1306 + $0x1b8] sm:$0xff]
        %v1363 = vld [vmem:[%s1306 + $0x1c0] sm:$0xff]
        %v1364 = vld [vmem:[%s1306 + $0x1c8] sm:$0xff]
        %v1365 = vld [vmem:[%s1306 + $0x1d0] sm:$0xff]
        %v1366 = vld [vmem:[%s1306 + $0x1d8] sm:$0xff]
        %v1367 = vld [vmem:[%s1306 + $0x1e0] sm:$0xff]
        %v1368 = vld [vmem:[%s1306 + $0x1e8] sm:$0xff]
        %v1369 = vld [vmem:[%s1306 + $0x1f0] sm:$0xff]
        %v1370 = vld [vmem:[%s1306 + $0x1f8] sm:$0xff]
        %vm1375 = vcmask 1045504
        %v1376 = vrot.slane %v1302, 2
        %v1377 = vrot.slane %v894, 2
        %v1378 = vsel %vm1375, %v1376, %v1377
        %v1379 = vrot.slane %v1303, 2
        %v1380 = vrot.slane %v895, 2
        %v1381 = vsel %vm1375, %v1379, %v1380
        %v1382 = vrot.slane %v896, 2
        %v1383 = vsel %vm1375, %v1377, %v1382
        %v1384 = vrot.slane %v897, 2
        %v1385 = vsel %vm1375, %v1380, %v1384
        %v1386 = vrot.slane %v898, 2
        %v1387 = vsel %vm1375, %v1382, %v1386
        %v1388 = vrot.slane %v899, 2
        %v1389 = vsel %vm1375, %v1384, %v1388
        %v1390 = vrot.slane %v1304, 2
        %v1391 = vsel %vm1375, %v1386, %v1390
        %v1392 = vrot.slane %v1305, 2
        %v1393 = vsel %vm1375, %v1388, %v1392
        %1402 = vmatpush.msra.mxu0 %v1337
        %1403 = vmatpush.msra.mxu0 %v1335
        %1404 = vmatpush.msra.mxu0 %v1333
        %1405 = vmatpush.msra.mxu0 %v1331
        %1406 = vmatpush.msra.mxu0 %v1329
        %1407 = vmatpush.msra.mxu0 %v1327
        %1408 = vmatpush.msra.mxu0 %v1325
        %1409 = vmatpush.msra.mxu0 %v1323
        %1410 = vmatpush.msra.mxu0 %v1321
        %1411 = vmatpush.msra.mxu0 %v1319
        %1412 = vmatpush.msra.mxu0 %v1317
        %1413 = vmatpush.msra.mxu0 %v1315
        %1414 = vmatpush.msra.mxu0 %v1313
        %1415 = vmatpush.msra.mxu0 %v1311
        %1416 = vmatpush.msra.mxu0 %v1309
        %1417 = vmatpush.msra.mxu0 %v1307
        %1418 = vmatmul.f32.gmra.mxu0 %v1378
        %v1419 = vpop.f32.mrf.mxu0
        %v1420 = vadd.f32 0.0, %v1419
        %1421 = vmatmul.f32.gmra.mxu0 %v1383
        %v1422 = vpop.f32.mrf.mxu0
        %v1423 = vadd.f32 0.0, %v1422
        %1424 = vmatmul.f32.gmra.mxu0 %v1387
        %v1425 = vpop.f32.mrf.mxu0
        %v1426 = vadd.f32 0.0, %v1425
        %1427 = vmatmul.f32.gmra.mxu0 %v1391
        %v1428 = vpop.f32.mrf.mxu0
        %v1429 = vadd.f32 0.0, %v1428
        %1430 = vdwg.mxu0
        %1431 = vmatpush.msra.mxu0 %v1369
        %1432 = vmatpush.msra.mxu0 %v1367
        %1433 = vmatpush.msra.mxu0 %v1365
        %1434 = vmatpush.msra.mxu0 %v1363
        %1435 = vmatpush.msra.mxu0 %v1361
        %1436 = vmatpush.msra.mxu0 %v1359
        %1437 = vmatpush.msra.mxu0 %v1357
        %1438 = vmatpush.msra.mxu0 %v1355
        %1439 = vmatpush.msra.mxu0 %v1353
        %1440 = vmatpush.msra.mxu0 %v1351
        %1441 = vmatpush.msra.mxu0 %v1349
        %1442 = vmatpush.msra.mxu0 %v1347
        %1443 = vmatpush.msra.mxu0 %v1345
        %1444 = vmatpush.msra.mxu0 %v1343
        %1445 = vmatpush.msra.mxu0 %v1341
        %1446 = vmatpush.msra.mxu0 %v1339
        %1447 = vmatmul.f32.gmra.mxu0 %v1381
        %v1448 = vpop.f32.mrf.mxu0
        %v1449 = vadd.f32 %v1420, %v1448
        %1450 = vmatmul.f32.gmra.mxu0 %v1385
        %v1451 = vpop.f32.mrf.mxu0
        %v1452 = vadd.f32 %v1423, %v1451
        %1453 = vmatmul.f32.gmra.mxu0 %v1389
        %v1454 = vpop.f32.mrf.mxu0
        %v1455 = vadd.f32 %v1426, %v1454
        %1456 = vmatmul.f32.gmra.mxu0 %v1393
        %v1457 = vpop.f32.mrf.mxu0
        %v1458 = vadd.f32 %v1429, %v1457
        %1459 = vdwg.mxu0
        %1460 = vmatpush.msra.mxu0 %v1338
        %1461 = vmatpush.msra.mxu0 %v1336
        %1462 = vmatpush.msra.mxu0 %v1334
        %1463 = vmatpush.msra.mxu0 %v1332
        %1464 = vmatpush.msra.mxu0 %v1330
        %1465 = vmatpush.msra.mxu0 %v1328
        %1466 = vmatpush.msra.mxu0 %v1326
        %1467 = vmatpush.msra.mxu0 %v1324
        %1468 = vmatpush.msra.mxu0 %v1322
        %1469 = vmatpush.msra.mxu0 %v1320
        %1470 = vmatpush.msra.mxu0 %v1318
        %1471 = vmatpush.msra.mxu0 %v1316
        %1472 = vmatpush.msra.mxu0 %v1314
        %1473 = vmatpush.msra.mxu0 %v1312
        %1474 = vmatpush.msra.mxu0 %v1310
        %1475 = vmatpush.msra.mxu0 %v1308
        %1476 = vmatmul.f32.gmra.mxu0 %v1378
        %v1477 = vpop.f32.mrf.mxu0
        %v1478 = vadd.f32 0.0, %v1477
        %1479 = vmatmul.f32.gmra.mxu0 %v1383
        %v1480 = vpop.f32.mrf.mxu0
        %v1481 = vadd.f32 0.0, %v1480
        %1482 = vmatmul.f32.gmra.mxu0 %v1387
        %v1483 = vpop.f32.mrf.mxu0
        %v1484 = vadd.f32 0.0, %v1483
        %1485 = vmatmul.f32.gmra.mxu0 %v1391
        %v1486 = vpop.f32.mrf.mxu0
        %v1487 = vadd.f32 0.0, %v1486
        %1488 = vdwg.mxu0
        %1489 = vmatpush.msra.mxu0 %v1370
        %1490 = vmatpush.msra.mxu0 %v1368
        %1491 = vmatpush.msra.mxu0 %v1366
        %1492 = vmatpush.msra.mxu0 %v1364
        %1493 = vmatpush.msra.mxu0 %v1362
        %1494 = vmatpush.msra.mxu0 %v1360
        %1495 = vmatpush.msra.mxu0 %v1358
        %1496 = vmatpush.msra.mxu0 %v1356
        %1497 = vmatpush.msra.mxu0 %v1354
        %1498 = vmatpush.msra.mxu0 %v1352
        %1499 = vmatpush.msra.mxu0 %v1350
        %1500 = vmatpush.msra.mxu0 %v1348
        %1501 = vmatpush.msra.mxu0 %v1346
        %1502 = vmatpush.msra.mxu0 %v1344
        %1503 = vmatpush.msra.mxu0 %v1342
        %1504 = vmatpush.msra.mxu0 %v1340
        %1505 = vmatmul.f32.gmra.mxu0 %v1381
        %v1506 = vpop.f32.mrf.mxu0
        %v1507 = vadd.f32 %v1478, %v1506
        %1508 = vmatmul.f32.gmra.mxu0 %v1385
        %v1509 = vpop.f32.mrf.mxu0
        %v1510 = vadd.f32 %v1481, %v1509
        %1511 = vmatmul.f32.gmra.mxu0 %v1389
        %v1512 = vpop.f32.mrf.mxu0
        %v1513 = vadd.f32 %v1484, %v1512
        %1514 = vmatmul.f32.gmra.mxu0 %v1393
        %v1515 = vpop.f32.mrf.mxu0
        %v1516 = vadd.f32 %v1487, %v1515
        %1517 = vdwg.mxu0
        %v1518 = vadd.f32 %v1233, %v1449
        %v1519 = vadd.f32 %v1291, %v1507
        %v1520 = vadd.f32 %v1236, %v1452
        %v1521 = vadd.f32 %v1294, %v1510
        %v1522 = vadd.f32 %v1239, %v1455
        %v1523 = vadd.f32 %v1297, %v1513
        %v1524 = vadd.f32 %v1242, %v1458
        %v1525 = vadd.f32 %v1300, %v1516
        %v1526 = vadd.f32 %v1518, %v1520
        %v1527 = vadd.f32 %v1526, %v1522
        %v1528 = vadd.f32 %v1527, %v1524
        %v1529 = vrot.slane %v1528, 4
        %v1530 = vadd.f32 %v1528, %v1529
        %v1531 = vrot.slane %v1530, 2
        %v1532 = vadd.f32 %v1530, %v1531
        %v1533 = vrot.slane %v1532, 1
        %v1534 = vadd.f32 %v1532, %v1533
        %v1535 = vadd.f32 %v1519, %v1521
        %v1536 = vadd.f32 %v1535, %v1523
        %v1537 = vadd.f32 %v1536, %v1525
        %v1538 = vrot.slane %v1537, 4
        %v1539 = vadd.f32 %v1537, %v1538
        %v1540 = vrot.slane %v1539, 2
        %v1541 = vadd.f32 %v1539, %v1540
        %v1542 = vrot.slane %v1541, 1
        %v1543 = vadd.f32 %v1541, %v1542
        %v1544 = vmul.f32 %v1518, %v1518
        %v1545 = vmul.f32 %v1519, %v1519
        %v1546 = vmul.f32 %v1520, %v1520
        %v1547 = vmul.f32 %v1521, %v1521
        %v1548 = vmul.f32 %v1522, %v1522
        %v1549 = vmul.f32 %v1523, %v1523
        %v1550 = vmul.f32 %v1524, %v1524
        %v1551 = vmul.f32 %v1525, %v1525
        %v1552 = vadd.f32 %v1544, %v1546
        %v1553 = vadd.f32 %v1552, %v1548
        %v1554 = vadd.f32 %v1553, %v1550
        %v1555 = vrot.slane %v1554, 4
        %v1556 = vadd.f32 %v1554, %v1555
        %v1557 = vrot.slane %v1556, 2
        %v1558 = vadd.f32 %v1556, %v1557
        %v1559 = vrot.slane %v1558, 1
        %v1560 = vadd.f32 %v1558, %v1559
        %v1561 = vadd.f32 %v1545, %v1547
        %v1562 = vadd.f32 %v1561, %v1549
        %v1563 = vadd.f32 %v1562, %v1551
        %v1564 = vrot.slane %v1563, 4
        %v1565 = vadd.f32 %v1563, %v1564
        %v1566 = vrot.slane %v1565, 2
        %v1567 = vadd.f32 %v1565, %v1566
        %v1568 = vrot.slane %v1567, 1
        %v1569 = vadd.f32 %v1567, %v1568
        %v1570 = vadd.f32 %v1534, %v1543
        %1571 = vadd.xlane.f32.xlu0 %v1570
        %v1572 = vpop.xlane.xlu0 %1571
        %v1573 = vrcp.pop 8192.0
        %v1574 = vmul.f32 8192.0, %v1573
        %v1575 = vsub.f32 1.0, %v1574
        %v1576 = vmul.f32 %v1573, %v1575
        %v1577 = vadd.f32 %v1573, %v1576
        %vm1578 = vweird.f32 %v1573
        %v1579 = vsel %vm1578, %v1573, %v1577
        %v1580 = vmul.f32 %v1572, %v1579
        %v1581 = vadd.f32 %v1560, %v1569
        %1582 = vadd.xlane.f32.xlu0 %v1581
        %v1583 = vpop.xlane.xlu0 %1582
        %v1584 = vmul.f32 %v1583, %v1579
        %v1585 = vmul.f32 %v1580, %v1580
        %v1586 = vsub.f32 %v1584, %v1585
        %v1587 = vadd.f32 %v1586, 1e-05
        %v1588 = vrsqrt.pop %v1587
        %v1589 = vmul.f32 %v1588, %v1587
        %v1590 = vmul.f32 %v1589, %v1588
        %v1591 = vmul.f32 0.5, %v1590
        %v1592 = vsub.f32 1.5, %v1591
        %v1593 = vmul.f32 %v1588, %v1592
        %vm1594 = vweird.f32 %v1587
        %vm1595 = vweird.f32 %v1588
        %vm1596 = vmor %vm1594, %vm1595
        %v1597 = vsel %vm1596, %v1588, %v1593
        %v1598 = vld [vmem:[%s6] sm:$0x3]
        %v1599 = vmul.f32 %v1598, %v1597
        %v1600 = vld [vmem:[%s7] sm:$0x3]
        %v1601 = vmul.f32 %v1580, %v1599
        %v1602 = vsub.f32 %v1600, %v1601
        %v1604 = vperm.slane %v1599, 0
        %v1605 = vperm.slane %v1599, 1
        %v1608 = vmul.f32 %v1518, %v1604
        %v1609 = vmul.f32 %v1519, %v1605
        %v1610 = vmul.f32 %v1520, %v1604
        %v1611 = vmul.f32 %v1521, %v1605
        %v1612 = vmul.f32 %v1522, %v1604
        %v1613 = vmul.f32 %v1523, %v1605
        %v1614 = vmul.f32 %v1524, %v1604
        %v1615 = vmul.f32 %v1525, %v1605
        %v1617 = vperm.slane %v1602, 0
        %v1618 = vperm.slane %v1602, 1
        %v1621 = vadd.f32 %v1608, %v1617
        %v1622 = vadd.f32 %v1609, %v1618
        %v1623 = vadd.f32 %v1610, %v1617
        %v1624 = vadd.f32 %v1611, %v1618
        %v1625 = vadd.f32 %v1612, %v1617
        %v1626 = vadd.f32 %v1613, %v1618
        %v1627 = vadd.f32 %v1614, %v1617
        %v1628 = vadd.f32 %v1615, %v1618
        %v1629 = vmul.f32 %v1621, 0.5
        %v1630 = vmul.f32 %v1622, 0.5
        %v1631 = vmul.f32 %v1623, 0.5
        %v1632 = vmul.f32 %v1624, 0.5
        %v1633 = vmul.f32 %v1625, 0.5
        %v1634 = vmul.f32 %v1626, 0.5
        %v1635 = vmul.f32 %v1627, 0.5
        %v1636 = vmul.f32 %v1628, 0.5
        %v1637 = vmul.f32 %v1621, 0.70710677
        %v1638 = vmul.f32 %v1622, 0.70710677
        %v1639 = vmul.f32 %v1623, 0.70710677
        %v1640 = vmul.f32 %v1624, 0.70710677
        %v1641 = vmul.f32 %v1625, 0.70710677
        %v1642 = vmul.f32 %v1626, 0.70710677
        %v1643 = vmul.f32 %v1627, 0.70710677
        %v1644 = vmul.f32 %v1628, 0.70710677
        %vm1645 = vcmp.ge.f32.partialorder %v1637, 0.0
        %vm1646 = vcmp.ge.f32.partialorder %v1638, 0.0
        %vm1647 = vcmp.ge.f32.partialorder %v1639, 0.0
        %vm1648 = vcmp.ge.f32.partialorder %v1640, 0.0
        %vm1649 = vcmp.ge.f32.partialorder %v1641, 0.0
        %vm1650 = vcmp.ge.f32.partialorder %v1642, 0.0
        %vm1651 = vcmp.ge.f32.partialorder %v1643, 0.0
        %vm1652 = vcmp.ge.f32.partialorder %v1644, 0.0
        %v1653 = vsel %vm1645, 1.0, -1.0
        %v1654 = vsel %vm1646, 1.0, -1.0
        %v1655 = vsel %vm1647, 1.0, -1.0
        %v1656 = vsel %vm1648, 1.0, -1.0
        %v1657 = vsel %vm1649, 1.0, -1.0
        %v1658 = vsel %vm1650, 1.0, -1.0
        %v1659 = vsel %vm1651, 1.0, -1.0
        %v1660 = vsel %vm1652, 1.0, -1.0
        %v1661 = vand.u32 2147483647, %v1637
        %v1662 = vand.u32 2147483647, %v1638
        %v1663 = vand.u32 2147483647, %v1639
        %v1664 = vand.u32 2147483647, %v1640
        %v1665 = vand.u32 2147483647, %v1641
        %v1666 = vand.u32 2147483647, %v1642
        %v1667 = vand.u32 2147483647, %v1643
        %v1668 = vand.u32 2147483647, %v1644
        %v1669 = vmul.f32 %v1661, 0.3275911
        %v1670 = vmul.f32 %v1662, 0.3275911
        %v1671 = vmul.f32 %v1663, 0.3275911
        %v1672 = vmul.f32 %v1664, 0.3275911
        %v1673 = vmul.f32 %v1665, 0.3275911
        %v1674 = vmul.f32 %v1666, 0.3275911
        %v1675 = vmul.f32 %v1667, 0.3275911
        %v1676 = vmul.f32 %v1668, 0.3275911
        %v1677 = vadd.f32 %v1669, 1.0
        %v1678 = vadd.f32 %v1670, 1.0
        %v1679 = vadd.f32 %v1671, 1.0
        %v1680 = vadd.f32 %v1672, 1.0
        %v1681 = vadd.f32 %v1673, 1.0
        %v1682 = vadd.f32 %v1674, 1.0
        %v1683 = vadd.f32 %v1675, 1.0
        %v1684 = vadd.f32 %v1676, 1.0
        %v1685 = vrcp.pop %v1677
        %v1686 = vmul.f32 %v1677, %v1685
        %v1687 = vsub.f32 1.0, %v1686
        %v1688 = vmul.f32 %v1685, %v1687
        %v1689 = vadd.f32 %v1685, %v1688
        %vm1690 = vweird.f32 %v1677
        %vm1691 = vweird.f32 %v1685
        %vm1692 = vmor %vm1690, %vm1691
        %v1693 = vsel %vm1692, %v1685, %v1689
        %v1694 = vand.u32 2147483647, %v1677
        %vm1695 = vcmp.eq.f32.partialorder %v1694, 8.507059e+37
        %v1696 = vand.u32 %v1677, 2147483648
        %v1697 = vor.u32 1.1754944e-38, %v1696
        %v1698 = vsel %vm1695, %v1697, %v1693
        %v1699 = vmul.f32 1.0, %v1698
        %v1700 = vrcp.pop %v1678
        %v1701 = vmul.f32 %v1678, %v1700
        %v1702 = vsub.f32 1.0, %v1701
        %v1703 = vmul.f32 %v1700, %v1702
        %v1704 = vadd.f32 %v1700, %v1703
        %vm1705 = vweird.f32 %v1678
        %vm1706 = vweird.f32 %v1700
        %vm1707 = vmor %vm1705, %vm1706
        %v1708 = vsel %vm1707, %v1700, %v1704
        %v1709 = vand.u32 2147483647, %v1678
        %vm1710 = vcmp.eq.f32.partialorder %v1709, 8.507059e+37
        %v1711 = vand.u32 %v1678, 2147483648
        %v1712 = vor.u32 1.1754944e-38, %v1711
        %v1713 = vsel %vm1710, %v1712, %v1708
        %v1714 = vmul.f32 1.0, %v1713
        %v1715 = vrcp.pop %v1679
        %v1716 = vmul.f32 %v1679, %v1715
        %v1717 = vsub.f32 1.0, %v1716
        %v1718 = vmul.f32 %v1715, %v1717
        %v1719 = vadd.f32 %v1715, %v1718
        %vm1720 = vweird.f32 %v1679
        %vm1721 = vweird.f32 %v1715
        %vm1722 = vmor %vm1720, %vm1721
        %v1723 = vsel %vm1722, %v1715, %v1719
        %v1724 = vand.u32 2147483647, %v1679
        %vm1725 = vcmp.eq.f32.partialorder %v1724, 8.507059e+37
        %v1726 = vand.u32 %v1679, 2147483648
        %v1727 = vor.u32 1.1754944e-38, %v1726
        %v1728 = vsel %vm1725, %v1727, %v1723
        %v1729 = vmul.f32 1.0, %v1728
        %v1730 = vrcp.pop %v1680
        %v1731 = vmul.f32 %v1680, %v1730
        %v1732 = vsub.f32 1.0, %v1731
        %v1733 = vmul.f32 %v1730, %v1732
        %v1734 = vadd.f32 %v1730, %v1733
        %vm1735 = vweird.f32 %v1680
        %vm1736 = vweird.f32 %v1730
        %vm1737 = vmor %vm1735, %vm1736
        %v1738 = vsel %vm1737, %v1730, %v1734
        %v1739 = vand.u32 2147483647, %v1680
        %vm1740 = vcmp.eq.f32.partialorder %v1739, 8.507059e+37
        %v1741 = vand.u32 %v1680, 2147483648
        %v1742 = vor.u32 1.1754944e-38, %v1741
        %v1743 = vsel %vm1740, %v1742, %v1738
        %v1744 = vmul.f32 1.0, %v1743
        %v1745 = vrcp.pop %v1681
        %v1746 = vmul.f32 %v1681, %v1745
        %v1747 = vsub.f32 1.0, %v1746
        %v1748 = vmul.f32 %v1745, %v1747
        %v1749 = vadd.f32 %v1745, %v1748
        %vm1750 = vweird.f32 %v1681
        %vm1751 = vweird.f32 %v1745
        %vm1752 = vmor %vm1750, %vm1751
        %v1753 = vsel %vm1752, %v1745, %v1749
        %v1754 = vand.u32 2147483647, %v1681
        %vm1755 = vcmp.eq.f32.partialorder %v1754, 8.507059e+37
        %v1756 = vand.u32 %v1681, 2147483648
        %v1757 = vor.u32 1.1754944e-38, %v1756
        %v1758 = vsel %vm1755, %v1757, %v1753
        %v1759 = vmul.f32 1.0, %v1758
        %v1760 = vrcp.pop %v1682
        %v1761 = vmul.f32 %v1682, %v1760
        %v1762 = vsub.f32 1.0, %v1761
        %v1763 = vmul.f32 %v1760, %v1762
        %v1764 = vadd.f32 %v1760, %v1763
        %vm1765 = vweird.f32 %v1682
        %vm1766 = vweird.f32 %v1760
        %vm1767 = vmor %vm1765, %vm1766
        %v1768 = vsel %vm1767, %v1760, %v1764
        %v1769 = vand.u32 2147483647, %v1682
        %vm1770 = vcmp.eq.f32.partialorder %v1769, 8.507059e+37
        %v1771 = vand.u32 %v1682, 2147483648
        %v1772 = vor.u32 1.1754944e-38, %v1771
        %v1773 = vsel %vm1770, %v1772, %v1768
        %v1774 = vmul.f32 1.0, %v1773
        %v1775 = vrcp.pop %v1683
        %v1776 = vmul.f32 %v1683, %v1775
        %v1777 = vsub.f32 1.0, %v1776
        %v1778 = vmul.f32 %v1775, %v1777
        %v1779 = vadd.f32 %v1775, %v1778
        %vm1780 = vweird.f32 %v1683
        %vm1781 = vweird.f32 %v1775
        %vm1782 = vmor %vm1780, %vm1781
        %v1783 = vsel %vm1782, %v1775, %v1779
        %v1784 = vand.u32 2147483647, %v1683
        %vm1785 = vcmp.eq.f32.partialorder %v1784, 8.507059e+37
        %v1786 = vand.u32 %v1683, 2147483648
        %v1787 = vor.u32 1.1754944e-38, %v1786
        %v1788 = vsel %vm1785, %v1787, %v1783
        %v1789 = vmul.f32 1.0, %v1788
        %v1790 = vrcp.pop %v1684
        %v1791 = vmul.f32 %v1684, %v1790
        %v1792 = vsub.f32 1.0, %v1791
        %v1793 = vmul.f32 %v1790, %v1792
        %v1794 = vadd.f32 %v1790, %v1793
        %vm1795 = vweird.f32 %v1684
        %vm1796 = vweird.f32 %v1790
        %vm1797 = vmor %vm1795, %vm1796
        %v1798 = vsel %vm1797, %v1790, %v1794
        %v1799 = vand.u32 2147483647, %v1684
        %vm1800 = vcmp.eq.f32.partialorder %v1799, 8.507059e+37
        %v1801 = vand.u32 %v1684, 2147483648
        %v1802 = vor.u32 1.1754944e-38, %v1801
        %v1803 = vsel %vm1800, %v1802, %v1798
        %v1804 = vmul.f32 1.0, %v1803
        %v1805 = vmul.f32 %v1699, 1.0614054
        %v1806 = vmul.f32 %v1714, 1.0614054
        %v1807 = vmul.f32 %v1729, 1.0614054
        %v1808 = vmul.f32 %v1744, 1.0614054
        %v1809 = vmul.f32 %v1759, 1.0614054
        %v1810 = vmul.f32 %v1774, 1.0614054
        %v1811 = vmul.f32 %v1789, 1.0614054
        %v1812 = vmul.f32 %v1804, 1.0614054
        %v1813 = vadd.f32 %v1805, -1.4531521
        %v1814 = vadd.f32 %v1806, -1.4531521
        %v1815 = vadd.f32 %v1807, -1.4531521
        %v1816 = vadd.f32 %v1808, -1.4531521
        %v1817 = vadd.f32 %v1809, -1.4531521
        %v1818 = vadd.f32 %v1810, -1.4531521
        %v1819 = vadd.f32 %v1811, -1.4531521
        %v1820 = vadd.f32 %v1812, -1.4531521
        %v1821 = vmul.f32 %v1813, %v1699
        %v1822 = vmul.f32 %v1814, %v1714
        %v1823 = vmul.f32 %v1815, %v1729
        %v1824 = vmul.f32 %v1816, %v1744
        %v1825 = vmul.f32 %v1817, %v1759
        %v1826 = vmul.f32 %v1818, %v1774
        %v1827 = vmul.f32 %v1819, %v1789
        %v1828 = vmul.f32 %v1820, %v1804
        %v1829 = vadd.f32 %v1821, 1.4214138
        %v1830 = vadd.f32 %v1822, 1.4214138
        %v1831 = vadd.f32 %v1823, 1.4214138
        %v1832 = vadd.f32 %v1824, 1.4214138
        %v1833 = vadd.f32 %v1825, 1.4214138
        %v1834 = vadd.f32 %v1826, 1.4214138
        %v1835 = vadd.f32 %v1827, 1.4214138
        %v1836 = vadd.f32 %v1828, 1.4214138
        %v1837 = vmul.f32 %v1829, %v1699
        %v1838 = vmul.f32 %v1830, %v1714
        %v1839 = vmul.f32 %v1831, %v1729
        %v1840 = vmul.f32 %v1832, %v1744
        %v1841 = vmul.f32 %v1833, %v1759
        %v1842 = vmul.f32 %v1834, %v1774
        %v1843 = vmul.f32 %v1835, %v1789
        %v1844 = vmul.f32 %v1836, %v1804
        %v1845 = vadd.f32 %v1837, -0.28449672
        %v1846 = vadd.f32 %v1838, -0.28449672
        %v1847 = vadd.f32 %v1839, -0.28449672
        %v1848 = vadd.f32 %v1840, -0.28449672
        %v1849 = vadd.f32 %v1841, -0.28449672
        %v1850 = vadd.f32 %v1842, -0.28449672
        %v1851 = vadd.f32 %v1843, -0.28449672
        %v1852 = vadd.f32 %v1844, -0.28449672
        %v1853 = vmul.f32 %v1845, %v1699
        %v1854 = vmul.f32 %v1846, %v1714
        %v1855 = vmul.f32 %v1847, %v1729
        %v1856 = vmul.f32 %v1848, %v1744
        %v1857 = vmul.f32 %v1849, %v1759
        %v1858 = vmul.f32 %v1850, %v1774
        %v1859 = vmul.f32 %v1851, %v1789
        %v1860 = vmul.f32 %v1852, %v1804
        %v1861 = vadd.f32 %v1853, 0.2548296
        %v1862 = vadd.f32 %v1854, 0.2548296
        %v1863 = vadd.f32 %v1855, 0.2548296
        %v1864 = vadd.f32 %v1856, 0.2548296
        %v1865 = vadd.f32 %v1857, 0.2548296
        %v1866 = vadd.f32 %v1858, 0.2548296
        %v1867 = vadd.f32 %v1859, 0.2548296
        %v1868 = vadd.f32 %v1860, 0.2548296
        %v1869 = vmul.f32 %v1861, %v1699
        %v1870 = vmul.f32 %v1862, %v1714
        %v1871 = vmul.f32 %v1863, %v1729
        %v1872 = vmul.f32 %v1864, %v1744
        %v1873 = vmul.f32 %v1865, %v1759
        %v1874 = vmul.f32 %v1866, %v1774
        %v1875 = vmul.f32 %v1867, %v1789
        %v1876 = vmul.f32 %v1868, %v1804
        %v1877 = vsub.f32 0.0, %v1661
        %v1878 = vsub.f32 0.0, %v1662
        %v1879 = vsub.f32 0.0, %v1663
        %v1880 = vsub.f32 0.0, %v1664
        %v1881 = vsub.f32 0.0, %v1665
        %v1882 = vsub.f32 0.0, %v1666
        %v1883 = vsub.f32 0.0, %v1667
        %v1884 = vsub.f32 0.0, %v1668
        %v1885 = vmul.f32 %v1877, %v1661
        %v1886 = vmul.f32 %v1878, %v1662
        %v1887 = vmul.f32 %v1879, %v1663
        %v1888 = vmul.f32 %v1880, %v1664
        %v1889 = vmul.f32 %v1881, %v1665
        %v1890 = vmul.f32 %v1882, %v1666
        %v1891 = vmul.f32 %v1883, %v1667
        %v1892 = vmul.f32 %v1884, %v1668
        %v1893 = vmul.f32 %v1885, 1.442695
        %v1894 = vpow.pop %v1893
        %v1895 = vmul.f32 %v1886, 1.442695
        %v1896 = vpow.pop %v1895
        %v1897 = vmul.f32 %v1887, 1.442695
        %v1898 = vpow.pop %v1897
        %v1899 = vmul.f32 %v1888, 1.442695
        %v1900 = vpow.pop %v1899
        %v1901 = vmul.f32 %v1889, 1.442695
        %v1902 = vpow.pop %v1901
        %v1903 = vmul.f32 %v1890, 1.442695
        %v1904 = vpow.pop %v1903
        %v1905 = vmul.f32 %v1891, 1.442695
        %v1906 = vpow.pop %v1905
        %v1907 = vmul.f32 %v1892, 1.442695
        %v1908 = vpow.pop %v1907
        %v1909 = vmul.f32 %v1869, %v1894
        %v1910 = vmul.f32 %v1870, %v1896
        %v1911 = vmul.f32 %v1871, %v1898
        %v1912 = vmul.f32 %v1872, %v1900
        %v1913 = vmul.f32 %v1873, %v1902
        %v1914 = vmul.f32 %v1874, %v1904
        %v1915 = vmul.f32 %v1875, %v1906
        %v1916 = vmul.f32 %v1876, %v1908
        %v1917 = vsub.f32 1.0, %v1909
        %v1918 = vsub.f32 1.0, %v1910
        %v1919 = vsub.f32 1.0, %v1911
        %v1920 = vsub.f32 1.0, %v1912
        %v1921 = vsub.f32 1.0, %v1913
        %v1922 = vsub.f32 1.0, %v1914
        %v1923 = vsub.f32 1.0, %v1915
        %v1924 = vsub.f32 1.0, %v1916
        %v1925 = vmul.f32 %v1653, %v1917
        %v1926 = vmul.f32 %v1654, %v1918
        %v1927 = vmul.f32 %v1655, %v1919
        %v1928 = vmul.f32 %v1656, %v1920
        %v1929 = vmul.f32 %v1657, %v1921
        %v1930 = vmul.f32 %v1658, %v1922
        %v1931 = vmul.f32 %v1659, %v1923
        %v1932 = vmul.f32 %v1660, %v1924
        %v1933 = vadd.f32 %v1925, 1.0
        %v1934 = vadd.f32 %v1926, 1.0
        %v1935 = vadd.f32 %v1927, 1.0
        %v1936 = vadd.f32 %v1928, 1.0
        %v1937 = vadd.f32 %v1929, 1.0
        %v1938 = vadd.f32 %v1930, 1.0
        %v1939 = vadd.f32 %v1931, 1.0
        %v1940 = vadd.f32 %v1932, 1.0
        %v1941 = vmul.f32 %v1629, %v1933
        %v1942 = vmul.f32 %v1630, %v1934
        %v1943 = vmul.f32 %v1631, %v1935
        %v1944 = vmul.f32 %v1632, %v1936
        %v1945 = vmul.f32 %v1633, %v1937
        %v1946 = vmul.f32 %v1634, %v1938
        %v1947 = vmul.f32 %v1635, %v1939
        %v1948 = vmul.f32 %v1636, %v1940
        %v1957 = vrot.slane %v1941, 7
        %v1958 = vrot.slane %v1942, 7
        %v1959 = vrot.slane %v1943, 7
        %v1960 = vsel %vm857, %v1957, %v1959
        %v1961 = vrot.slane %v1944, 7
        %v1962 = vsel %vm857, %v1958, %v1961
        %v1963 = vrot.slane %v1945, 7
        %v1964 = vsel %vm857, %v1959, %v1963
        %v1965 = vrot.slane %v1946, 7
        %v1966 = vsel %vm857, %v1961, %v1965
        %v1967 = vrot.slane %v1947, 7
        %v1968 = vsel %vm857, %v1963, %v1967
        %v1969 = vrot.slane %v1948, 7
        %v1970 = vsel %vm857, %v1965, %v1969
        %1981 = vst [vmem:[#allocation2] sm:$0xfe] %v1957
        %1982 = vst [vmem:[#allocation2 + $0x8] sm:$0xfe] %v1958
        %1983 = vst [vmem:[#allocation2 + $0x10] sm:$0xff] %v1960
        %1984 = vst [vmem:[#allocation2 + $0x18] sm:$0xff] %v1962
        %1985 = vst [vmem:[#allocation2 + $0x20] sm:$0xff] %v1964
        %1986 = vst [vmem:[#allocation2 + $0x28] sm:$0xff] %v1966
        %1987 = vst [vmem:[#allocation2 + $0x30] sm:$0xff] %v1968
        %1988 = vst [vmem:[#allocation2 + $0x38] sm:$0xff] %v1970
        %1989 = vst [vmem:[#allocation2 + $0x40] sm:$0x1] %v1967
        %1990 = vst [vmem:[#allocation2 + $0x48] sm:$0x1] %v1969
        %v1991 = vld [vmem:[#allocation2] sm:$0xff]
        %v1992 = vld [vmem:[#allocation2 + $0x8] sm:$0xff]
        %v1993 = vld [vmem:[#allocation2 + $0x10] sm:$0xff]
        %v1994 = vld [vmem:[#allocation2 + $0x18] sm:$0xff]
        %v1995 = vld [vmem:[#allocation2 + $0x20] sm:$0xff]
        %v1996 = vld [vmem:[#allocation2 + $0x28] sm:$0xff]
        %v1997 = vld [vmem:[#allocation2 + $0x30] sm:$0xff]
        %v1998 = vld [vmem:[#allocation2 + $0x38] sm:$0xff]
        %v1999 = vld [vmem:[#allocation9] sm:$0xff]
        %v2000 = vld [vmem:[#allocation9 + $0x8] sm:$0xff]
        %v2001 = vld [vmem:[#allocation9 + $0x10] sm:$0xff]
        %v2002 = vld [vmem:[#allocation9 + $0x18] sm:$0xff]
        %v2003 = vld [vmem:[#allocation9 + $0x20] sm:$0xff]
        %v2004 = vld [vmem:[#allocation9 + $0x28] sm:$0xff]
        %v2005 = vld [vmem:[#allocation9 + $0x30] sm:$0xff]
        %v2006 = vld [vmem:[#allocation9 + $0x38] sm:$0xff]
        %v2007 = vld [vmem:[#allocation9 + $0x40] sm:$0xff]
        %v2008 = vld [vmem:[#allocation9 + $0x48] sm:$0xff]
        %v2009 = vld [vmem:[#allocation9 + $0x50] sm:$0xff]
        %v2010 = vld [vmem:[#allocation9 + $0x58] sm:$0xff]
        %v2011 = vld [vmem:[#allocation9 + $0x60] sm:$0xff]
        %v2012 = vld [vmem:[#allocation9 + $0x68] sm:$0xff]
        %v2013 = vld [vmem:[#allocation9 + $0x70] sm:$0xff]
        %v2014 = vld [vmem:[#allocation9 + $0x78] sm:$0xff]
        %v2015 = vld [vmem:[#allocation9 + $0x80] sm:$0xff]
        %v2016 = vld [vmem:[#allocation9 + $0x88] sm:$0xff]
        %v2017 = vld [vmem:[#allocation9 + $0x90] sm:$0xff]
        %v2018 = vld [vmem:[#allocation9 + $0x98] sm:$0xff]
        %v2019 = vld [vmem:[#allocation9 + $0xa0] sm:$0xff]
        %v2020 = vld [vmem:[#allocation9 + $0xa8] sm:$0xff]
        %v2021 = vld [vmem:[#allocation9 + $0xb0] sm:$0xff]
        %v2022 = vld [vmem:[#allocation9 + $0xb8] sm:$0xff]
        %v2023 = vld [vmem:[#allocation9 + $0xc0] sm:$0xff]
        %v2024 = vld [vmem:[#allocation9 + $0xc8] sm:$0xff]
        %v2025 = vld [vmem:[#allocation9 + $0xd0] sm:$0xff]
        %v2026 = vld [vmem:[#allocation9 + $0xd8] sm:$0xff]
        %v2027 = vld [vmem:[#allocation9 + $0xe0] sm:$0xff]
        %v2028 = vld [vmem:[#allocation9 + $0xe8] sm:$0xff]
        %v2029 = vld [vmem:[#allocation9 + $0xf0] sm:$0xff]
        %v2030 = vld [vmem:[#allocation9 + $0xf8] sm:$0xff]
        %v2031 = vld [vmem:[#allocation9 + $0x100] sm:$0xff]
        %v2032 = vld [vmem:[#allocation9 + $0x108] sm:$0xff]
        %v2033 = vld [vmem:[#allocation9 + $0x110] sm:$0xff]
        %v2034 = vld [vmem:[#allocation9 + $0x118] sm:$0xff]
        %v2035 = vld [vmem:[#allocation9 + $0x120] sm:$0xff]
        %v2036 = vld [vmem:[#allocation9 + $0x128] sm:$0xff]
        %v2037 = vld [vmem:[#allocation9 + $0x130] sm:$0xff]
        %v2038 = vld [vmem:[#allocation9 + $0x138] sm:$0xff]
        %v2039 = vld [vmem:[#allocation9 + $0x140] sm:$0xff]
        %v2040 = vld [vmem:[#allocation9 + $0x148] sm:$0xff]
        %v2041 = vld [vmem:[#allocation9 + $0x150] sm:$0xff]
        %v2042 = vld [vmem:[#allocation9 + $0x158] sm:$0xff]
        %v2043 = vld [vmem:[#allocation9 + $0x160] sm:$0xff]
        %v2044 = vld [vmem:[#allocation9 + $0x168] sm:$0xff]
        %v2045 = vld [vmem:[#allocation9 + $0x170] sm:$0xff]
        %v2046 = vld [vmem:[#allocation9 + $0x178] sm:$0xff]
        %v2047 = vld [vmem:[#allocation9 + $0x180] sm:$0xff]
        %v2048 = vld [vmem:[#allocation9 + $0x188] sm:$0xff]
        %v2049 = vld [vmem:[#allocation9 + $0x190] sm:$0xff]
        %v2050 = vld [vmem:[#allocation9 + $0x198] sm:$0xff]
        %v2051 = vld [vmem:[#allocation9 + $0x1a0] sm:$0xff]
        %v2052 = vld [vmem:[#allocation9 + $0x1a8] sm:$0xff]
        %v2053 = vld [vmem:[#allocation9 + $0x1b0] sm:$0xff]
        %v2054 = vld [vmem:[#allocation9 + $0x1b8] sm:$0xff]
        %v2055 = vld [vmem:[#allocation9 + $0x1c0] sm:$0xff]
        %v2056 = vld [vmem:[#allocation9 + $0x1c8] sm:$0xff]
        %v2057 = vld [vmem:[#allocation9 + $0x1d0] sm:$0xff]
        %v2058 = vld [vmem:[#allocation9 + $0x1d8] sm:$0xff]
        %v2059 = vld [vmem:[#allocation9 + $0x1e0] sm:$0xff]
        %v2060 = vld [vmem:[#allocation9 + $0x1e8] sm:$0xff]
        %v2061 = vld [vmem:[#allocation9 + $0x1f0] sm:$0xff]
        %v2062 = vld [vmem:[#allocation9 + $0x1f8] sm:$0xff]
        %v2063 = vld [vmem:[#allocation2] sm:$0xfe]
        %v2064 = vld [vmem:[#allocation2 + $0x8] sm:$0xfe]
        %v2065 = vld [vmem:[#allocation2 + $0x40] sm:$0x1]
        %v2066 = vld [vmem:[#allocation2 + $0x48] sm:$0x1]
        %s2067 = scalar_lea.vmem [#allocation9], 512
        %v2068 = vld [vmem:[%s2067] sm:$0xff]
        %v2069 = vld [vmem:[%s2067 + $0x8] sm:$0xff]
        %v2070 = vld [vmem:[%s2067 + $0x10] sm:$0xff]
        %v2071 = vld [vmem:[%s2067 + $0x18] sm:$0xff]
        %v2072 = vld [vmem:[%s2067 + $0x20] sm:$0xff]
        %v2073 = vld [vmem:[%s2067 + $0x28] sm:$0xff]
        %v2074 = vld [vmem:[%s2067 + $0x30] sm:$0xff]
        %v2075 = vld [vmem:[%s2067 + $0x38] sm:$0xff]
        %v2076 = vld [vmem:[%s2067 + $0x40] sm:$0xff]
        %v2077 = vld [vmem:[%s2067 + $0x48] sm:$0xff]
        %v2078 = vld [vmem:[%s2067 + $0x50] sm:$0xff]
        %v2079 = vld [vmem:[%s2067 + $0x58] sm:$0xff]
        %v2080 = vld [vmem:[%s2067 + $0x60] sm:$0xff]
        %v2081 = vld [vmem:[%s2067 + $0x68] sm:$0xff]
        %v2082 = vld [vmem:[%s2067 + $0x70] sm:$0xff]
        %v2083 = vld [vmem:[%s2067 + $0x78] sm:$0xff]
        %v2084 = vld [vmem:[%s2067 + $0x80] sm:$0xff]
        %v2085 = vld [vmem:[%s2067 + $0x88] sm:$0xff]
        %v2086 = vld [vmem:[%s2067 + $0x90] sm:$0xff]
        %v2087 = vld [vmem:[%s2067 + $0x98] sm:$0xff]
        %v2088 = vld [vmem:[%s2067 + $0xa0] sm:$0xff]
        %v2089 = vld [vmem:[%s2067 + $0xa8] sm:$0xff]
        %v2090 = vld [vmem:[%s2067 + $0xb0] sm:$0xff]
        %v2091 = vld [vmem:[%s2067 + $0xb8] sm:$0xff]
        %v2092 = vld [vmem:[%s2067 + $0xc0] sm:$0xff]
        %v2093 = vld [vmem:[%s2067 + $0xc8] sm:$0xff]
        %v2094 = vld [vmem:[%s2067 + $0xd0] sm:$0xff]
        %v2095 = vld [vmem:[%s2067 + $0xd8] sm:$0xff]
        %v2096 = vld [vmem:[%s2067 + $0xe0] sm:$0xff]
        %v2097 = vld [vmem:[%s2067 + $0xe8] sm:$0xff]
        %v2098 = vld [vmem:[%s2067 + $0xf0] sm:$0xff]
        %v2099 = vld [vmem:[%s2067 + $0xf8] sm:$0xff]
        %v2100 = vld [vmem:[%s2067 + $0x100] sm:$0xff]
        %v2101 = vld [vmem:[%s2067 + $0x108] sm:$0xff]
        %v2102 = vld [vmem:[%s2067 + $0x110] sm:$0xff]
        %v2103 = vld [vmem:[%s2067 + $0x118] sm:$0xff]
        %v2104 = vld [vmem:[%s2067 + $0x120] sm:$0xff]
        %v2105 = vld [vmem:[%s2067 + $0x128] sm:$0xff]
        %v2106 = vld [vmem:[%s2067 + $0x130] sm:$0xff]
        %v2107 = vld [vmem:[%s2067 + $0x138] sm:$0xff]
        %v2108 = vld [vmem:[%s2067 + $0x140] sm:$0xff]
        %v2109 = vld [vmem:[%s2067 + $0x148] sm:$0xff]
        %v2110 = vld [vmem:[%s2067 + $0x150] sm:$0xff]
        %v2111 = vld [vmem:[%s2067 + $0x158] sm:$0xff]
        %v2112 = vld [vmem:[%s2067 + $0x160] sm:$0xff]
        %v2113 = vld [vmem:[%s2067 + $0x168] sm:$0xff]
        %v2114 = vld [vmem:[%s2067 + $0x170] sm:$0xff]
        %v2115 = vld [vmem:[%s2067 + $0x178] sm:$0xff]
        %v2116 = vld [vmem:[%s2067 + $0x180] sm:$0xff]
        %v2117 = vld [vmem:[%s2067 + $0x188] sm:$0xff]
        %v2118 = vld [vmem:[%s2067 + $0x190] sm:$0xff]
        %v2119 = vld [vmem:[%s2067 + $0x198] sm:$0xff]
        %v2120 = vld [vmem:[%s2067 + $0x1a0] sm:$0xff]
        %v2121 = vld [vmem:[%s2067 + $0x1a8] sm:$0xff]
        %v2122 = vld [vmem:[%s2067 + $0x1b0] sm:$0xff]
        %v2123 = vld [vmem:[%s2067 + $0x1b8] sm:$0xff]
        %v2124 = vld [vmem:[%s2067 + $0x1c0] sm:$0xff]
        %v2125 = vld [vmem:[%s2067 + $0x1c8] sm:$0xff]
        %v2126 = vld [vmem:[%s2067 + $0x1d0] sm:$0xff]
        %v2127 = vld [vmem:[%s2067 + $0x1d8] sm:$0xff]
        %v2128 = vld [vmem:[%s2067 + $0x1e0] sm:$0xff]
        %v2129 = vld [vmem:[%s2067 + $0x1e8] sm:$0xff]
        %v2130 = vld [vmem:[%s2067 + $0x1f0] sm:$0xff]
        %v2131 = vld [vmem:[%s2067 + $0x1f8] sm:$0xff]
        %v2142 = vrot.slane %v2063, 1
        %v2143 = vrot.slane %v1993, 1
        %v2144 = vsel %vm1043, %v2142, %v2143
        %v2145 = vrot.slane %v2064, 1
        %v2146 = vrot.slane %v1994, 1
        %v2147 = vsel %vm1043, %v2145, %v2146
        %v2148 = vrot.slane %v1995, 1
        %v2149 = vsel %vm1043, %v2143, %v2148
        %v2150 = vrot.slane %v1996, 1
        %v2151 = vsel %vm1043, %v2146, %v2150
        %v2152 = vrot.slane %v1997, 1
        %v2153 = vsel %vm1043, %v2148, %v2152
        %v2154 = vrot.slane %v1998, 1
        %v2155 = vsel %vm1043, %v2150, %v2154
        %v2156 = vrot.slane %v2065, 1
        %v2157 = vsel %vm1043, %v2152, %v2156
        %v2158 = vrot.slane %v2066, 1
        %v2159 = vsel %vm1043, %v2154, %v2158
        %2168 = vmatpush.msra.mxu0 %v2098
        %2169 = vmatpush.msra.mxu0 %v2096
        %2170 = vmatpush.msra.mxu0 %v2094
        %2171 = vmatpush.msra.mxu0 %v2092
        %2172 = vmatpush.msra.mxu0 %v2090
        %2173 = vmatpush.msra.mxu0 %v2088
        %2174 = vmatpush.msra.mxu0 %v2086
        %2175 = vmatpush.msra.mxu0 %v2084
        %2176 = vmatpush.msra.mxu0 %v2082
        %2177 = vmatpush.msra.mxu0 %v2080
        %2178 = vmatpush.msra.mxu0 %v2078
        %2179 = vmatpush.msra.mxu0 %v2076
        %2180 = vmatpush.msra.mxu0 %v2074
        %2181 = vmatpush.msra.mxu0 %v2072
        %2182 = vmatpush.msra.mxu0 %v2070
        %2183 = vmatpush.msra.mxu0 %v2068
        %2184 = vmatmul.f32.gmra.mxu0 %v2144
        %v2185 = vpop.f32.mrf.mxu0
        %v2186 = vadd.f32 0.0, %v2185
        %2187 = vmatmul.f32.gmra.mxu0 %v2149
        %v2188 = vpop.f32.mrf.mxu0
        %v2189 = vadd.f32 0.0, %v2188
        %2190 = vmatmul.f32.gmra.mxu0 %v2153
        %v2191 = vpop.f32.mrf.mxu0
        %v2192 = vadd.f32 0.0, %v2191
        %2193 = vmatmul.f32.gmra.mxu0 %v2157
        %v2194 = vpop.f32.mrf.mxu0
        %v2195 = vadd.f32 0.0, %v2194
        %2196 = vdwg.mxu0
        %2197 = vmatpush.msra.mxu0 %v2130
        %2198 = vmatpush.msra.mxu0 %v2128
        %2199 = vmatpush.msra.mxu0 %v2126
        %2200 = vmatpush.msra.mxu0 %v2124
        %2201 = vmatpush.msra.mxu0 %v2122
        %2202 = vmatpush.msra.mxu0 %v2120
        %2203 = vmatpush.msra.mxu0 %v2118
        %2204 = vmatpush.msra.mxu0 %v2116
        %2205 = vmatpush.msra.mxu0 %v2114
        %2206 = vmatpush.msra.mxu0 %v2112
        %2207 = vmatpush.msra.mxu0 %v2110
        %2208 = vmatpush.msra.mxu0 %v2108
        %2209 = vmatpush.msra.mxu0 %v2106
        %2210 = vmatpush.msra.mxu0 %v2104
        %2211 = vmatpush.msra.mxu0 %v2102
        %2212 = vmatpush.msra.mxu0 %v2100
        %2213 = vmatmul.f32.gmra.mxu0 %v2147
        %v2214 = vpop.f32.mrf.mxu0
        %v2215 = vadd.f32 %v2186, %v2214
        %2216 = vmatmul.f32.gmra.mxu0 %v2151
        %v2217 = vpop.f32.mrf.mxu0
        %v2218 = vadd.f32 %v2189, %v2217
        %2219 = vmatmul.f32.gmra.mxu0 %v2155
        %v2220 = vpop.f32.mrf.mxu0
        %v2221 = vadd.f32 %v2192, %v2220
        %2222 = vmatmul.f32.gmra.mxu0 %v2159
        %v2223 = vpop.f32.mrf.mxu0
        %v2224 = vadd.f32 %v2195, %v2223
        %2225 = vdwg.mxu0
        %2226 = vmatpush.msra.mxu0 %v2099
        %2227 = vmatpush.msra.mxu0 %v2097
        %2228 = vmatpush.msra.mxu0 %v2095
        %2229 = vmatpush.msra.mxu0 %v2093
        %2230 = vmatpush.msra.mxu0 %v2091
        %2231 = vmatpush.msra.mxu0 %v2089
        %2232 = vmatpush.msra.mxu0 %v2087
        %2233 = vmatpush.msra.mxu0 %v2085
        %2234 = vmatpush.msra.mxu0 %v2083
        %2235 = vmatpush.msra.mxu0 %v2081
        %2236 = vmatpush.msra.mxu0 %v2079
        %2237 = vmatpush.msra.mxu0 %v2077
        %2238 = vmatpush.msra.mxu0 %v2075
        %2239 = vmatpush.msra.mxu0 %v2073
        %2240 = vmatpush.msra.mxu0 %v2071
        %2241 = vmatpush.msra.mxu0 %v2069
        %2242 = vmatmul.f32.gmra.mxu0 %v2144
        %v2243 = vpop.f32.mrf.mxu0
        %v2244 = vadd.f32 0.0, %v2243
        %2245 = vmatmul.f32.gmra.mxu0 %v2149
        %v2246 = vpop.f32.mrf.mxu0
        %v2247 = vadd.f32 0.0, %v2246
        %2248 = vmatmul.f32.gmra.mxu0 %v2153
        %v2249 = vpop.f32.mrf.mxu0
        %v2250 = vadd.f32 0.0, %v2249
        %2251 = vmatmul.f32.gmra.mxu0 %v2157
        %v2252 = vpop.f32.mrf.mxu0
        %v2253 = vadd.f32 0.0, %v2252
        %2254 = vdwg.mxu0
        %2255 = vmatpush.msra.mxu0 %v2131
        %2256 = vmatpush.msra.mxu0 %v2129
        %2257 = vmatpush.msra.mxu0 %v2127
        %2258 = vmatpush.msra.mxu0 %v2125
        %2259 = vmatpush.msra.mxu0 %v2123
        %2260 = vmatpush.msra.mxu0 %v2121
        %2261 = vmatpush.msra.mxu0 %v2119
        %2262 = vmatpush.msra.mxu0 %v2117
        %2263 = vmatpush.msra.mxu0 %v2115
        %2264 = vmatpush.msra.mxu0 %v2113
        %2265 = vmatpush.msra.mxu0 %v2111
        %2266 = vmatpush.msra.mxu0 %v2109
        %2267 = vmatpush.msra.mxu0 %v2107
        %2268 = vmatpush.msra.mxu0 %v2105
        %2269 = vmatpush.msra.mxu0 %v2103
        %2270 = vmatpush.msra.mxu0 %v2101
        %2271 = vmatmul.f32.gmra.mxu0 %v2147
        %v2272 = vpop.f32.mrf.mxu0
        %v2273 = vadd.f32 %v2244, %v2272
        %2274 = vmatmul.f32.gmra.mxu0 %v2151
        %v2275 = vpop.f32.mrf.mxu0
        %v2276 = vadd.f32 %v2247, %v2275
        %2277 = vmatmul.f32.gmra.mxu0 %v2155
        %v2278 = vpop.f32.mrf.mxu0
        %v2279 = vadd.f32 %v2250, %v2278
        %2280 = vmatmul.f32.gmra.mxu0 %v2159
        %v2281 = vpop.f32.mrf.mxu0
        %v2282 = vadd.f32 %v2253, %v2281
        %2283 = vdwg.mxu0
        %2284 = vmatpush.msra.mxu0 %v2029
        %2285 = vmatpush.msra.mxu0 %v2027
        %2286 = vmatpush.msra.mxu0 %v2025
        %2287 = vmatpush.msra.mxu0 %v2023
        %2288 = vmatpush.msra.mxu0 %v2021
        %2289 = vmatpush.msra.mxu0 %v2019
        %2290 = vmatpush.msra.mxu0 %v2017
        %2291 = vmatpush.msra.mxu0 %v2015
        %2292 = vmatpush.msra.mxu0 %v2013
        %2293 = vmatpush.msra.mxu0 %v2011
        %2294 = vmatpush.msra.mxu0 %v2009
        %2295 = vmatpush.msra.mxu0 %v2007
        %2296 = vmatpush.msra.mxu0 %v2005
        %2297 = vmatpush.msra.mxu0 %v2003
        %2298 = vmatpush.msra.mxu0 %v2001
        %2299 = vmatpush.msra.mxu0 %v1999
        %2300 = vmatmul.f32.gmra.mxu0 %v1991
        %v2301 = vpop.f32.mrf.mxu0
        %v2302 = vadd.f32 %v2215, %v2301
        %2303 = vmatmul.f32.gmra.mxu0 %v1993
        %v2304 = vpop.f32.mrf.mxu0
        %v2305 = vadd.f32 %v2218, %v2304
        %2306 = vmatmul.f32.gmra.mxu0 %v1995
        %v2307 = vpop.f32.mrf.mxu0
        %v2308 = vadd.f32 %v2221, %v2307
        %2309 = vmatmul.f32.gmra.mxu0 %v1997
        %v2310 = vpop.f32.mrf.mxu0
        %v2311 = vadd.f32 %v2224, %v2310
        %2312 = vdwg.mxu0
        %2313 = vmatpush.msra.mxu0 %v2061
        %2314 = vmatpush.msra.mxu0 %v2059
        %2315 = vmatpush.msra.mxu0 %v2057
        %2316 = vmatpush.msra.mxu0 %v2055
        %2317 = vmatpush.msra.mxu0 %v2053
        %2318 = vmatpush.msra.mxu0 %v2051
        %2319 = vmatpush.msra.mxu0 %v2049
        %2320 = vmatpush.msra.mxu0 %v2047
        %2321 = vmatpush.msra.mxu0 %v2045
        %2322 = vmatpush.msra.mxu0 %v2043
        %2323 = vmatpush.msra.mxu0 %v2041
        %2324 = vmatpush.msra.mxu0 %v2039
        %2325 = vmatpush.msra.mxu0 %v2037
        %2326 = vmatpush.msra.mxu0 %v2035
        %2327 = vmatpush.msra.mxu0 %v2033
        %2328 = vmatpush.msra.mxu0 %v2031
        %2329 = vmatmul.f32.gmra.mxu0 %v1992
        %v2330 = vpop.f32.mrf.mxu0
        %v2331 = vadd.f32 %v2302, %v2330
        %2332 = vmatmul.f32.gmra.mxu0 %v1994
        %v2333 = vpop.f32.mrf.mxu0
        %v2334 = vadd.f32 %v2305, %v2333
        %2335 = vmatmul.f32.gmra.mxu0 %v1996
        %v2336 = vpop.f32.mrf.mxu0
        %v2337 = vadd.f32 %v2308, %v2336
        %2338 = vmatmul.f32.gmra.mxu0 %v1998
        %v2339 = vpop.f32.mrf.mxu0
        %v2340 = vadd.f32 %v2311, %v2339
        %2341 = vdwg.mxu0
        %2342 = vmatpush.msra.mxu0 %v2030
        %2343 = vmatpush.msra.mxu0 %v2028
        %2344 = vmatpush.msra.mxu0 %v2026
        %2345 = vmatpush.msra.mxu0 %v2024
        %2346 = vmatpush.msra.mxu0 %v2022
        %2347 = vmatpush.msra.mxu0 %v2020
        %2348 = vmatpush.msra.mxu0 %v2018
        %2349 = vmatpush.msra.mxu0 %v2016
        %2350 = vmatpush.msra.mxu0 %v2014
        %2351 = vmatpush.msra.mxu0 %v2012
        %2352 = vmatpush.msra.mxu0 %v2010
        %2353 = vmatpush.msra.mxu0 %v2008
        %2354 = vmatpush.msra.mxu0 %v2006
        %2355 = vmatpush.msra.mxu0 %v2004
        %2356 = vmatpush.msra.mxu0 %v2002
        %2357 = vmatpush.msra.mxu0 %v2000
        %2358 = vmatmul.f32.gmra.mxu0 %v1991
        %v2359 = vpop.f32.mrf.mxu0
        %v2360 = vadd.f32 %v2273, %v2359
        %2361 = vmatmul.f32.gmra.mxu0 %v1993
        %v2362 = vpop.f32.mrf.mxu0
        %v2363 = vadd.f32 %v2276, %v2362
        %2364 = vmatmul.f32.gmra.mxu0 %v1995
        %v2365 = vpop.f32.mrf.mxu0
        %v2366 = vadd.f32 %v2279, %v2365
        %2367 = vmatmul.f32.gmra.mxu0 %v1997
        %v2368 = vpop.f32.mrf.mxu0
        %v2369 = vadd.f32 %v2282, %v2368
        %2370 = vdwg.mxu0
        %2371 = vmatpush.msra.mxu0 %v2062
        %2372 = vmatpush.msra.mxu0 %v2060
        %2373 = vmatpush.msra.mxu0 %v2058
        %2374 = vmatpush.msra.mxu0 %v2056
        %2375 = vmatpush.msra.mxu0 %v2054
        %2376 = vmatpush.msra.mxu0 %v2052
        %2377 = vmatpush.msra.mxu0 %v2050
        %2378 = vmatpush.msra.mxu0 %v2048
        %2379 = vmatpush.msra.mxu0 %v2046
        %2380 = vmatpush.msra.mxu0 %v2044
        %2381 = vmatpush.msra.mxu0 %v2042
        %2382 = vmatpush.msra.mxu0 %v2040
        %2383 = vmatpush.msra.mxu0 %v2038
        %2384 = vmatpush.msra.mxu0 %v2036
        %2385 = vmatpush.msra.mxu0 %v2034
        %2386 = vmatpush.msra.mxu0 %v2032
        %2387 = vmatmul.f32.gmra.mxu0 %v1992
        %v2388 = vpop.f32.mrf.mxu0
        %v2389 = vadd.f32 %v2360, %v2388
        %2390 = vmatmul.f32.gmra.mxu0 %v1994
        %v2391 = vpop.f32.mrf.mxu0
        %v2392 = vadd.f32 %v2363, %v2391
        %2393 = vmatmul.f32.gmra.mxu0 %v1996
        %v2394 = vpop.f32.mrf.mxu0
        %v2395 = vadd.f32 %v2366, %v2394
        %2396 = vmatmul.f32.gmra.mxu0 %v1998
        %v2397 = vpop.f32.mrf.mxu0
        %v2398 = vadd.f32 %v2369, %v2397
        %2399 = vdwg.mxu0
        %v2400 = vld [vmem:[#allocation2] sm:$0xfc]
        %v2401 = vld [vmem:[#allocation2 + $0x8] sm:$0xfc]
        %v2402 = vld [vmem:[#allocation2 + $0x40] sm:$0x3]
        %v2403 = vld [vmem:[#allocation2 + $0x48] sm:$0x3]
        %s2404 = scalar_lea.vmem [#allocation9], 1024
        %v2405 = vld [vmem:[%s2404] sm:$0xff]
        %v2406 = vld [vmem:[%s2404 + $0x8] sm:$0xff]
        %v2407 = vld [vmem:[%s2404 + $0x10] sm:$0xff]
        %v2408 = vld [vmem:[%s2404 + $0x18] sm:$0xff]
        %v2409 = vld [vmem:[%s2404 + $0x20] sm:$0xff]
        %v2410 = vld [vmem:[%s2404 + $0x28] sm:$0xff]
        %v2411 = vld [vmem:[%s2404 + $0x30] sm:$0xff]
        %v2412 = vld [vmem:[%s2404 + $0x38] sm:$0xff]
        %v2413 = vld [vmem:[%s2404 + $0x40] sm:$0xff]
        %v2414 = vld [vmem:[%s2404 + $0x48] sm:$0xff]
        %v2415 = vld [vmem:[%s2404 + $0x50] sm:$0xff]
        %v2416 = vld [vmem:[%s2404 + $0x58] sm:$0xff]
        %v2417 = vld [vmem:[%s2404 + $0x60] sm:$0xff]
        %v2418 = vld [vmem:[%s2404 + $0x68] sm:$0xff]
        %v2419 = vld [vmem:[%s2404 + $0x70] sm:$0xff]
        %v2420 = vld [vmem:[%s2404 + $0x78] sm:$0xff]
        %v2421 = vld [vmem:[%s2404 + $0x80] sm:$0xff]
        %v2422 = vld [vmem:[%s2404 + $0x88] sm:$0xff]
        %v2423 = vld [vmem:[%s2404 + $0x90] sm:$0xff]
        %v2424 = vld [vmem:[%s2404 + $0x98] sm:$0xff]
        %v2425 = vld [vmem:[%s2404 + $0xa0] sm:$0xff]
        %v2426 = vld [vmem:[%s2404 + $0xa8] sm:$0xff]
        %v2427 = vld [vmem:[%s2404 + $0xb0] sm:$0xff]
        %v2428 = vld [vmem:[%s2404 + $0xb8] sm:$0xff]
        %v2429 = vld [vmem:[%s2404 + $0xc0] sm:$0xff]
        %v2430 = vld [vmem:[%s2404 + $0xc8] sm:$0xff]
        %v2431 = vld [vmem:[%s2404 + $0xd0] sm:$0xff]
        %v2432 = vld [vmem:[%s2404 + $0xd8] sm:$0xff]
        %v2433 = vld [vmem:[%s2404 + $0xe0] sm:$0xff]
        %v2434 = vld [vmem:[%s2404 + $0xe8] sm:$0xff]
        %v2435 = vld [vmem:[%s2404 + $0xf0] sm:$0xff]
        %v2436 = vld [vmem:[%s2404 + $0xf8] sm:$0xff]
        %v2437 = vld [vmem:[%s2404 + $0x100] sm:$0xff]
        %v2438 = vld [vmem:[%s2404 + $0x108] sm:$0xff]
        %v2439 = vld [vmem:[%s2404 + $0x110] sm:$0xff]
        %v2440 = vld [vmem:[%s2404 + $0x118] sm:$0xff]
        %v2441 = vld [vmem:[%s2404 + $0x120] sm:$0xff]
        %v2442 = vld [vmem:[%s2404 + $0x128] sm:$0xff]
        %v2443 = vld [vmem:[%s2404 + $0x130] sm:$0xff]
        %v2444 = vld [vmem:[%s2404 + $0x138] sm:$0xff]
        %v2445 = vld [vmem:[%s2404 + $0x140] sm:$0xff]
        %v2446 = vld [vmem:[%s2404 + $0x148] sm:$0xff]
        %v2447 = vld [vmem:[%s2404 + $0x150] sm:$0xff]
        %v2448 = vld [vmem:[%s2404 + $0x158] sm:$0xff]
        %v2449 = vld [vmem:[%s2404 + $0x160] sm:$0xff]
        %v2450 = vld [vmem:[%s2404 + $0x168] sm:$0xff]
        %v2451 = vld [vmem:[%s2404 + $0x170] sm:$0xff]
        %v2452 = vld [vmem:[%s2404 + $0x178] sm:$0xff]
        %v2453 = vld [vmem:[%s2404 + $0x180] sm:$0xff]
        %v2454 = vld [vmem:[%s2404 + $0x188] sm:$0xff]
        %v2455 = vld [vmem:[%s2404 + $0x190] sm:$0xff]
        %v2456 = vld [vmem:[%s2404 + $0x198] sm:$0xff]
        %v2457 = vld [vmem:[%s2404 + $0x1a0] sm:$0xff]
        %v2458 = vld [vmem:[%s2404 + $0x1a8] sm:$0xff]
        %v2459 = vld [vmem:[%s2404 + $0x1b0] sm:$0xff]
        %v2460 = vld [vmem:[%s2404 + $0x1b8] sm:$0xff]
        %v2461 = vld [vmem:[%s2404 + $0x1c0] sm:$0xff]
        %v2462 = vld [vmem:[%s2404 + $0x1c8] sm:$0xff]
        %v2463 = vld [vmem:[%s2404 + $0x1d0] sm:$0xff]
        %v2464 = vld [vmem:[%s2404 + $0x1d8] sm:$0xff]
        %v2465 = vld [vmem:[%s2404 + $0x1e0] sm:$0xff]
        %v2466 = vld [vmem:[%s2404 + $0x1e8] sm:$0xff]
        %v2467 = vld [vmem:[%s2404 + $0x1f0] sm:$0xff]
        %v2468 = vld [vmem:[%s2404 + $0x1f8] sm:$0xff]
        %v2473 = vrot.slane %v2400, 2
        %v2474 = vrot.slane %v1993, 2
        %v2475 = vsel %vm1375, %v2473, %v2474
        %v2476 = vrot.slane %v2401, 2
        %v2477 = vrot.slane %v1994, 2
        %v2478 = vsel %vm1375, %v2476, %v2477
        %v2479 = vrot.slane %v1995, 2
        %v2480 = vsel %vm1375, %v2474, %v2479
        %v2481 = vrot.slane %v1996, 2
        %v2482 = vsel %vm1375, %v2477, %v2481
        %v2483 = vrot.slane %v1997, 2
        %v2484 = vsel %vm1375, %v2479, %v2483
        %v2485 = vrot.slane %v1998, 2
        %v2486 = vsel %vm1375, %v2481, %v2485
        %v2487 = vrot.slane %v2402, 2
        %v2488 = vsel %vm1375, %v2483, %v2487
        %v2489 = vrot.slane %v2403, 2
        %v2490 = vsel %vm1375, %v2485, %v2489
        %2499 = vmatpush.msra.mxu0 %v2435
        %2500 = vmatpush.msra.mxu0 %v2433
        %2501 = vmatpush.msra.mxu0 %v2431
        %2502 = vmatpush.msra.mxu0 %v2429
        %2503 = vmatpush.msra.mxu0 %v2427
        %2504 = vmatpush.msra.mxu0 %v2425
        %2505 = vmatpush.msra.mxu0 %v2423
        %2506 = vmatpush.msra.mxu0 %v2421
        %2507 = vmatpush.msra.mxu0 %v2419
        %2508 = vmatpush.msra.mxu0 %v2417
        %2509 = vmatpush.msra.mxu0 %v2415
        %2510 = vmatpush.msra.mxu0 %v2413
        %2511 = vmatpush.msra.mxu0 %v2411
        %2512 = vmatpush.msra.mxu0 %v2409
        %2513 = vmatpush.msra.mxu0 %v2407
        %2514 = vmatpush.msra.mxu0 %v2405
        %2515 = vmatmul.f32.gmra.mxu0 %v2475
        %v2516 = vpop.f32.mrf.mxu0
        %v2517 = vadd.f32 0.0, %v2516
        %2518 = vmatmul.f32.gmra.mxu0 %v2480
        %v2519 = vpop.f32.mrf.mxu0
        %v2520 = vadd.f32 0.0, %v2519
        %2521 = vmatmul.f32.gmra.mxu0 %v2484
        %v2522 = vpop.f32.mrf.mxu0
        %v2523 = vadd.f32 0.0, %v2522
        %2524 = vmatmul.f32.gmra.mxu0 %v2488
        %v2525 = vpop.f32.mrf.mxu0
        %v2526 = vadd.f32 0.0, %v2525
        %2527 = vdwg.mxu0
        %2528 = vmatpush.msra.mxu0 %v2467
        %2529 = vmatpush.msra.mxu0 %v2465
        %2530 = vmatpush.msra.mxu0 %v2463
        %2531 = vmatpush.msra.mxu0 %v2461
        %2532 = vmatpush.msra.mxu0 %v2459
        %2533 = vmatpush.msra.mxu0 %v2457
        %2534 = vmatpush.msra.mxu0 %v2455
        %2535 = vmatpush.msra.mxu0 %v2453
        %2536 = vmatpush.msra.mxu0 %v2451
        %2537 = vmatpush.msra.mxu0 %v2449
        %2538 = vmatpush.msra.mxu0 %v2447
        %2539 = vmatpush.msra.mxu0 %v2445
        %2540 = vmatpush.msra.mxu0 %v2443
        %2541 = vmatpush.msra.mxu0 %v2441
        %2542 = vmatpush.msra.mxu0 %v2439
        %2543 = vmatpush.msra.mxu0 %v2437
        %2544 = vmatmul.f32.gmra.mxu0 %v2478
        %v2545 = vpop.f32.mrf.mxu0
        %v2546 = vadd.f32 %v2517, %v2545
        %2547 = vmatmul.f32.gmra.mxu0 %v2482
        %v2548 = vpop.f32.mrf.mxu0
        %v2549 = vadd.f32 %v2520, %v2548
        %2550 = vmatmul.f32.gmra.mxu0 %v2486
        %v2551 = vpop.f32.mrf.mxu0
        %v2552 = vadd.f32 %v2523, %v2551
        %2553 = vmatmul.f32.gmra.mxu0 %v2490
        %v2554 = vpop.f32.mrf.mxu0
        %v2555 = vadd.f32 %v2526, %v2554
        %2556 = vdwg.mxu0
        %2557 = vmatpush.msra.mxu0 %v2436
        %2558 = vmatpush.msra.mxu0 %v2434
        %2559 = vmatpush.msra.mxu0 %v2432
        %2560 = vmatpush.msra.mxu0 %v2430
        %2561 = vmatpush.msra.mxu0 %v2428
        %2562 = vmatpush.msra.mxu0 %v2426
        %2563 = vmatpush.msra.mxu0 %v2424
        %2564 = vmatpush.msra.mxu0 %v2422
        %2565 = vmatpush.msra.mxu0 %v2420
        %2566 = vmatpush.msra.mxu0 %v2418
        %2567 = vmatpush.msra.mxu0 %v2416
        %2568 = vmatpush.msra.mxu0 %v2414
        %2569 = vmatpush.msra.mxu0 %v2412
        %2570 = vmatpush.msra.mxu0 %v2410
        %2571 = vmatpush.msra.mxu0 %v2408
        %2572 = vmatpush.msra.mxu0 %v2406
        %2573 = vmatmul.f32.gmra.mxu0 %v2475
        %v2574 = vpop.f32.mrf.mxu0
        %v2575 = vadd.f32 0.0, %v2574
        %2576 = vmatmul.f32.gmra.mxu0 %v2480
        %v2577 = vpop.f32.mrf.mxu0
        %v2578 = vadd.f32 0.0, %v2577
        %2579 = vmatmul.f32.gmra.mxu0 %v2484
        %v2580 = vpop.f32.mrf.mxu0
        %v2581 = vadd.f32 0.0, %v2580
        %2582 = vmatmul.f32.gmra.mxu0 %v2488
        %v2583 = vpop.f32.mrf.mxu0
        %v2584 = vadd.f32 0.0, %v2583
        %2585 = vdwg.mxu0
        %2586 = vmatpush.msra.mxu0 %v2468
        %2587 = vmatpush.msra.mxu0 %v2466
        %2588 = vmatpush.msra.mxu0 %v2464
        %2589 = vmatpush.msra.mxu0 %v2462
        %2590 = vmatpush.msra.mxu0 %v2460
        %2591 = vmatpush.msra.mxu0 %v2458
        %2592 = vmatpush.msra.mxu0 %v2456
        %2593 = vmatpush.msra.mxu0 %v2454
        %2594 = vmatpush.msra.mxu0 %v2452
        %2595 = vmatpush.msra.mxu0 %v2450
        %2596 = vmatpush.msra.mxu0 %v2448
        %2597 = vmatpush.msra.mxu0 %v2446
        %2598 = vmatpush.msra.mxu0 %v2444
        %2599 = vmatpush.msra.mxu0 %v2442
        %2600 = vmatpush.msra.mxu0 %v2440
        %2601 = vmatpush.msra.mxu0 %v2438
        %2602 = vmatmul.f32.gmra.mxu0 %v2478
        %v2603 = vpop.f32.mrf.mxu0
        %v2604 = vadd.f32 %v2575, %v2603
        %2605 = vmatmul.f32.gmra.mxu0 %v2482
        %v2606 = vpop.f32.mrf.mxu0
        %v2607 = vadd.f32 %v2578, %v2606
        %2608 = vmatmul.f32.gmra.mxu0 %v2486
        %v2609 = vpop.f32.mrf.mxu0
        %v2610 = vadd.f32 %v2581, %v2609
        %2611 = vmatmul.f32.gmra.mxu0 %v2490
        %v2612 = vpop.f32.mrf.mxu0
        %v2613 = vadd.f32 %v2584, %v2612
        %2614 = vdwg.mxu0
        %v2615 = vadd.f32 %v2331, %v2546
        %v2616 = vadd.f32 %v2389, %v2604
        %v2617 = vadd.f32 %v2334, %v2549
        %v2618 = vadd.f32 %v2392, %v2607
        %v2619 = vadd.f32 %v2337, %v2552
        %v2620 = vadd.f32 %v2395, %v2610
        %v2621 = vadd.f32 %v2340, %v2555
        %v2622 = vadd.f32 %v2398, %v2613
        %v2623 = vadd.f32 %v2615, %v2617
        %v2624 = vadd.f32 %v2623, %v2619
        %v2625 = vadd.f32 %v2624, %v2621
        %v2626 = vrot.slane %v2625, 4
        %v2627 = vadd.f32 %v2625, %v2626
        %v2628 = vrot.slane %v2627, 2
        %v2629 = vadd.f32 %v2627, %v2628
        %v2630 = vrot.slane %v2629, 1
        %v2631 = vadd.f32 %v2629, %v2630
        %v2632 = vadd.f32 %v2616, %v2618
        %v2633 = vadd.f32 %v2632, %v2620
        %v2634 = vadd.f32 %v2633, %v2622
        %v2635 = vrot.slane %v2634, 4
        %v2636 = vadd.f32 %v2634, %v2635
        %v2637 = vrot.slane %v2636, 2
        %v2638 = vadd.f32 %v2636, %v2637
        %v2639 = vrot.slane %v2638, 1
        %v2640 = vadd.f32 %v2638, %v2639
        %v2641 = vmul.f32 %v2615, %v2615
        %v2642 = vmul.f32 %v2616, %v2616
        %v2643 = vmul.f32 %v2617, %v2617
        %v2644 = vmul.f32 %v2618, %v2618
        %v2645 = vmul.f32 %v2619, %v2619
        %v2646 = vmul.f32 %v2620, %v2620
        %v2647 = vmul.f32 %v2621, %v2621
        %v2648 = vmul.f32 %v2622, %v2622
        %v2649 = vadd.f32 %v2641, %v2643
        %v2650 = vadd.f32 %v2649, %v2645
        %v2651 = vadd.f32 %v2650, %v2647
        %v2652 = vrot.slane %v2651, 4
        %v2653 = vadd.f32 %v2651, %v2652
        %v2654 = vrot.slane %v2653, 2
        %v2655 = vadd.f32 %v2653, %v2654
        %v2656 = vrot.slane %v2655, 1
        %v2657 = vadd.f32 %v2655, %v2656
        %v2658 = vadd.f32 %v2642, %v2644
        %v2659 = vadd.f32 %v2658, %v2646
        %v2660 = vadd.f32 %v2659, %v2648
        %v2661 = vrot.slane %v2660, 4
        %v2662 = vadd.f32 %v2660, %v2661
        %v2663 = vrot.slane %v2662, 2
        %v2664 = vadd.f32 %v2662, %v2663
        %v2665 = vrot.slane %v2664, 1
        %v2666 = vadd.f32 %v2664, %v2665
        %v2667 = vadd.f32 %v2631, %v2640
        %2668 = vadd.xlane.f32.xlu0 %v2667
        %v2669 = vpop.xlane.xlu0 %2668
        %v2670 = vmul.f32 %v2669, %v1579
        %v2671 = vadd.f32 %v2657, %v2666
        %2672 = vadd.xlane.f32.xlu0 %v2671
        %v2673 = vpop.xlane.xlu0 %2672
        %v2674 = vmul.f32 %v2673, %v1579
        %v2675 = vmul.f32 %v2670, %v2670
        %v2676 = vsub.f32 %v2674, %v2675
        %v2677 = vadd.f32 %v2676, 1e-05
        %v2678 = vrsqrt.pop %v2677
        %v2679 = vmul.f32 %v2678, %v2677
        %v2680 = vmul.f32 %v2679, %v2678
        %v2681 = vmul.f32 0.5, %v2680
        %v2682 = vsub.f32 1.5, %v2681
        %v2683 = vmul.f32 %v2678, %v2682
        %vm2684 = vweird.f32 %v2677
        %vm2685 = vweird.f32 %v2678
        %vm2686 = vmor %vm2684, %vm2685
        %v2687 = vsel %vm2686, %v2678, %v2683
        %v2688 = vld [vmem:[%s9] sm:$0x3]
        %v2689 = vmul.f32 %v2688, %v2687
        %v2690 = vld [vmem:[%s10] sm:$0x3]
        %v2691 = vmul.f32 %v2670, %v2689
        %v2692 = vsub.f32 %v2690, %v2691
        %v2694 = vperm.slane %v2689, 0
        %v2695 = vperm.slane %v2689, 1
        %v2698 = vmul.f32 %v2615, %v2694
        %v2699 = vmul.f32 %v2616, %v2695
        %v2700 = vmul.f32 %v2617, %v2694
        %v2701 = vmul.f32 %v2618, %v2695
        %v2702 = vmul.f32 %v2619, %v2694
        %v2703 = vmul.f32 %v2620, %v2695
        %v2704 = vmul.f32 %v2621, %v2694
        %v2705 = vmul.f32 %v2622, %v2695
        %v2707 = vperm.slane %v2692, 0
        %v2708 = vperm.slane %v2692, 1
        %v2711 = vadd.f32 %v2698, %v2707
        %v2712 = vadd.f32 %v2699, %v2708
        %v2713 = vadd.f32 %v2700, %v2707
        %v2714 = vadd.f32 %v2701, %v2708
        %v2715 = vadd.f32 %v2702, %v2707
        %v2716 = vadd.f32 %v2703, %v2708
        %v2717 = vadd.f32 %v2704, %v2707
        %v2718 = vadd.f32 %v2705, %v2708
        %v2719 = vadd.f32 %v841, %v2711
        %v2720 = vadd.f32 %v842, %v2712
        %v2721 = vadd.f32 %v843, %v2713
        %v2722 = vadd.f32 %v844, %v2714
        %v2723 = vadd.f32 %v845, %v2715
        %v2724 = vadd.f32 %v846, %v2716
        %v2725 = vadd.f32 %v847, %v2717
        %v2726 = vadd.f32 %v848, %v2718
        %v2727 = vmul.f32 %v2719, 0.5
        %v2728 = vmul.f32 %v2720, 0.5
        %v2729 = vmul.f32 %v2721, 0.5
        %v2730 = vmul.f32 %v2722, 0.5
        %v2731 = vmul.f32 %v2723, 0.5
        %v2732 = vmul.f32 %v2724, 0.5
        %v2733 = vmul.f32 %v2725, 0.5
        %v2734 = vmul.f32 %v2726, 0.5
        %v2735 = vmul.f32 %v2719, 0.70710677
        %v2736 = vmul.f32 %v2720, 0.70710677
        %v2737 = vmul.f32 %v2721, 0.70710677
        %v2738 = vmul.f32 %v2722, 0.70710677
        %v2739 = vmul.f32 %v2723, 0.70710677
        %v2740 = vmul.f32 %v2724, 0.70710677
        %v2741 = vmul.f32 %v2725, 0.70710677
        %v2742 = vmul.f32 %v2726, 0.70710677
        %vm2743 = vcmp.ge.f32.partialorder %v2735, 0.0
        %vm2744 = vcmp.ge.f32.partialorder %v2736, 0.0
        %vm2745 = vcmp.ge.f32.partialorder %v2737, 0.0
        %vm2746 = vcmp.ge.f32.partialorder %v2738, 0.0
        %vm2747 = vcmp.ge.f32.partialorder %v2739, 0.0
        %vm2748 = vcmp.ge.f32.partialorder %v2740, 0.0
        %vm2749 = vcmp.ge.f32.partialorder %v2741, 0.0
        %vm2750 = vcmp.ge.f32.partialorder %v2742, 0.0
        %v2751 = vsel %vm2743, 1.0, -1.0
        %v2752 = vsel %vm2744, 1.0, -1.0
        %v2753 = vsel %vm2745, 1.0, -1.0
        %v2754 = vsel %vm2746, 1.0, -1.0
        %v2755 = vsel %vm2747, 1.0, -1.0
        %v2756 = vsel %vm2748, 1.0, -1.0
        %v2757 = vsel %vm2749, 1.0, -1.0
        %v2758 = vsel %vm2750, 1.0, -1.0
        %v2759 = vand.u32 2147483647, %v2735
        %v2760 = vand.u32 2147483647, %v2736
        %v2761 = vand.u32 2147483647, %v2737
        %v2762 = vand.u32 2147483647, %v2738
        %v2763 = vand.u32 2147483647, %v2739
        %v2764 = vand.u32 2147483647, %v2740
        %v2765 = vand.u32 2147483647, %v2741
        %v2766 = vand.u32 2147483647, %v2742
        %v2767 = vmul.f32 %v2759, 0.3275911
        %v2768 = vmul.f32 %v2760, 0.3275911
        %v2769 = vmul.f32 %v2761, 0.3275911
        %v2770 = vmul.f32 %v2762, 0.3275911
        %v2771 = vmul.f32 %v2763, 0.3275911
        %v2772 = vmul.f32 %v2764, 0.3275911
        %v2773 = vmul.f32 %v2765, 0.3275911
        %v2774 = vmul.f32 %v2766, 0.3275911
        %v2775 = vadd.f32 %v2767, 1.0
        %v2776 = vadd.f32 %v2768, 1.0
        %v2777 = vadd.f32 %v2769, 1.0
        %v2778 = vadd.f32 %v2770, 1.0
        %v2779 = vadd.f32 %v2771, 1.0
        %v2780 = vadd.f32 %v2772, 1.0
        %v2781 = vadd.f32 %v2773, 1.0
        %v2782 = vadd.f32 %v2774, 1.0
        %v2783 = vrcp.pop %v2775
        %v2784 = vmul.f32 %v2775, %v2783
        %v2785 = vsub.f32 1.0, %v2784
        %v2786 = vmul.f32 %v2783, %v2785
        %v2787 = vadd.f32 %v2783, %v2786
        %vm2788 = vweird.f32 %v2775
        %vm2789 = vweird.f32 %v2783
        %vm2790 = vmor %vm2788, %vm2789
        %v2791 = vsel %vm2790, %v2783, %v2787
        %v2792 = vand.u32 2147483647, %v2775
        %vm2793 = vcmp.eq.f32.partialorder %v2792, 8.507059e+37
        %v2794 = vand.u32 %v2775, 2147483648
        %v2795 = vor.u32 1.1754944e-38, %v2794
        %v2796 = vsel %vm2793, %v2795, %v2791
        %v2797 = vmul.f32 1.0, %v2796
        %v2798 = vrcp.pop %v2776
        %v2799 = vmul.f32 %v2776, %v2798
        %v2800 = vsub.f32 1.0, %v2799
        %v2801 = vmul.f32 %v2798, %v2800
        %v2802 = vadd.f32 %v2798, %v2801
        %vm2803 = vweird.f32 %v2776
        %vm2804 = vweird.f32 %v2798
        %vm2805 = vmor %vm2803, %vm2804
        %v2806 = vsel %vm2805, %v2798, %v2802
        %v2807 = vand.u32 2147483647, %v2776
        %vm2808 = vcmp.eq.f32.partialorder %v2807, 8.507059e+37
        %v2809 = vand.u32 %v2776, 2147483648
        %v2810 = vor.u32 1.1754944e-38, %v2809
        %v2811 = vsel %vm2808, %v2810, %v2806
        %v2812 = vmul.f32 1.0, %v2811
        %v2813 = vrcp.pop %v2777
        %v2814 = vmul.f32 %v2777, %v2813
        %v2815 = vsub.f32 1.0, %v2814
        %v2816 = vmul.f32 %v2813, %v2815
        %v2817 = vadd.f32 %v2813, %v2816
        %vm2818 = vweird.f32 %v2777
        %vm2819 = vweird.f32 %v2813
        %vm2820 = vmor %vm2818, %vm2819
        %v2821 = vsel %vm2820, %v2813, %v2817
        %v2822 = vand.u32 2147483647, %v2777
        %vm2823 = vcmp.eq.f32.partialorder %v2822, 8.507059e+37
        %v2824 = vand.u32 %v2777, 2147483648
        %v2825 = vor.u32 1.1754944e-38, %v2824
        %v2826 = vsel %vm2823, %v2825, %v2821
        %v2827 = vmul.f32 1.0, %v2826
        %v2828 = vrcp.pop %v2778
        %v2829 = vmul.f32 %v2778, %v2828
        %v2830 = vsub.f32 1.0, %v2829
        %v2831 = vmul.f32 %v2828, %v2830
        %v2832 = vadd.f32 %v2828, %v2831
        %vm2833 = vweird.f32 %v2778
        %vm2834 = vweird.f32 %v2828
        %vm2835 = vmor %vm2833, %vm2834
        %v2836 = vsel %vm2835, %v2828, %v2832
        %v2837 = vand.u32 2147483647, %v2778
        %vm2838 = vcmp.eq.f32.partialorder %v2837, 8.507059e+37
        %v2839 = vand.u32 %v2778, 2147483648
        %v2840 = vor.u32 1.1754944e-38, %v2839
        %v2841 = vsel %vm2838, %v2840, %v2836
        %v2842 = vmul.f32 1.0, %v2841
        %v2843 = vrcp.pop %v2779
        %v2844 = vmul.f32 %v2779, %v2843
        %v2845 = vsub.f32 1.0, %v2844
        %v2846 = vmul.f32 %v2843, %v2845
        %v2847 = vadd.f32 %v2843, %v2846
        %vm2848 = vweird.f32 %v2779
        %vm2849 = vweird.f32 %v2843
        %vm2850 = vmor %vm2848, %vm2849
        %v2851 = vsel %vm2850, %v2843, %v2847
        %v2852 = vand.u32 2147483647, %v2779
        %vm2853 = vcmp.eq.f32.partialorder %v2852, 8.507059e+37
        %v2854 = vand.u32 %v2779, 2147483648
        %v2855 = vor.u32 1.1754944e-38, %v2854
        %v2856 = vsel %vm2853, %v2855, %v2851
        %v2857 = vmul.f32 1.0, %v2856
        %v2858 = vrcp.pop %v2780
        %v2859 = vmul.f32 %v2780, %v2858
        %v2860 = vsub.f32 1.0, %v2859
        %v2861 = vmul.f32 %v2858, %v2860
        %v2862 = vadd.f32 %v2858, %v2861
        %vm2863 = vweird.f32 %v2780
        %vm2864 = vweird.f32 %v2858
        %vm2865 = vmor %vm2863, %vm2864
        %v2866 = vsel %vm2865, %v2858, %v2862
        %v2867 = vand.u32 2147483647, %v2780
        %vm2868 = vcmp.eq.f32.partialorder %v2867, 8.507059e+37
        %v2869 = vand.u32 %v2780, 2147483648
        %v2870 = vor.u32 1.1754944e-38, %v2869
        %v2871 = vsel %vm2868, %v2870, %v2866
        %v2872 = vmul.f32 1.0, %v2871
        %v2873 = vrcp.pop %v2781
        %v2874 = vmul.f32 %v2781, %v2873
        %v2875 = vsub.f32 1.0, %v2874
        %v2876 = vmul.f32 %v2873, %v2875
        %v2877 = vadd.f32 %v2873, %v2876
        %vm2878 = vweird.f32 %v2781
        %vm2879 = vweird.f32 %v2873
        %vm2880 = vmor %vm2878, %vm2879
        %v2881 = vsel %vm2880, %v2873, %v2877
        %v2882 = vand.u32 2147483647, %v2781
        %vm2883 = vcmp.eq.f32.partialorder %v2882, 8.507059e+37
        %v2884 = vand.u32 %v2781, 2147483648
        %v2885 = vor.u32 1.1754944e-38, %v2884
        %v2886 = vsel %vm2883, %v2885, %v2881
        %v2887 = vmul.f32 1.0, %v2886
        %v2888 = vrcp.pop %v2782
        %v2889 = vmul.f32 %v2782, %v2888
        %v2890 = vsub.f32 1.0, %v2889
        %v2891 = vmul.f32 %v2888, %v2890
        %v2892 = vadd.f32 %v2888, %v2891
        %vm2893 = vweird.f32 %v2782
        %vm2894 = vweird.f32 %v2888
        %vm2895 = vmor %vm2893, %vm2894
        %v2896 = vsel %vm2895, %v2888, %v2892
        %v2897 = vand.u32 2147483647, %v2782
        %vm2898 = vcmp.eq.f32.partialorder %v2897, 8.507059e+37
        %v2899 = vand.u32 %v2782, 2147483648
        %v2900 = vor.u32 1.1754944e-38, %v2899
        %v2901 = vsel %vm2898, %v2900, %v2896
        %v2902 = vmul.f32 1.0, %v2901
        %v2903 = vmul.f32 %v2797, 1.0614054
        %v2904 = vmul.f32 %v2812, 1.0614054
        %v2905 = vmul.f32 %v2827, 1.0614054
        %v2906 = vmul.f32 %v2842, 1.0614054
        %v2907 = vmul.f32 %v2857, 1.0614054
        %v2908 = vmul.f32 %v2872, 1.0614054
        %v2909 = vmul.f32 %v2887, 1.0614054
        %v2910 = vmul.f32 %v2902, 1.0614054
        %v2911 = vadd.f32 %v2903, -1.4531521
        %v2912 = vadd.f32 %v2904, -1.4531521
        %v2913 = vadd.f32 %v2905, -1.4531521
        %v2914 = vadd.f32 %v2906, -1.4531521
        %v2915 = vadd.f32 %v2907, -1.4531521
        %v2916 = vadd.f32 %v2908, -1.4531521
        %v2917 = vadd.f32 %v2909, -1.4531521
        %v2918 = vadd.f32 %v2910, -1.4531521
        %v2919 = vmul.f32 %v2911, %v2797
        %v2920 = vmul.f32 %v2912, %v2812
        %v2921 = vmul.f32 %v2913, %v2827
        %v2922 = vmul.f32 %v2914, %v2842
        %v2923 = vmul.f32 %v2915, %v2857
        %v2924 = vmul.f32 %v2916, %v2872
        %v2925 = vmul.f32 %v2917, %v2887
        %v2926 = vmul.f32 %v2918, %v2902
        %v2927 = vadd.f32 %v2919, 1.4214138
        %v2928 = vadd.f32 %v2920, 1.4214138
        %v2929 = vadd.f32 %v2921, 1.4214138
        %v2930 = vadd.f32 %v2922, 1.4214138
        %v2931 = vadd.f32 %v2923, 1.4214138
        %v2932 = vadd.f32 %v2924, 1.4214138
        %v2933 = vadd.f32 %v2925, 1.4214138
        %v2934 = vadd.f32 %v2926, 1.4214138
        %v2935 = vmul.f32 %v2927, %v2797
        %v2936 = vmul.f32 %v2928, %v2812
        %v2937 = vmul.f32 %v2929, %v2827
        %v2938 = vmul.f32 %v2930, %v2842
        %v2939 = vmul.f32 %v2931, %v2857
        %v2940 = vmul.f32 %v2932, %v2872
        %v2941 = vmul.f32 %v2933, %v2887
        %v2942 = vmul.f32 %v2934, %v2902
        %v2943 = vadd.f32 %v2935, -0.28449672
        %v2944 = vadd.f32 %v2936, -0.28449672
        %v2945 = vadd.f32 %v2937, -0.28449672
        %v2946 = vadd.f32 %v2938, -0.28449672
        %v2947 = vadd.f32 %v2939, -0.28449672
        %v2948 = vadd.f32 %v2940, -0.28449672
        %v2949 = vadd.f32 %v2941, -0.28449672
        %v2950 = vadd.f32 %v2942, -0.28449672
        %v2951 = vmul.f32 %v2943, %v2797
        %v2952 = vmul.f32 %v2944, %v2812
        %v2953 = vmul.f32 %v2945, %v2827
        %v2954 = vmul.f32 %v2946, %v2842
        %v2955 = vmul.f32 %v2947, %v2857
        %v2956 = vmul.f32 %v2948, %v2872
        %v2957 = vmul.f32 %v2949, %v2887
        %v2958 = vmul.f32 %v2950, %v2902
        %v2959 = vadd.f32 %v2951, 0.2548296
        %v2960 = vadd.f32 %v2952, 0.2548296
        %v2961 = vadd.f32 %v2953, 0.2548296
        %v2962 = vadd.f32 %v2954, 0.2548296
        %v2963 = vadd.f32 %v2955, 0.2548296
        %v2964 = vadd.f32 %v2956, 0.2548296
        %v2965 = vadd.f32 %v2957, 0.2548296
        %v2966 = vadd.f32 %v2958, 0.2548296
        %v2967 = vmul.f32 %v2959, %v2797
        %v2968 = vmul.f32 %v2960, %v2812
        %v2969 = vmul.f32 %v2961, %v2827
        %v2970 = vmul.f32 %v2962, %v2842
        %v2971 = vmul.f32 %v2963, %v2857
        %v2972 = vmul.f32 %v2964, %v2872
        %v2973 = vmul.f32 %v2965, %v2887
        %v2974 = vmul.f32 %v2966, %v2902
        %v2975 = vsub.f32 0.0, %v2759
        %v2976 = vsub.f32 0.0, %v2760
        %v2977 = vsub.f32 0.0, %v2761
        %v2978 = vsub.f32 0.0, %v2762
        %v2979 = vsub.f32 0.0, %v2763
        %v2980 = vsub.f32 0.0, %v2764
        %v2981 = vsub.f32 0.0, %v2765
        %v2982 = vsub.f32 0.0, %v2766
        %v2983 = vmul.f32 %v2975, %v2759
        %v2984 = vmul.f32 %v2976, %v2760
        %v2985 = vmul.f32 %v2977, %v2761
        %v2986 = vmul.f32 %v2978, %v2762
        %v2987 = vmul.f32 %v2979, %v2763
        %v2988 = vmul.f32 %v2980, %v2764
        %v2989 = vmul.f32 %v2981, %v2765
        %v2990 = vmul.f32 %v2982, %v2766
        %v2991 = vmul.f32 %v2983, 1.442695
        %v2992 = vpow.pop %v2991
        %v2993 = vmul.f32 %v2984, 1.442695
        %v2994 = vpow.pop %v2993
        %v2995 = vmul.f32 %v2985, 1.442695
        %v2996 = vpow.pop %v2995
        %v2997 = vmul.f32 %v2986, 1.442695
        %v2998 = vpow.pop %v2997
        %v2999 = vmul.f32 %v2987, 1.442695
        %v3000 = vpow.pop %v2999
        %v3001 = vmul.f32 %v2988, 1.442695
        %v3002 = vpow.pop %v3001
        %v3003 = vmul.f32 %v2989, 1.442695
        %v3004 = vpow.pop %v3003
        %v3005 = vmul.f32 %v2990, 1.442695
        %v3006 = vpow.pop %v3005
        %v3007 = vmul.f32 %v2967, %v2992
        %v3008 = vmul.f32 %v2968, %v2994
        %v3009 = vmul.f32 %v2969, %v2996
        %v3010 = vmul.f32 %v2970, %v2998
        %v3011 = vmul.f32 %v2971, %v3000
        %v3012 = vmul.f32 %v2972, %v3002
        %v3013 = vmul.f32 %v2973, %v3004
        %v3014 = vmul.f32 %v2974, %v3006
        %v3015 = vsub.f32 1.0, %v3007
        %v3016 = vsub.f32 1.0, %v3008
        %v3017 = vsub.f32 1.0, %v3009
        %v3018 = vsub.f32 1.0, %v3010
        %v3019 = vsub.f32 1.0, %v3011
        %v3020 = vsub.f32 1.0, %v3012
        %v3021 = vsub.f32 1.0, %v3013
        %v3022 = vsub.f32 1.0, %v3014
        %v3023 = vmul.f32 %v2751, %v3015
        %v3024 = vmul.f32 %v2752, %v3016
        %v3025 = vmul.f32 %v2753, %v3017
        %v3026 = vmul.f32 %v2754, %v3018
        %v3027 = vmul.f32 %v2755, %v3019
        %v3028 = vmul.f32 %v2756, %v3020
        %v3029 = vmul.f32 %v2757, %v3021
        %v3030 = vmul.f32 %v2758, %v3022
        %v3031 = vadd.f32 %v3023, 1.0
        %v3032 = vadd.f32 %v3024, 1.0
        %v3033 = vadd.f32 %v3025, 1.0
        %v3034 = vadd.f32 %v3026, 1.0
        %v3035 = vadd.f32 %v3027, 1.0
        %v3036 = vadd.f32 %v3028, 1.0
        %v3037 = vadd.f32 %v3029, 1.0
        %v3038 = vadd.f32 %v3030, 1.0
        %v3039 = vmul.f32 %v2727, %v3031
        %v3040 = vmul.f32 %v2728, %v3032
        %v3041 = vmul.f32 %v2729, %v3033
        %v3042 = vmul.f32 %v2730, %v3034
        %v3043 = vmul.f32 %v2731, %v3035
        %v3044 = vmul.f32 %v2732, %v3036
        %v3045 = vmul.f32 %v2733, %v3037
        %v3046 = vmul.f32 %v2734, %v3038
        %v3055 = vrot.slane %v3039, 7
        %v3056 = vrot.slane %v3040, 7
        %v3057 = vrot.slane %v3041, 7
        %v3058 = vsel %vm857, %v3055, %v3057
        %v3059 = vrot.slane %v3042, 7
        %v3060 = vsel %vm857, %v3056, %v3059
        %v3061 = vrot.slane %v3043, 7
        %v3062 = vsel %vm857, %v3057, %v3061
        %v3063 = vrot.slane %v3044, 7
        %v3064 = vsel %vm857, %v3059, %v3063
        %v3065 = vrot.slane %v3045, 7
        %v3066 = vsel %vm857, %v3061, %v3065
        %v3067 = vrot.slane %v3046, 7
        %v3068 = vsel %vm857, %v3063, %v3067
        %3079 = vst [vmem:[#allocation2] sm:$0xfe] %v3055
        %3080 = vst [vmem:[#allocation2 + $0x8] sm:$0xfe] %v3056
        %3081 = vst [vmem:[#allocation2 + $0x10] sm:$0xff] %v3058
        %3082 = vst [vmem:[#allocation2 + $0x18] sm:$0xff] %v3060
        %3083 = vst [vmem:[#allocation2 + $0x20] sm:$0xff] %v3062
        %3084 = vst [vmem:[#allocation2 + $0x28] sm:$0xff] %v3064
        %3085 = vst [vmem:[#allocation2 + $0x30] sm:$0xff] %v3066
        %3086 = vst [vmem:[#allocation2 + $0x38] sm:$0xff] %v3068
        %3087 = vst [vmem:[#allocation2 + $0x40] sm:$0x1] %v3065
        %3088 = vst [vmem:[#allocation2 + $0x48] sm:$0x1] %v3067
        %v3089 = vld [vmem:[#allocation2] sm:$0xff]
        %v3090 = vld [vmem:[#allocation2 + $0x8] sm:$0xff]
        %v3091 = vld [vmem:[#allocation2 + $0x10] sm:$0xff]
        %v3092 = vld [vmem:[#allocation2 + $0x18] sm:$0xff]
        %v3093 = vld [vmem:[#allocation2 + $0x20] sm:$0xff]
        %v3094 = vld [vmem:[#allocation2 + $0x28] sm:$0xff]
        %v3095 = vld [vmem:[#allocation2 + $0x30] sm:$0xff]
        %v3096 = vld [vmem:[#allocation2 + $0x38] sm:$0xff]
        %v3097 = vld [vmem:[#allocation11] sm:$0xff]
        %v3098 = vld [vmem:[#allocation11 + $0x8] sm:$0xff]
        %v3099 = vld [vmem:[#allocation11 + $0x10] sm:$0xff]
        %v3100 = vld [vmem:[#allocation11 + $0x18] sm:$0xff]
        %v3101 = vld [vmem:[#allocation11 + $0x20] sm:$0xff]
        %v3102 = vld [vmem:[#allocation11 + $0x28] sm:$0xff]
        %v3103 = vld [vmem:[#allocation11 + $0x30] sm:$0xff]
        %v3104 = vld [vmem:[#allocation11 + $0x38] sm:$0xff]
        %v3105 = vld [vmem:[#allocation11 + $0x40] sm:$0xff]
        %v3106 = vld [vmem:[#allocation11 + $0x48] sm:$0xff]
        %v3107 = vld [vmem:[#allocation11 + $0x50] sm:$0xff]
        %v3108 = vld [vmem:[#allocation11 + $0x58] sm:$0xff]
        %v3109 = vld [vmem:[#allocation11 + $0x60] sm:$0xff]
        %v3110 = vld [vmem:[#allocation11 + $0x68] sm:$0xff]
        %v3111 = vld [vmem:[#allocation11 + $0x70] sm:$0xff]
        %v3112 = vld [vmem:[#allocation11 + $0x78] sm:$0xff]
        %v3113 = vld [vmem:[#allocation11 + $0x80] sm:$0xff]
        %v3114 = vld [vmem:[#allocation11 + $0x88] sm:$0xff]
        %v3115 = vld [vmem:[#allocation11 + $0x90] sm:$0xff]
        %v3116 = vld [vmem:[#allocation11 + $0x98] sm:$0xff]
        %v3117 = vld [vmem:[#allocation11 + $0xa0] sm:$0xff]
        %v3118 = vld [vmem:[#allocation11 + $0xa8] sm:$0xff]
        %v3119 = vld [vmem:[#allocation11 + $0xb0] sm:$0xff]
        %v3120 = vld [vmem:[#allocation11 + $0xb8] sm:$0xff]
        %v3121 = vld [vmem:[#allocation11 + $0xc0] sm:$0xff]
        %v3122 = vld [vmem:[#allocation11 + $0xc8] sm:$0xff]
        %v3123 = vld [vmem:[#allocation11 + $0xd0] sm:$0xff]
        %v3124 = vld [vmem:[#allocation11 + $0xd8] sm:$0xff]
        %v3125 = vld [vmem:[#allocation11 + $0xe0] sm:$0xff]
        %v3126 = vld [vmem:[#allocation11 + $0xe8] sm:$0xff]
        %v3127 = vld [vmem:[#allocation11 + $0xf0] sm:$0xff]
        %v3128 = vld [vmem:[#allocation11 + $0xf8] sm:$0xff]
        %v3129 = vld [vmem:[#allocation2] sm:$0xfe]
        %v3130 = vld [vmem:[#allocation2 + $0x8] sm:$0xfe]
        %v3131 = vld [vmem:[#allocation2 + $0x40] sm:$0x1]
        %v3132 = vld [vmem:[#allocation2 + $0x48] sm:$0x1]
        %s3133 = scalar_lea.vmem [#allocation11], 256
        %v3134 = vld [vmem:[%s3133] sm:$0xff]
        %v3135 = vld [vmem:[%s3133 + $0x8] sm:$0xff]
        %v3136 = vld [vmem:[%s3133 + $0x10] sm:$0xff]
        %v3137 = vld [vmem:[%s3133 + $0x18] sm:$0xff]
        %v3138 = vld [vmem:[%s3133 + $0x20] sm:$0xff]
        %v3139 = vld [vmem:[%s3133 + $0x28] sm:$0xff]
        %v3140 = vld [vmem:[%s3133 + $0x30] sm:$0xff]
        %v3141 = vld [vmem:[%s3133 + $0x38] sm:$0xff]
        %v3142 = vld [vmem:[%s3133 + $0x40] sm:$0xff]
        %v3143 = vld [vmem:[%s3133 + $0x48] sm:$0xff]
        %v3144 = vld [vmem:[%s3133 + $0x50] sm:$0xff]
        %v3145 = vld [vmem:[%s3133 + $0x58] sm:$0xff]
        %v3146 = vld [vmem:[%s3133 + $0x60] sm:$0xff]
        %v3147 = vld [vmem:[%s3133 + $0x68] sm:$0xff]
        %v3148 = vld [vmem:[%s3133 + $0x70] sm:$0xff]
        %v3149 = vld [vmem:[%s3133 + $0x78] sm:$0xff]
        %v3150 = vld [vmem:[%s3133 + $0x80] sm:$0xff]
        %v3151 = vld [vmem:[%s3133 + $0x88] sm:$0xff]
        %v3152 = vld [vmem:[%s3133 + $0x90] sm:$0xff]
        %v3153 = vld [vmem:[%s3133 + $0x98] sm:$0xff]
        %v3154 = vld [vmem:[%s3133 + $0xa0] sm:$0xff]
        %v3155 = vld [vmem:[%s3133 + $0xa8] sm:$0xff]
        %v3156 = vld [vmem:[%s3133 + $0xb0] sm:$0xff]
        %v3157 = vld [vmem:[%s3133 + $0xb8] sm:$0xff]
        %v3158 = vld [vmem:[%s3133 + $0xc0] sm:$0xff]
        %v3159 = vld [vmem:[%s3133 + $0xc8] sm:$0xff]
        %v3160 = vld [vmem:[%s3133 + $0xd0] sm:$0xff]
        %v3161 = vld [vmem:[%s3133 + $0xd8] sm:$0xff]
        %v3162 = vld [vmem:[%s3133 + $0xe0] sm:$0xff]
        %v3163 = vld [vmem:[%s3133 + $0xe8] sm:$0xff]
        %v3164 = vld [vmem:[%s3133 + $0xf0] sm:$0xff]
        %v3165 = vld [vmem:[%s3133 + $0xf8] sm:$0xff]
        %v3176 = vrot.slane %v3129, 1
        %v3177 = vrot.slane %v3091, 1
        %v3178 = vsel %vm1043, %v3176, %v3177
        %v3179 = vrot.slane %v3130, 1
        %v3180 = vrot.slane %v3092, 1
        %v3181 = vsel %vm1043, %v3179, %v3180
        %v3182 = vrot.slane %v3093, 1
        %v3183 = vsel %vm1043, %v3177, %v3182
        %v3184 = vrot.slane %v3094, 1
        %v3185 = vsel %vm1043, %v3180, %v3184
        %v3186 = vrot.slane %v3095, 1
        %v3187 = vsel %vm1043, %v3182, %v3186
        %v3188 = vrot.slane %v3096, 1
        %v3189 = vsel %vm1043, %v3184, %v3188
        %v3190 = vrot.slane %v3131, 1
        %v3191 = vsel %vm1043, %v3186, %v3190
        %v3192 = vrot.slane %v3132, 1
        %v3193 = vsel %vm1043, %v3188, %v3192
        %3202 = vmatpush.msra.mxu0 %v3149
        %3203 = vmatpush.msra.mxu0 %v3148
        %3204 = vmatpush.msra.mxu0 %v3147
        %3205 = vmatpush.msra.mxu0 %v3146
        %3206 = vmatpush.msra.mxu0 %v3145
        %3207 = vmatpush.msra.mxu0 %v3144
        %3208 = vmatpush.msra.mxu0 %v3143
        %3209 = vmatpush.msra.mxu0 %v3142
        %3210 = vmatpush.msra.mxu0 %v3141
        %3211 = vmatpush.msra.mxu0 %v3140
        %3212 = vmatpush.msra.mxu0 %v3139
        %3213 = vmatpush.msra.mxu0 %v3138
        %3214 = vmatpush.msra.mxu0 %v3137
        %3215 = vmatpush.msra.mxu0 %v3136
        %3216 = vmatpush.msra.mxu0 %v3135
        %3217 = vmatpush.msra.mxu0 %v3134
        %3218 = vmatmul.f32.gmra.mxu0 %v3178
        %v3219 = vpop.f32.mrf.mxu0
        %v3220 = vadd.f32 0.0, %v3219
        %3221 = vmatmul.f32.gmra.mxu0 %v3183
        %v3222 = vpop.f32.mrf.mxu0
        %v3223 = vadd.f32 0.0, %v3222
        %3224 = vmatmul.f32.gmra.mxu0 %v3187
        %v3225 = vpop.f32.mrf.mxu0
        %v3226 = vadd.f32 0.0, %v3225
        %3227 = vmatmul.f32.gmra.mxu0 %v3191
        %v3228 = vpop.f32.mrf.mxu0
        %v3229 = vadd.f32 0.0, %v3228
        %3230 = vdwg.mxu0
        %3231 = vmatpush.msra.mxu0 %v3165
        %3232 = vmatpush.msra.mxu0 %v3164
        %3233 = vmatpush.msra.mxu0 %v3163
        %3234 = vmatpush.msra.mxu0 %v3162
        %3235 = vmatpush.msra.mxu0 %v3161
        %3236 = vmatpush.msra.mxu0 %v3160
        %3237 = vmatpush.msra.mxu0 %v3159
        %3238 = vmatpush.msra.mxu0 %v3158
        %3239 = vmatpush.msra.mxu0 %v3157
        %3240 = vmatpush.msra.mxu0 %v3156
        %3241 = vmatpush.msra.mxu0 %v3155
        %3242 = vmatpush.msra.mxu0 %v3154
        %3243 = vmatpush.msra.mxu0 %v3153
        %3244 = vmatpush.msra.mxu0 %v3152
        %3245 = vmatpush.msra.mxu0 %v3151
        %3246 = vmatpush.msra.mxu0 %v3150
        %3247 = vmatmul.f32.gmra.mxu0 %v3181
        %v3248 = vpop.f32.mrf.mxu0
        %v3249 = vadd.f32 %v3220, %v3248
        %3250 = vmatmul.f32.gmra.mxu0 %v3185
        %v3251 = vpop.f32.mrf.mxu0
        %v3252 = vadd.f32 %v3223, %v3251
        %3253 = vmatmul.f32.gmra.mxu0 %v3189
        %v3254 = vpop.f32.mrf.mxu0
        %v3255 = vadd.f32 %v3226, %v3254
        %3256 = vmatmul.f32.gmra.mxu0 %v3193
        %v3257 = vpop.f32.mrf.mxu0
        %v3258 = vadd.f32 %v3229, %v3257
        %3259 = vdwg.mxu0
        %3260 = vmatpush.msra.mxu0 %v3112
        %3261 = vmatpush.msra.mxu0 %v3111
        %3262 = vmatpush.msra.mxu0 %v3110
        %3263 = vmatpush.msra.mxu0 %v3109
        %3264 = vmatpush.msra.mxu0 %v3108
        %3265 = vmatpush.msra.mxu0 %v3107
        %3266 = vmatpush.msra.mxu0 %v3106
        %3267 = vmatpush.msra.mxu0 %v3105
        %3268 = vmatpush.msra.mxu0 %v3104
        %3269 = vmatpush.msra.mxu0 %v3103
        %3270 = vmatpush.msra.mxu0 %v3102
        %3271 = vmatpush.msra.mxu0 %v3101
        %3272 = vmatpush.msra.mxu0 %v3100
        %3273 = vmatpush.msra.mxu0 %v3099
        %3274 = vmatpush.msra.mxu0 %v3098
        %3275 = vmatpush.msra.mxu0 %v3097
        %3276 = vmatmul.f32.gmra.mxu0 %v3089
        %v3277 = vpop.f32.mrf.mxu0
        %v3278 = vadd.f32 %v3249, %v3277
        %3279 = vmatmul.f32.gmra.mxu0 %v3091
        %v3280 = vpop.f32.mrf.mxu0
        %v3281 = vadd.f32 %v3252, %v3280
        %3282 = vmatmul.f32.gmra.mxu0 %v3093
        %v3283 = vpop.f32.mrf.mxu0
        %v3284 = vadd.f32 %v3255, %v3283
        %3285 = vmatmul.f32.gmra.mxu0 %v3095
        %v3286 = vpop.f32.mrf.mxu0
        %v3287 = vadd.f32 %v3258, %v3286
        %3288 = vdwg.mxu0
        %3289 = vmatpush.msra.mxu0 %v3128
        %3290 = vmatpush.msra.mxu0 %v3127
        %3291 = vmatpush.msra.mxu0 %v3126
        %3292 = vmatpush.msra.mxu0 %v3125
        %3293 = vmatpush.msra.mxu0 %v3124
        %3294 = vmatpush.msra.mxu0 %v3123
        %3295 = vmatpush.msra.mxu0 %v3122
        %3296 = vmatpush.msra.mxu0 %v3121
        %3297 = vmatpush.msra.mxu0 %v3120
        %3298 = vmatpush.msra.mxu0 %v3119
        %3299 = vmatpush.msra.mxu0 %v3118
        %3300 = vmatpush.msra.mxu0 %v3117
        %3301 = vmatpush.msra.mxu0 %v3116
        %3302 = vmatpush.msra.mxu0 %v3115
        %3303 = vmatpush.msra.mxu0 %v3114
        %3304 = vmatpush.msra.mxu0 %v3113
        %3305 = vmatmul.f32.gmra.mxu0 %v3090
        %v3306 = vpop.f32.mrf.mxu0
        %v3307 = vadd.f32 %v3278, %v3306
        %3308 = vmatmul.f32.gmra.mxu0 %v3092
        %v3309 = vpop.f32.mrf.mxu0
        %v3310 = vadd.f32 %v3281, %v3309
        %3311 = vmatmul.f32.gmra.mxu0 %v3094
        %v3312 = vpop.f32.mrf.mxu0
        %v3313 = vadd.f32 %v3284, %v3312
        %3314 = vmatmul.f32.gmra.mxu0 %v3096
        %v3315 = vpop.f32.mrf.mxu0
        %v3316 = vadd.f32 %v3287, %v3315
        %3317 = vdwg.mxu0
        %v3318 = vld [vmem:[#allocation2] sm:$0xfc]
        %v3319 = vld [vmem:[#allocation2 + $0x8] sm:$0xfc]
        %v3320 = vld [vmem:[#allocation2 + $0x40] sm:$0x3]
        %v3321 = vld [vmem:[#allocation2 + $0x48] sm:$0x3]
        %s3322 = scalar_lea.vmem [#allocation11], 512
        %v3323 = vld [vmem:[%s3322] sm:$0xff]
        %v3324 = vld [vmem:[%s3322 + $0x8] sm:$0xff]
        %v3325 = vld [vmem:[%s3322 + $0x10] sm:$0xff]
        %v3326 = vld [vmem:[%s3322 + $0x18] sm:$0xff]
        %v3327 = vld [vmem:[%s3322 + $0x20] sm:$0xff]
        %v3328 = vld [vmem:[%s3322 + $0x28] sm:$0xff]
        %v3329 = vld [vmem:[%s3322 + $0x30] sm:$0xff]
        %v3330 = vld [vmem:[%s3322 + $0x38] sm:$0xff]
        %v3331 = vld [vmem:[%s3322 + $0x40] sm:$0xff]
        %v3332 = vld [vmem:[%s3322 + $0x48] sm:$0xff]
        %v3333 = vld [vmem:[%s3322 + $0x50] sm:$0xff]
        %v3334 = vld [vmem:[%s3322 + $0x58] sm:$0xff]
        %v3335 = vld [vmem:[%s3322 + $0x60] sm:$0xff]
        %v3336 = vld [vmem:[%s3322 + $0x68] sm:$0xff]
        %v3337 = vld [vmem:[%s3322 + $0x70] sm:$0xff]
        %v3338 = vld [vmem:[%s3322 + $0x78] sm:$0xff]
        %v3339 = vld [vmem:[%s3322 + $0x80] sm:$0xff]
        %v3340 = vld [vmem:[%s3322 + $0x88] sm:$0xff]
        %v3341 = vld [vmem:[%s3322 + $0x90] sm:$0xff]
        %v3342 = vld [vmem:[%s3322 + $0x98] sm:$0xff]
        %v3343 = vld [vmem:[%s3322 + $0xa0] sm:$0xff]
        %v3344 = vld [vmem:[%s3322 + $0xa8] sm:$0xff]
        %v3345 = vld [vmem:[%s3322 + $0xb0] sm:$0xff]
        %v3346 = vld [vmem:[%s3322 + $0xb8] sm:$0xff]
        %v3347 = vld [vmem:[%s3322 + $0xc0] sm:$0xff]
        %v3348 = vld [vmem:[%s3322 + $0xc8] sm:$0xff]
        %v3349 = vld [vmem:[%s3322 + $0xd0] sm:$0xff]
        %v3350 = vld [vmem:[%s3322 + $0xd8] sm:$0xff]
        %v3351 = vld [vmem:[%s3322 + $0xe0] sm:$0xff]
        %v3352 = vld [vmem:[%s3322 + $0xe8] sm:$0xff]
        %v3353 = vld [vmem:[%s3322 + $0xf0] sm:$0xff]
        %v3354 = vld [vmem:[%s3322 + $0xf8] sm:$0xff]
        %v3359 = vrot.slane %v3318, 2
        %v3360 = vrot.slane %v3091, 2
        %v3361 = vsel %vm1375, %v3359, %v3360
        %v3362 = vrot.slane %v3319, 2
        %v3363 = vrot.slane %v3092, 2
        %v3364 = vsel %vm1375, %v3362, %v3363
        %v3365 = vrot.slane %v3093, 2
        %v3366 = vsel %vm1375, %v3360, %v3365
        %v3367 = vrot.slane %v3094, 2
        %v3368 = vsel %vm1375, %v3363, %v3367
        %v3369 = vrot.slane %v3095, 2
        %v3370 = vsel %vm1375, %v3365, %v3369
        %v3371 = vrot.slane %v3096, 2
        %v3372 = vsel %vm1375, %v3367, %v3371
        %v3373 = vrot.slane %v3320, 2
        %v3374 = vsel %vm1375, %v3369, %v3373
        %v3375 = vrot.slane %v3321, 2
        %v3376 = vsel %vm1375, %v3371, %v3375
        %3385 = vmatpush.msra.mxu0 %v3338
        %3386 = vmatpush.msra.mxu0 %v3337
        %3387 = vmatpush.msra.mxu0 %v3336
        %3388 = vmatpush.msra.mxu0 %v3335
        %3389 = vmatpush.msra.mxu0 %v3334
        %3390 = vmatpush.msra.mxu0 %v3333
        %3391 = vmatpush.msra.mxu0 %v3332
        %3392 = vmatpush.msra.mxu0 %v3331
        %3393 = vmatpush.msra.mxu0 %v3330
        %3394 = vmatpush.msra.mxu0 %v3329
        %3395 = vmatpush.msra.mxu0 %v3328
        %3396 = vmatpush.msra.mxu0 %v3327
        %3397 = vmatpush.msra.mxu0 %v3326
        %3398 = vmatpush.msra.mxu0 %v3325
        %3399 = vmatpush.msra.mxu0 %v3324
        %3400 = vmatpush.msra.mxu0 %v3323
        %3401 = vmatmul.f32.gmra.mxu0 %v3361
        %v3402 = vpop.f32.mrf.mxu0
        %v3403 = vadd.f32 0.0, %v3402
        %3404 = vmatmul.f32.gmra.mxu0 %v3366
        %v3405 = vpop.f32.mrf.mxu0
        %v3406 = vadd.f32 0.0, %v3405
        %3407 = vmatmul.f32.gmra.mxu0 %v3370
        %v3408 = vpop.f32.mrf.mxu0
        %v3409 = vadd.f32 0.0, %v3408
        %3410 = vmatmul.f32.gmra.mxu0 %v3374
        %v3411 = vpop.f32.mrf.mxu0
        %v3412 = vadd.f32 0.0, %v3411
        %3413 = vdwg.mxu0
        %3414 = vmatpush.msra.mxu0 %v3354
        %3415 = vmatpush.msra.mxu0 %v3353
        %3416 = vmatpush.msra.mxu0 %v3352
        %3417 = vmatpush.msra.mxu0 %v3351
        %3418 = vmatpush.msra.mxu0 %v3350
        %3419 = vmatpush.msra.mxu0 %v3349
        %3420 = vmatpush.msra.mxu0 %v3348
        %3421 = vmatpush.msra.mxu0 %v3347
        %3422 = vmatpush.msra.mxu0 %v3346
        %3423 = vmatpush.msra.mxu0 %v3345
        %3424 = vmatpush.msra.mxu0 %v3344
        %3425 = vmatpush.msra.mxu0 %v3343
        %3426 = vmatpush.msra.mxu0 %v3342
        %3427 = vmatpush.msra.mxu0 %v3341
        %3428 = vmatpush.msra.mxu0 %v3340
        %3429 = vmatpush.msra.mxu0 %v3339
        %3430 = vmatmul.f32.gmra.mxu0 %v3364
        %v3431 = vpop.f32.mrf.mxu0
        %v3432 = vadd.f32 %v3403, %v3431
        %3433 = vmatmul.f32.gmra.mxu0 %v3368
        %v3434 = vpop.f32.mrf.mxu0
        %v3435 = vadd.f32 %v3406, %v3434
        %3436 = vmatmul.f32.gmra.mxu0 %v3372
        %v3437 = vpop.f32.mrf.mxu0
        %v3438 = vadd.f32 %v3409, %v3437
        %3439 = vmatmul.f32.gmra.mxu0 %v3376
        %v3440 = vpop.f32.mrf.mxu0
        %v3441 = vadd.f32 %v3412, %v3440
        %3442 = vdwg.mxu0
        %v3443 = vadd.f32 %v3307, %v3432
        %v3444 = vadd.f32 %v3310, %v3435
        %v3445 = vadd.f32 %v3313, %v3438
        %v3446 = vadd.f32 %v3316, %v3441
        %v3447 = vadd.f32 %v3443, %v3444
        %v3448 = vadd.f32 %v3447, %v3445
        %v3449 = vadd.f32 %v3448, %v3446
        %v3450 = vrot.slane %v3449, 4
        %v3451 = vadd.f32 %v3449, %v3450
        %v3452 = vrot.slane %v3451, 2
        %v3453 = vadd.f32 %v3451, %v3452
        %v3454 = vrot.slane %v3453, 1
        %v3455 = vadd.f32 %v3453, %v3454
        %v3456 = vmul.f32 %v3443, %v3443
        %v3457 = vmul.f32 %v3444, %v3444
        %v3458 = vmul.f32 %v3445, %v3445
        %v3459 = vmul.f32 %v3446, %v3446
        %v3460 = vadd.f32 %v3456, %v3457
        %v3461 = vadd.f32 %v3460, %v3458
        %v3462 = vadd.f32 %v3461, %v3459
        %v3463 = vrot.slane %v3462, 4
        %v3464 = vadd.f32 %v3462, %v3463
        %v3465 = vrot.slane %v3464, 2
        %v3466 = vadd.f32 %v3464, %v3465
        %v3467 = vrot.slane %v3466, 1
        %v3468 = vadd.f32 %v3466, %v3467
        %3469 = vadd.xlane.f32.xlu0 %v3455
        %v3470 = vpop.xlane.xlu0 %3469
        %v3471 = vrcp.pop 4096.0
        %v3472 = vmul.f32 4096.0, %v3471
        %v3473 = vsub.f32 1.0, %v3472
        %v3474 = vmul.f32 %v3471, %v3473
        %v3475 = vadd.f32 %v3471, %v3474
        %vm3476 = vweird.f32 %v3471
        %v3477 = vsel %vm3476, %v3471, %v3475
        %v3478 = vmul.f32 %v3470, %v3477
        %3479 = vadd.xlane.f32.xlu0 %v3468
        %v3480 = vpop.xlane.xlu0 %3479
        %v3481 = vmul.f32 %v3480, %v3477
        %v3482 = vmul.f32 %v3478, %v3478
        %v3483 = vsub.f32 %v3481, %v3482
        %v3484 = vadd.f32 %v3483, 1e-05
        %v3485 = vrsqrt.pop %v3484
        %v3486 = vmul.f32 %v3485, %v3484
        %v3487 = vmul.f32 %v3486, %v3485
        %v3488 = vmul.f32 0.5, %v3487
        %v3489 = vsub.f32 1.5, %v3488
        %v3490 = vmul.f32 %v3485, %v3489
        %vm3491 = vweird.f32 %v3484
        %vm3492 = vweird.f32 %v3485
        %vm3493 = vmor %vm3491, %vm3492
        %v3494 = vsel %vm3493, %v3485, %v3490
        %v3495 = vld [vmem:[%s12] sm:$0x1]
        %v3496 = vmul.f32 %v3495, %v3494
        %v3497 = vld [vmem:[%s13] sm:$0x1]
        %v3498 = vmul.f32 %v3478, %v3496
        %v3499 = vsub.f32 %v3497, %v3498
        %v3501 = vperm.slane %v3496, 0
        %v3503 = vmul.f32 %v3443, %v3501
        %v3504 = vmul.f32 %v3444, %v3501
        %v3505 = vmul.f32 %v3445, %v3501
        %v3506 = vmul.f32 %v3446, %v3501
        %v3508 = vperm.slane %v3499, 0
        %v3510 = vadd.f32 %v3503, %v3508
        %v3511 = vadd.f32 %v3504, %v3508
        %v3512 = vadd.f32 %v3505, %v3508
        %v3513 = vadd.f32 %v3506, %v3508
        %v3514 = vmul.f32 %v3510, 0.5
        %v3515 = vmul.f32 %v3511, 0.5
        %v3516 = vmul.f32 %v3512, 0.5
        %v3517 = vmul.f32 %v3513, 0.5
        %v3518 = vmul.f32 %v3510, 0.70710677
        %v3519 = vmul.f32 %v3511, 0.70710677
        %v3520 = vmul.f32 %v3512, 0.70710677
        %v3521 = vmul.f32 %v3513, 0.70710677
        %vm3522 = vcmp.ge.f32.partialorder %v3518, 0.0
        %vm3523 = vcmp.ge.f32.partialorder %v3519, 0.0
        %vm3524 = vcmp.ge.f32.partialorder %v3520, 0.0
        %vm3525 = vcmp.ge.f32.partialorder %v3521, 0.0
        %v3526 = vsel %vm3522, 1.0, -1.0
        %v3527 = vsel %vm3523, 1.0, -1.0
        %v3528 = vsel %vm3524, 1.0, -1.0
        %v3529 = vsel %vm3525, 1.0, -1.0
        %v3530 = vand.u32 2147483647, %v3518
        %v3531 = vand.u32 2147483647, %v3519
        %v3532 = vand.u32 2147483647, %v3520
        %v3533 = vand.u32 2147483647, %v3521
        %v3534 = vmul.f32 %v3530, 0.3275911
        %v3535 = vmul.f32 %v3531, 0.3275911
        %v3536 = vmul.f32 %v3532, 0.3275911
        %v3537 = vmul.f32 %v3533, 0.3275911
        %v3538 = vadd.f32 %v3534, 1.0
        %v3539 = vadd.f32 %v3535, 1.0
        %v3540 = vadd.f32 %v3536, 1.0
        %v3541 = vadd.f32 %v3537, 1.0
        %v3542 = vrcp.pop %v3538
        %v3543 = vmul.f32 %v3538, %v3542
        %v3544 = vsub.f32 1.0, %v3543
        %v3545 = vmul.f32 %v3542, %v3544
        %v3546 = vadd.f32 %v3542, %v3545
        %vm3547 = vweird.f32 %v3538
        %vm3548 = vweird.f32 %v3542
        %vm3549 = vmor %vm3547, %vm3548
        %v3550 = vsel %vm3549, %v3542, %v3546
        %v3551 = vand.u32 2147483647, %v3538
        %vm3552 = vcmp.eq.f32.partialorder %v3551, 8.507059e+37
        %v3553 = vand.u32 %v3538, 2147483648
        %v3554 = vor.u32 1.1754944e-38, %v3553
        %v3555 = vsel %vm3552, %v3554, %v3550
        %v3556 = vmul.f32 1.0, %v3555
        %v3557 = vrcp.pop %v3539
        %v3558 = vmul.f32 %v3539, %v3557
        %v3559 = vsub.f32 1.0, %v3558
        %v3560 = vmul.f32 %v3557, %v3559
        %v3561 = vadd.f32 %v3557, %v3560
        %vm3562 = vweird.f32 %v3539
        %vm3563 = vweird.f32 %v3557
        %vm3564 = vmor %vm3562, %vm3563
        %v3565 = vsel %vm3564, %v3557, %v3561
        %v3566 = vand.u32 2147483647, %v3539
        %vm3567 = vcmp.eq.f32.partialorder %v3566, 8.507059e+37
        %v3568 = vand.u32 %v3539, 2147483648
        %v3569 = vor.u32 1.1754944e-38, %v3568
        %v3570 = vsel %vm3567, %v3569, %v3565
        %v3571 = vmul.f32 1.0, %v3570
        %v3572 = vrcp.pop %v3540
        %v3573 = vmul.f32 %v3540, %v3572
        %v3574 = vsub.f32 1.0, %v3573
        %v3575 = vmul.f32 %v3572, %v3574
        %v3576 = vadd.f32 %v3572, %v3575
        %vm3577 = vweird.f32 %v3540
        %vm3578 = vweird.f32 %v3572
        %vm3579 = vmor %vm3577, %vm3578
        %v3580 = vsel %vm3579, %v3572, %v3576
        %v3581 = vand.u32 2147483647, %v3540
        %vm3582 = vcmp.eq.f32.partialorder %v3581, 8.507059e+37
        %v3583 = vand.u32 %v3540, 2147483648
        %v3584 = vor.u32 1.1754944e-38, %v3583
        %v3585 = vsel %vm3582, %v3584, %v3580
        %v3586 = vmul.f32 1.0, %v3585
        %v3587 = vrcp.pop %v3541
        %v3588 = vmul.f32 %v3541, %v3587
        %v3589 = vsub.f32 1.0, %v3588
        %v3590 = vmul.f32 %v3587, %v3589
        %v3591 = vadd.f32 %v3587, %v3590
        %vm3592 = vweird.f32 %v3541
        %vm3593 = vweird.f32 %v3587
        %vm3594 = vmor %vm3592, %vm3593
        %v3595 = vsel %vm3594, %v3587, %v3591
        %v3596 = vand.u32 2147483647, %v3541
        %vm3597 = vcmp.eq.f32.partialorder %v3596, 8.507059e+37
        %v3598 = vand.u32 %v3541, 2147483648
        %v3599 = vor.u32 1.1754944e-38, %v3598
        %v3600 = vsel %vm3597, %v3599, %v3595
        %v3601 = vmul.f32 1.0, %v3600
        %v3602 = vmul.f32 %v3556, 1.0614054
        %v3603 = vmul.f32 %v3571, 1.0614054
        %v3604 = vmul.f32 %v3586, 1.0614054
        %v3605 = vmul.f32 %v3601, 1.0614054
        %v3606 = vadd.f32 %v3602, -1.4531521
        %v3607 = vadd.f32 %v3603, -1.4531521
        %v3608 = vadd.f32 %v3604, -1.4531521
        %v3609 = vadd.f32 %v3605, -1.4531521
        %v3610 = vmul.f32 %v3606, %v3556
        %v3611 = vmul.f32 %v3607, %v3571
        %v3612 = vmul.f32 %v3608, %v3586
        %v3613 = vmul.f32 %v3609, %v3601
        %v3614 = vadd.f32 %v3610, 1.4214138
        %v3615 = vadd.f32 %v3611, 1.4214138
        %v3616 = vadd.f32 %v3612, 1.4214138
        %v3617 = vadd.f32 %v3613, 1.4214138
        %v3618 = vmul.f32 %v3614, %v3556
        %v3619 = vmul.f32 %v3615, %v3571
        %v3620 = vmul.f32 %v3616, %v3586
        %v3621 = vmul.f32 %v3617, %v3601
        %v3622 = vadd.f32 %v3618, -0.28449672
        %v3623 = vadd.f32 %v3619, -0.28449672
        %v3624 = vadd.f32 %v3620, -0.28449672
        %v3625 = vadd.f32 %v3621, -0.28449672
        %v3626 = vmul.f32 %v3622, %v3556
        %v3627 = vmul.f32 %v3623, %v3571
        %v3628 = vmul.f32 %v3624, %v3586
        %v3629 = vmul.f32 %v3625, %v3601
        %v3630 = vadd.f32 %v3626, 0.2548296
        %v3631 = vadd.f32 %v3627, 0.2548296
        %v3632 = vadd.f32 %v3628, 0.2548296
        %v3633 = vadd.f32 %v3629, 0.2548296
        %v3634 = vmul.f32 %v3630, %v3556
        %v3635 = vmul.f32 %v3631, %v3571
        %v3636 = vmul.f32 %v3632, %v3586
        %v3637 = vmul.f32 %v3633, %v3601
        %v3638 = vsub.f32 0.0, %v3530
        %v3639 = vsub.f32 0.0, %v3531
        %v3640 = vsub.f32 0.0, %v3532
        %v3641 = vsub.f32 0.0, %v3533
        %v3642 = vmul.f32 %v3638, %v3530
        %v3643 = vmul.f32 %v3639, %v3531
        %v3644 = vmul.f32 %v3640, %v3532
        %v3645 = vmul.f32 %v3641, %v3533
        %v3646 = vmul.f32 %v3642, 1.442695
        %v3647 = vpow.pop %v3646
        %v3648 = vmul.f32 %v3643, 1.442695
        %v3649 = vpow.pop %v3648
        %v3650 = vmul.f32 %v3644, 1.442695
        %v3651 = vpow.pop %v3650
        %v3652 = vmul.f32 %v3645, 1.442695
        %v3653 = vpow.pop %v3652
        %v3654 = vmul.f32 %v3634, %v3647
        %v3655 = vmul.f32 %v3635, %v3649
        %v3656 = vmul.f32 %v3636, %v3651
        %v3657 = vmul.f32 %v3637, %v3653
        %v3658 = vsub.f32 1.0, %v3654
        %v3659 = vsub.f32 1.0, %v3655
        %v3660 = vsub.f32 1.0, %v3656
        %v3661 = vsub.f32 1.0, %v3657
        %v3662 = vmul.f32 %v3526, %v3658
        %v3663 = vmul.f32 %v3527, %v3659
        %v3664 = vmul.f32 %v3528, %v3660
        %v3665 = vmul.f32 %v3529, %v3661
        %v3666 = vadd.f32 %v3662, 1.0
        %v3667 = vadd.f32 %v3663, 1.0
        %v3668 = vadd.f32 %v3664, 1.0
        %v3669 = vadd.f32 %v3665, 1.0
        %v3670 = vmul.f32 %v3514, %v3666
        %v3671 = vmul.f32 %v3515, %v3667
        %v3672 = vmul.f32 %v3516, %v3668
        %v3673 = vmul.f32 %v3517, %v3669
        %v3678 = vrot.slane %v3670, 7
        %v3679 = vrot.slane %v3671, 7
        %v3680 = vsel %vm857, %v3678, %v3679
        %v3681 = vrot.slane %v3672, 7
        %v3682 = vsel %vm857, %v3679, %v3681
        %v3683 = vrot.slane %v3673, 7
        %v3684 = vsel %vm857, %v3681, %v3683
        %3690 = vst [vmem:[#allocation2] sm:$0xfe] %v3678
        %3691 = vst [vmem:[#allocation2 + $0x10] sm:$0xff] %v3680
        %3692 = vst [vmem:[#allocation2 + $0x20] sm:$0xff] %v3682
        %3693 = vst [vmem:[#allocation2 + $0x30] sm:$0xff] %v3684
        %3694 = vst [vmem:[#allocation2 + $0x40] sm:$0x1] %v3683
        %v3695 = vld [vmem:[#allocation2] sm:$0xff]
        %v3696 = vld [vmem:[#allocation2 + $0x10] sm:$0xff]
        %v3697 = vld [vmem:[#allocation2 + $0x20] sm:$0xff]
        %v3698 = vld [vmem:[#allocation2 + $0x30] sm:$0xff]
        %v3699 = vld [vmem:[#allocation12] sm:$0xff]
        %v3700 = vld [vmem:[#allocation12 + $0x8] sm:$0xff]
        %v3701 = vld [vmem:[#allocation12 + $0x10] sm:$0xff]
        %v3702 = vld [vmem:[#allocation12 + $0x18] sm:$0xff]
        %v3703 = vld [vmem:[#allocation12 + $0x20] sm:$0xff]
        %v3704 = vld [vmem:[#allocation12 + $0x28] sm:$0xff]
        %v3705 = vld [vmem:[#allocation12 + $0x30] sm:$0xff]
        %v3706 = vld [vmem:[#allocation12 + $0x38] sm:$0xff]
        %v3707 = vld [vmem:[#allocation12 + $0x40] sm:$0xff]
        %v3708 = vld [vmem:[#allocation12 + $0x48] sm:$0xff]
        %v3709 = vld [vmem:[#allocation12 + $0x50] sm:$0xff]
        %v3710 = vld [vmem:[#allocation12 + $0x58] sm:$0xff]
        %v3711 = vld [vmem:[#allocation12 + $0x60] sm:$0xff]
        %v3712 = vld [vmem:[#allocation12 + $0x68] sm:$0xff]
        %v3713 = vld [vmem:[#allocation12 + $0x70] sm:$0xff]
        %v3714 = vld [vmem:[#allocation12 + $0x78] sm:$0xff]
        %v3715 = vld [vmem:[#allocation12 + $0x80] sm:$0xff]
        %v3716 = vld [vmem:[#allocation12 + $0x88] sm:$0xff]
        %v3717 = vld [vmem:[#allocation12 + $0x90] sm:$0xff]
        %v3718 = vld [vmem:[#allocation12 + $0x98] sm:$0xff]
        %v3719 = vld [vmem:[#allocation12 + $0xa0] sm:$0xff]
        %v3720 = vld [vmem:[#allocation12 + $0xa8] sm:$0xff]
        %v3721 = vld [vmem:[#allocation12 + $0xb0] sm:$0xff]
        %v3722 = vld [vmem:[#allocation12 + $0xb8] sm:$0xff]
        %v3723 = vld [vmem:[#allocation12 + $0xc0] sm:$0xff]
        %v3724 = vld [vmem:[#allocation12 + $0xc8] sm:$0xff]
        %v3725 = vld [vmem:[#allocation12 + $0xd0] sm:$0xff]
        %v3726 = vld [vmem:[#allocation12 + $0xd8] sm:$0xff]
        %v3727 = vld [vmem:[#allocation12 + $0xe0] sm:$0xff]
        %v3728 = vld [vmem:[#allocation12 + $0xe8] sm:$0xff]
        %v3729 = vld [vmem:[#allocation12 + $0xf0] sm:$0xff]
        %v3730 = vld [vmem:[#allocation12 + $0xf8] sm:$0xff]
        %v3731 = vld [vmem:[#allocation2] sm:$0xfe]
        %v3732 = vld [vmem:[#allocation2 + $0x40] sm:$0x1]
        %s3733 = scalar_lea.vmem [#allocation12], 256
        %v3734 = vld [vmem:[%s3733] sm:$0xff]
        %v3735 = vld [vmem:[%s3733 + $0x8] sm:$0xff]
        %v3736 = vld [vmem:[%s3733 + $0x10] sm:$0xff]
        %v3737 = vld [vmem:[%s3733 + $0x18] sm:$0xff]
        %v3738 = vld [vmem:[%s3733 + $0x20] sm:$0xff]
        %v3739 = vld [vmem:[%s3733 + $0x28] sm:$0xff]
        %v3740 = vld [vmem:[%s3733 + $0x30] sm:$0xff]
        %v3741 = vld [vmem:[%s3733 + $0x38] sm:$0xff]
        %v3742 = vld [vmem:[%s3733 + $0x40] sm:$0xff]
        %v3743 = vld [vmem:[%s3733 + $0x48] sm:$0xff]
        %v3744 = vld [vmem:[%s3733 + $0x50] sm:$0xff]
        %v3745 = vld [vmem:[%s3733 + $0x58] sm:$0xff]
        %v3746 = vld [vmem:[%s3733 + $0x60] sm:$0xff]
        %v3747 = vld [vmem:[%s3733 + $0x68] sm:$0xff]
        %v3748 = vld [vmem:[%s3733 + $0x70] sm:$0xff]
        %v3749 = vld [vmem:[%s3733 + $0x78] sm:$0xff]
        %v3750 = vld [vmem:[%s3733 + $0x80] sm:$0xff]
        %v3751 = vld [vmem:[%s3733 + $0x88] sm:$0xff]
        %v3752 = vld [vmem:[%s3733 + $0x90] sm:$0xff]
        %v3753 = vld [vmem:[%s3733 + $0x98] sm:$0xff]
        %v3754 = vld [vmem:[%s3733 + $0xa0] sm:$0xff]
        %v3755 = vld [vmem:[%s3733 + $0xa8] sm:$0xff]
        %v3756 = vld [vmem:[%s3733 + $0xb0] sm:$0xff]
        %v3757 = vld [vmem:[%s3733 + $0xb8] sm:$0xff]
        %v3758 = vld [vmem:[%s3733 + $0xc0] sm:$0xff]
        %v3759 = vld [vmem:[%s3733 + $0xc8] sm:$0xff]
        %v3760 = vld [vmem:[%s3733 + $0xd0] sm:$0xff]
        %v3761 = vld [vmem:[%s3733 + $0xd8] sm:$0xff]
        %v3762 = vld [vmem:[%s3733 + $0xe0] sm:$0xff]
        %v3763 = vld [vmem:[%s3733 + $0xe8] sm:$0xff]
        %v3764 = vld [vmem:[%s3733 + $0xf0] sm:$0xff]
        %v3765 = vld [vmem:[%s3733 + $0xf8] sm:$0xff]
        %v3771 = vrot.slane %v3731, 1
        %v3772 = vrot.slane %v3696, 1
        %v3773 = vsel %vm1043, %v3771, %v3772
        %v3774 = vrot.slane %v3697, 1
        %v3775 = vsel %vm1043, %v3772, %v3774
        %v3776 = vrot.slane %v3698, 1
        %v3777 = vsel %vm1043, %v3774, %v3776
        %v3778 = vrot.slane %v3732, 1
        %v3779 = vsel %vm1043, %v3776, %v3778
        %3784 = vmatpush.msra.mxu0 %v3764
        %3785 = vmatpush.msra.mxu0 %v3762
        %3786 = vmatpush.msra.mxu0 %v3760
        %3787 = vmatpush.msra.mxu0 %v3758
        %3788 = vmatpush.msra.mxu0 %v3756
        %3789 = vmatpush.msra.mxu0 %v3754
        %3790 = vmatpush.msra.mxu0 %v3752
        %3791 = vmatpush.msra.mxu0 %v3750
        %3792 = vmatpush.msra.mxu0 %v3748
        %3793 = vmatpush.msra.mxu0 %v3746
        %3794 = vmatpush.msra.mxu0 %v3744
        %3795 = vmatpush.msra.mxu0 %v3742
        %3796 = vmatpush.msra.mxu0 %v3740
        %3797 = vmatpush.msra.mxu0 %v3738
        %3798 = vmatpush.msra.mxu0 %v3736
        %3799 = vmatpush.msra.mxu0 %v3734
        %3800 = vmatmul.f32.gmra.mxu0 %v3773
        %v3801 = vpop.f32.mrf.mxu0
        %v3802 = vadd.f32 0.0, %v3801
        %3803 = vmatmul.f32.gmra.mxu0 %v3775
        %v3804 = vpop.f32.mrf.mxu0
        %v3805 = vadd.f32 0.0, %v3804
        %3806 = vmatmul.f32.gmra.mxu0 %v3777
        %v3807 = vpop.f32.mrf.mxu0
        %v3808 = vadd.f32 0.0, %v3807
        %3809 = vmatmul.f32.gmra.mxu0 %v3779
        %v3810 = vpop.f32.mrf.mxu0
        %v3811 = vadd.f32 0.0, %v3810
        %3812 = vdwg.mxu0
        %3813 = vmatpush.msra.mxu0 %v3765
        %3814 = vmatpush.msra.mxu0 %v3763
        %3815 = vmatpush.msra.mxu0 %v3761
        %3816 = vmatpush.msra.mxu0 %v3759
        %3817 = vmatpush.msra.mxu0 %v3757
        %3818 = vmatpush.msra.mxu0 %v3755
        %3819 = vmatpush.msra.mxu0 %v3753
        %3820 = vmatpush.msra.mxu0 %v3751
        %3821 = vmatpush.msra.mxu0 %v3749
        %3822 = vmatpush.msra.mxu0 %v3747
        %3823 = vmatpush.msra.mxu0 %v3745
        %3824 = vmatpush.msra.mxu0 %v3743
        %3825 = vmatpush.msra.mxu0 %v3741
        %3826 = vmatpush.msra.mxu0 %v3739
        %3827 = vmatpush.msra.mxu0 %v3737
        %3828 = vmatpush.msra.mxu0 %v3735
        %3829 = vmatmul.f32.gmra.mxu0 %v3773
        %v3830 = vpop.f32.mrf.mxu0
        %v3831 = vadd.f32 0.0, %v3830
        %3832 = vmatmul.f32.gmra.mxu0 %v3775
        %v3833 = vpop.f32.mrf.mxu0
        %v3834 = vadd.f32 0.0, %v3833
        %3835 = vmatmul.f32.gmra.mxu0 %v3777
        %v3836 = vpop.f32.mrf.mxu0
        %v3837 = vadd.f32 0.0, %v3836
        %3838 = vmatmul.f32.gmra.mxu0 %v3779
        %v3839 = vpop.f32.mrf.mxu0
        %v3840 = vadd.f32 0.0, %v3839
        %3841 = vdwg.mxu0
        %3842 = vmatpush.msra.mxu0 %v3729
        %3843 = vmatpush.msra.mxu0 %v3727
        %3844 = vmatpush.msra.mxu0 %v3725
        %3845 = vmatpush.msra.mxu0 %v3723
        %3846 = vmatpush.msra.mxu0 %v3721
        %3847 = vmatpush.msra.mxu0 %v3719
        %3848 = vmatpush.msra.mxu0 %v3717
        %3849 = vmatpush.msra.mxu0 %v3715
        %3850 = vmatpush.msra.mxu0 %v3713
        %3851 = vmatpush.msra.mxu0 %v3711
        %3852 = vmatpush.msra.mxu0 %v3709
        %3853 = vmatpush.msra.mxu0 %v3707
        %3854 = vmatpush.msra.mxu0 %v3705
        %3855 = vmatpush.msra.mxu0 %v3703
        %3856 = vmatpush.msra.mxu0 %v3701
        %3857 = vmatpush.msra.mxu0 %v3699
        %3858 = vmatmul.f32.gmra.mxu0 %v3695
        %v3859 = vpop.f32.mrf.mxu0
        %v3860 = vadd.f32 %v3802, %v3859
        %3861 = vmatmul.f32.gmra.mxu0 %v3696
        %v3862 = vpop.f32.mrf.mxu0
        %v3863 = vadd.f32 %v3805, %v3862
        %3864 = vmatmul.f32.gmra.mxu0 %v3697
        %v3865 = vpop.f32.mrf.mxu0
        %v3866 = vadd.f32 %v3808, %v3865
        %3867 = vmatmul.f32.gmra.mxu0 %v3698
        %v3868 = vpop.f32.mrf.mxu0
        %v3869 = vadd.f32 %v3811, %v3868
        %3870 = vdwg.mxu0
        %3871 = vmatpush.msra.mxu0 %v3730
        %3872 = vmatpush.msra.mxu0 %v3728
        %3873 = vmatpush.msra.mxu0 %v3726
        %3874 = vmatpush.msra.mxu0 %v3724
        %3875 = vmatpush.msra.mxu0 %v3722
        %3876 = vmatpush.msra.mxu0 %v3720
        %3877 = vmatpush.msra.mxu0 %v3718
        %3878 = vmatpush.msra.mxu0 %v3716
        %3879 = vmatpush.msra.mxu0 %v3714
        %3880 = vmatpush.msra.mxu0 %v3712
        %3881 = vmatpush.msra.mxu0 %v3710
        %3882 = vmatpush.msra.mxu0 %v3708
        %3883 = vmatpush.msra.mxu0 %v3706
        %3884 = vmatpush.msra.mxu0 %v3704
        %3885 = vmatpush.msra.mxu0 %v3702
        %3886 = vmatpush.msra.mxu0 %v3700
        %3887 = vmatmul.f32.gmra.mxu0 %v3695
        %v3888 = vpop.f32.mrf.mxu0
        %v3889 = vadd.f32 %v3831, %v3888
        %3890 = vmatmul.f32.gmra.mxu0 %v3696
        %v3891 = vpop.f32.mrf.mxu0
        %v3892 = vadd.f32 %v3834, %v3891
        %3893 = vmatmul.f32.gmra.mxu0 %v3697
        %v3894 = vpop.f32.mrf.mxu0
        %v3895 = vadd.f32 %v3837, %v3894
        %3896 = vmatmul.f32.gmra.mxu0 %v3698
        %v3897 = vpop.f32.mrf.mxu0
        %v3898 = vadd.f32 %v3840, %v3897
        %3899 = vdwg.mxu0
        %v3900 = vld [vmem:[#allocation2] sm:$0xfc]
        %v3901 = vld [vmem:[#allocation2 + $0x40] sm:$0x3]
        %s3902 = scalar_lea.vmem [#allocation12], 512
        %v3903 = vld [vmem:[%s3902] sm:$0xff]
        %v3904 = vld [vmem:[%s3902 + $0x8] sm:$0xff]
        %v3905 = vld [vmem:[%s3902 + $0x10] sm:$0xff]
        %v3906 = vld [vmem:[%s3902 + $0x18] sm:$0xff]
        %v3907 = vld [vmem:[%s3902 + $0x20] sm:$0xff]
        %v3908 = vld [vmem:[%s3902 + $0x28] sm:$0xff]
        %v3909 = vld [vmem:[%s3902 + $0x30] sm:$0xff]
        %v3910 = vld [vmem:[%s3902 + $0x38] sm:$0xff]
        %v3911 = vld [vmem:[%s3902 + $0x40] sm:$0xff]
        %v3912 = vld [vmem:[%s3902 + $0x48] sm:$0xff]
        %v3913 = vld [vmem:[%s3902 + $0x50] sm:$0xff]
        %v3914 = vld [vmem:[%s3902 + $0x58] sm:$0xff]
        %v3915 = vld [vmem:[%s3902 + $0x60] sm:$0xff]
        %v3916 = vld [vmem:[%s3902 + $0x68] sm:$0xff]
        %v3917 = vld [vmem:[%s3902 + $0x70] sm:$0xff]
        %v3918 = vld [vmem:[%s3902 + $0x78] sm:$0xff]
        %v3919 = vld [vmem:[%s3902 + $0x80] sm:$0xff]
        %v3920 = vld [vmem:[%s3902 + $0x88] sm:$0xff]
        %v3921 = vld [vmem:[%s3902 + $0x90] sm:$0xff]
        %v3922 = vld [vmem:[%s3902 + $0x98] sm:$0xff]
        %v3923 = vld [vmem:[%s3902 + $0xa0] sm:$0xff]
        %v3924 = vld [vmem:[%s3902 + $0xa8] sm:$0xff]
        %v3925 = vld [vmem:[%s3902 + $0xb0] sm:$0xff]
        %v3926 = vld [vmem:[%s3902 + $0xb8] sm:$0xff]
        %v3927 = vld [vmem:[%s3902 + $0xc0] sm:$0xff]
        %v3928 = vld [vmem:[%s3902 + $0xc8] sm:$0xff]
        %v3929 = vld [vmem:[%s3902 + $0xd0] sm:$0xff]
        %v3930 = vld [vmem:[%s3902 + $0xd8] sm:$0xff]
        %v3931 = vld [vmem:[%s3902 + $0xe0] sm:$0xff]
        %v3932 = vld [vmem:[%s3902 + $0xe8] sm:$0xff]
        %v3933 = vld [vmem:[%s3902 + $0xf0] sm:$0xff]
        %v3934 = vld [vmem:[%s3902 + $0xf8] sm:$0xff]
        %v3937 = vrot.slane %v3900, 2
        %v3938 = vrot.slane %v3696, 2
        %v3939 = vsel %vm1375, %v3937, %v3938
        %v3940 = vrot.slane %v3697, 2
        %v3941 = vsel %vm1375, %v3938, %v3940
        %v3942 = vrot.slane %v3698, 2
        %v3943 = vsel %vm1375, %v3940, %v3942
        %v3944 = vrot.slane %v3901, 2
        %v3945 = vsel %vm1375, %v3942, %v3944
        %3950 = vmatpush.msra.mxu0 %v3933
        %3951 = vmatpush.msra.mxu0 %v3931
        %3952 = vmatpush.msra.mxu0 %v3929
        %3953 = vmatpush.msra.mxu0 %v3927
        %3954 = vmatpush.msra.mxu0 %v3925
        %3955 = vmatpush.msra.mxu0 %v3923
        %3956 = vmatpush.msra.mxu0 %v3921
        %3957 = vmatpush.msra.mxu0 %v3919
        %3958 = vmatpush.msra.mxu0 %v3917
        %3959 = vmatpush.msra.mxu0 %v3915
        %3960 = vmatpush.msra.mxu0 %v3913
        %3961 = vmatpush.msra.mxu0 %v3911
        %3962 = vmatpush.msra.mxu0 %v3909
        %3963 = vmatpush.msra.mxu0 %v3907
        %3964 = vmatpush.msra.mxu0 %v3905
        %3965 = vmatpush.msra.mxu0 %v3903
        %3966 = vmatmul.f32.gmra.mxu0 %v3939
        %v3967 = vpop.f32.mrf.mxu0
        %v3968 = vadd.f32 0.0, %v3967
        %3969 = vmatmul.f32.gmra.mxu0 %v3941
        %v3970 = vpop.f32.mrf.mxu0
        %v3971 = vadd.f32 0.0, %v3970
        %3972 = vmatmul.f32.gmra.mxu0 %v3943
        %v3973 = vpop.f32.mrf.mxu0
        %v3974 = vadd.f32 0.0, %v3973
        %3975 = vmatmul.f32.gmra.mxu0 %v3945
        %v3976 = vpop.f32.mrf.mxu0
        %v3977 = vadd.f32 0.0, %v3976
        %3978 = vdwg.mxu0
        %3979 = vmatpush.msra.mxu0 %v3934
        %3980 = vmatpush.msra.mxu0 %v3932
        %3981 = vmatpush.msra.mxu0 %v3930
        %3982 = vmatpush.msra.mxu0 %v3928
        %3983 = vmatpush.msra.mxu0 %v3926
        %3984 = vmatpush.msra.mxu0 %v3924
        %3985 = vmatpush.msra.mxu0 %v3922
        %3986 = vmatpush.msra.mxu0 %v3920
        %3987 = vmatpush.msra.mxu0 %v3918
        %3988 = vmatpush.msra.mxu0 %v3916
        %3989 = vmatpush.msra.mxu0 %v3914
        %3990 = vmatpush.msra.mxu0 %v3912
        %3991 = vmatpush.msra.mxu0 %v3910
        %3992 = vmatpush.msra.mxu0 %v3908
        %3993 = vmatpush.msra.mxu0 %v3906
        %3994 = vmatpush.msra.mxu0 %v3904
        %3995 = vmatmul.f32.gmra.mxu0 %v3939
        %v3996 = vpop.f32.mrf.mxu0
        %v3997 = vadd.f32 0.0, %v3996
        %3998 = vmatmul.f32.gmra.mxu0 %v3941
        %v3999 = vpop.f32.mrf.mxu0
        %v4000 = vadd.f32 0.0, %v3999
        %4001 = vmatmul.f32.gmra.mxu0 %v3943
        %v4002 = vpop.f32.mrf.mxu0
        %v4003 = vadd.f32 0.0, %v4002
        %4004 = vmatmul.f32.gmra.mxu0 %v3945
        %v4005 = vpop.f32.mrf.mxu0
        %v4006 = vadd.f32 0.0, %v4005
        %4007 = vdwg.mxu0
        %v4008 = vadd.f32 %v3860, %v3968
        %v4009 = vadd.f32 %v3889, %v3997
        %v4010 = vadd.f32 %v3863, %v3971
        %v4011 = vadd.f32 %v3892, %v4000
        %v4012 = vadd.f32 %v3866, %v3974
        %v4013 = vadd.f32 %v3895, %v4003
        %v4014 = vadd.f32 %v3869, %v3977
        %v4015 = vadd.f32 %v3898, %v4006
        %v4016 = vadd.f32 %v4008, %v4010
        %v4017 = vadd.f32 %v4016, %v4012
        %v4018 = vadd.f32 %v4017, %v4014
        %v4019 = vrot.slane %v4018, 4
        %v4020 = vadd.f32 %v4018, %v4019
        %v4021 = vrot.slane %v4020, 2
        %v4022 = vadd.f32 %v4020, %v4021
        %v4023 = vrot.slane %v4022, 1
        %v4024 = vadd.f32 %v4022, %v4023
        %v4025 = vadd.f32 %v4009, %v4011
        %v4026 = vadd.f32 %v4025, %v4013
        %v4027 = vadd.f32 %v4026, %v4015
        %v4028 = vrot.slane %v4027, 4
        %v4029 = vadd.f32 %v4027, %v4028
        %v4030 = vrot.slane %v4029, 2
        %v4031 = vadd.f32 %v4029, %v4030
        %v4032 = vrot.slane %v4031, 1
        %v4033 = vadd.f32 %v4031, %v4032
        %v4034 = vmul.f32 %v4008, %v4008
        %v4035 = vmul.f32 %v4009, %v4009
        %v4036 = vmul.f32 %v4010, %v4010
        %v4037 = vmul.f32 %v4011, %v4011
        %v4038 = vmul.f32 %v4012, %v4012
        %v4039 = vmul.f32 %v4013, %v4013
        %v4040 = vmul.f32 %v4014, %v4014
        %v4041 = vmul.f32 %v4015, %v4015
        %v4042 = vadd.f32 %v4034, %v4036
        %v4043 = vadd.f32 %v4042, %v4038
        %v4044 = vadd.f32 %v4043, %v4040
        %v4045 = vrot.slane %v4044, 4
        %v4046 = vadd.f32 %v4044, %v4045
        %v4047 = vrot.slane %v4046, 2
        %v4048 = vadd.f32 %v4046, %v4047
        %v4049 = vrot.slane %v4048, 1
        %v4050 = vadd.f32 %v4048, %v4049
        %v4051 = vadd.f32 %v4035, %v4037
        %v4052 = vadd.f32 %v4051, %v4039
        %v4053 = vadd.f32 %v4052, %v4041
        %v4054 = vrot.slane %v4053, 4
        %v4055 = vadd.f32 %v4053, %v4054
        %v4056 = vrot.slane %v4055, 2
        %v4057 = vadd.f32 %v4055, %v4056
        %v4058 = vrot.slane %v4057, 1
        %v4059 = vadd.f32 %v4057, %v4058
        %v4060 = vadd.f32 %v4024, %v4033
        %4061 = vadd.xlane.f32.xlu0 %v4060
        %v4062 = vpop.xlane.xlu0 %4061
        %v4063 = vmul.f32 %v4062, %v1579
        %v4064 = vadd.f32 %v4050, %v4059
        %4065 = vadd.xlane.f32.xlu0 %v4064
        %v4066 = vpop.xlane.xlu0 %4065
        %v4067 = vmul.f32 %v4066, %v1579
        %v4068 = vmul.f32 %v4063, %v4063
        %v4069 = vsub.f32 %v4067, %v4068
        %v4070 = vadd.f32 %v4069, 1e-05
        %v4071 = vrsqrt.pop %v4070
        %v4072 = vmul.f32 %v4071, %v4070
        %v4073 = vmul.f32 %v4072, %v4071
        %v4074 = vmul.f32 0.5, %v4073
        %v4075 = vsub.f32 1.5, %v4074
        %v4076 = vmul.f32 %v4071, %v4075
        %vm4077 = vweird.f32 %v4070
        %vm4078 = vweird.f32 %v4071
        %vm4079 = vmor %vm4077, %vm4078
        %v4080 = vsel %vm4079, %v4071, %v4076
        %v4081 = vld [vmem:[%s15] sm:$0x3]
        %v4082 = vmul.f32 %v4081, %v4080
        %v4083 = vld [vmem:[%s16] sm:$0x3]
        %v4084 = vmul.f32 %v4063, %v4082
        %v4085 = vsub.f32 %v4083, %v4084
        %v4087 = vperm.slane %v4082, 0
        %v4088 = vperm.slane %v4082, 1
        %v4091 = vmul.f32 %v4008, %v4087
        %v4092 = vmul.f32 %v4009, %v4088
        %v4093 = vmul.f32 %v4010, %v4087
        %v4094 = vmul.f32 %v4011, %v4088
        %v4095 = vmul.f32 %v4012, %v4087
        %v4096 = vmul.f32 %v4013, %v4088
        %v4097 = vmul.f32 %v4014, %v4087
        %v4098 = vmul.f32 %v4015, %v4088
        %v4100 = vperm.slane %v4085, 0
        %v4101 = vperm.slane %v4085, 1
        %v4104 = vadd.f32 %v4091, %v4100
        %v4105 = vadd.f32 %v4092, %v4101
        %v4106 = vadd.f32 %v4093, %v4100
        %v4107 = vadd.f32 %v4094, %v4101
        %v4108 = vadd.f32 %v4095, %v4100
        %v4109 = vadd.f32 %v4096, %v4101
        %v4110 = vadd.f32 %v4097, %v4100
        %v4111 = vadd.f32 %v4098, %v4101
        %v4112 = vld [vmem:[%s688] sm:$0x3]
        %v4114 = vperm.slane %v4112, 0
        %v4115 = vperm.slane %v4112, 1
        %v4118 = vadd.f32 %v4104, %v4114
        %v4119 = vadd.f32 %v4105, %v4115
        %v4120 = vadd.f32 %v4106, %v4114
        %v4121 = vadd.f32 %v4107, %v4115
        %v4122 = vadd.f32 %v4108, %v4114
        %v4123 = vadd.f32 %v4109, %v4115
        %v4124 = vadd.f32 %v4110, %v4114
        %v4125 = vadd.f32 %v4111, %v4115
        %4126 = vst [vmem:[%s679] sm:$0xff] %v4118
        %4127 = vst [vmem:[%s679 + $0x8] sm:$0xff] %v4119
        %4128 = vst [vmem:[%s679 + $0x10] sm:$0xff] %v4120
        %4129 = vst [vmem:[%s679 + $0x18] sm:$0xff] %v4121
        %4130 = vst [vmem:[%s679 + $0x20] sm:$0xff] %v4122
        %4131 = vst [vmem:[%s679 + $0x28] sm:$0xff] %v4123
        %4132 = vst [vmem:[%s679 + $0x30] sm:$0xff] %v4124
        %4133 = vst [vmem:[%s679 + $0x38] sm:$0xff] %v4125
        %s4134 = sand.u32 %s417, 1
        %s4135 = scalar_lea.sflag [#allocation5], %s4134
        %s4136 = sand.u32 %s417, 1
        %s4137 = smul.addr %s4136, 64
        %s4138 = scalar_lea.vmem [#allocation14], %s4137
        // Predicated region
        $region113: #{tpu_custom_call.1} parent=87 // pred_check
          %p4139 = pneg %p427
        $region114: #{tpu_custom_call.1} parent=87 // pred_check_branch
          %4141 = sbr.rel (%p4139) target = $region116
        $region115: #{tpu_custom_call.1} parent=87 // pred_region
          %4143 = vsyncadd %s4135, 0
          %s4144 = smul.addr %s37, 8
          %s4145 = smul.addr %s4144, 8
          %s4146 = scalar_lea.hbm %s17, %s4145
          %s4147 = sshll.u32 %s4138, 4
          %s4148 = int_to_ptr.vmem [resolvable:$true] %s4147
          %s4149 = sshll.u32 %s4146, 4
          %s4150 = int_to_ptr.hbm [resolvable:$true] %s4149
          %4155 = dma.vmem_to_hbm [thread:$0]  %s4148, 1024, %s4150, %s4135, 256, 256, 16
        $region116: #{tpu_custom_call.1} parent=87 // pred_fallthru
          _
      $region88: #{tpu_custom_call.1} parent=5 // pred_fallthru
        _
      %p4156 = scmp.le.s32.totalorder 2, %s32
      // Predicated region
      $region117: #{tpu_custom_call.1} parent=5 // pred_check
        %p4157 = pneg %p4156
      $region118: #{tpu_custom_call.1} parent=5 // pred_check_branch
        %4159 = sbr.rel (%p4157) target = $region120
      $region119: #{tpu_custom_call.1} parent=5 // pred_region
        %s4160 = ssub.s32 %s32, 2
        // Predicated region
        $region121: #{tpu_custom_call.1} parent=119 // pred_check
          %p4161 = pneg %p433
        $region122: #{tpu_custom_call.1} parent=119 // pred_check_branch
          %4163 = sbr.rel (%p4161) target = $region124
        $region123: #{tpu_custom_call.1} parent=119 // pred_region
          %s4164 = sand.u32 %s418, 1
          %s4165 = scalar_lea.sflag [#allocation5], %s4164
          %s4166 = sand.u32 %s418, 1
          %s4167 = smul.addr %s4166, 64
          %s4168 = scalar_lea.vmem [#allocation14], %s4167
          %4170 = dma.done %s4165, 1024
        $region124: #{tpu_custom_call.1} parent=119 // pred_fallthru
          _
      $region120: #{tpu_custom_call.1} parent=5 // pred_fallthru
        _
    $region6: #{tpu_custom_call.1} parent=1 // loop_footer
      %s36 = sadd.s32 1, %s32
    $region7: #{tpu_custom_call.1} parent=1 // loop_footer_branch
      %31 = sbr.rel target = $region3
    $region8: #{tpu_custom_call.1} parent=1 // loop_exit
      _
    %4171 = vsyncpa [#allocation4], 1
    %s4172 = scalar_lea.sflag [#allocation4], 1
    %4173 = vsyncpa %s4172, 1
    %4174 = vsyncpa [#allocation7], 1
    %4175 = vsyncpa [#allocation10], 1
    %4176 = vsyncpa [#allocation13], 1
    %4177 = vsyncpa [#allocation5], 1
    %s4178 = scalar_lea.sflag [#allocation5], 1
    %4179 = vsyncpa %s4178, 1

</llo_original>
